<compile_context>
chip_gen: v5e
topology: v5e:2x2
jax: 0.10.0
libtpu: 0.0.40
codegen_flags: <defaults>
</compile_context>

<pallas_src>
import numpy as np
import jax
import jax.numpy as jnp
from jax import lax
from jax.experimental import pallas as pl
from jax.experimental.pallas import tpu as pltpu

BN_EPS = 1e-5

# Geometry implied by the PyTorch module (3x32x32 input -> 16*5*5 flatten).
B = 2
H0 = W0 = 32
C0 = 3
KS = 5
OH1 = OW1 = 28
C1 = 6
PH1 = PW1 = 14
OH2 = OW2 = 10
C2 = 16
PH2 = PW2 = 5
F1, F2, F3 = 120, 64, 10
N1 = float(B * OH1 * OW1)   # BN sample count, layer 1
N2 = float(B * OH2 * OW2)   # BN sample count, layer 2


# ------------------------------ Pallas kernel --------------------------------

def _conv_bn_relu_pool(in_ref, rows_per_b, wb_ref, bias_ref, gamma_ref, beta_ref,
                       gsel_ref, gselt_ref, rsel_ref, csel_ref, out_ref,
                       oh, cch, n_count):
    """conv(5x5, valid) + BatchNorm(train stats) + ReLU + MaxPool(2,2).

    Activations are in "strip" layout: rows=(batch, image_row),
    lanes=(image_col, channel).  wb_ref[kh] is a banded weight matrix mapping
    (in_col, in_ch) lanes -> (out_col, out_ch) lanes; pooling row/col selection
    and per-channel reductions are tiny 0/1 matmuls.
    """
    zs = []
    csum = None
    csq = None
    for b in range(B):
        acc = None
        for kh in range(KS):
            r0 = b * rows_per_b + kh
            xin = in_ref[r0:r0 + oh, :].astype(jnp.bfloat16)
            part = jnp.dot(xin, wb_ref[kh], preferred_element_type=jnp.float32)
            acc = part if acc is None else acc + part
        acc = acc + bias_ref[...]
        zs.append(acc)
        # single-pass batch statistics: per-channel sum and sum of squares
        zc = jnp.dot(acc, gsel_ref[...], preferred_element_type=jnp.float32)
        zc2 = jnp.dot(acc * acc, gsel_ref[...], preferred_element_type=jnp.float32)
        bs = jnp.sum(zc, axis=0, keepdims=True)
        bs2 = jnp.sum(zc2, axis=0, keepdims=True)
        csum = bs if csum is None else csum + bs
        csq = bs2 if csq is None else csq + bs2

    mean = csum * (1.0 / n_count)
    var = csq * (1.0 / n_count) - mean * mean
    scale = gamma_ref[...] * lax.rsqrt(var + BN_EPS)          # (1, C)
    shift = beta_ref[...] - mean * scale                      # (1, C)
    # broadcast the per-channel affine back to the (col, channel) lane layout
    scale_full = jnp.dot(jnp.broadcast_to(scale, (8, cch)), gselt_ref[...],
                         preferred_element_type=jnp.float32)[0:1, :]
    shift_full = jnp.dot(jnp.broadcast_to(shift, (8, cch)), gselt_ref[...],
                         preferred_element_type=jnp.float32)[0:1, :]

    ph = oh // 2
    for b in range(B):
        y = jnp.maximum(zs[b] * scale_full + shift_full, 0.0)
        pooled = None
        for dh in range(2):
            t = jnp.dot(rsel_ref[dh], y, preferred_element_type=jnp.float32)
            for dw in range(2):
                u = jnp.dot(t, csel_ref[dw], preferred_element_type=jnp.float32)
                pooled = u if pooled is None else jnp.maximum(pooled, u)
        out_ref[b * ph:(b + 1) * ph, :] = pooled


def cnn_fused_kernel(
    x_ref,
    w1_ref, bias1_ref, gamma1_ref, beta1_ref, gsel1_ref, gsel1t_ref, rsel1_ref, csel1_ref,
    w2_ref, bias2_ref, gamma2_ref, beta2_ref, gsel2_ref, gsel2t_ref, rsel2_ref, csel2_ref,
    msel_ref, wf1_ref, bf1_ref, wf2_ref, bf2_ref, wf3_ref, bf3_ref,
    o_ref,
    p1_ref, p2_ref,
):
    # conv1 + bn1 + relu + pool1  -> p1_ref: (B*14, 14*6)
    _conv_bn_relu_pool(x_ref, H0, w1_ref, bias1_ref, gamma1_ref, beta1_ref,
                       gsel1_ref, gsel1t_ref, rsel1_ref, csel1_ref, p1_ref,
                       OH1, C1, N1)
    # conv2 + bn2 + relu + pool2  -> p2_ref: (B*5, 5*16)
    _conv_bn_relu_pool(p1_ref, PH1, w2_ref, bias2_ref, gamma2_ref, beta2_ref,
                       gsel2_ref, gsel2t_ref, rsel2_ref, csel2_ref, p2_ref,
                       OH2, C2, N2)

    # flatten (folded into pre-permuted fc1 weight blocks) + fc1/fc2/fc3
    p2 = p2_ref[...]
    acc = None
    for ph in range(PH2):
        rows = jnp.dot(msel_ref[ph], p2, preferred_element_type=jnp.float32)   # (B, PW2*C2)
        part = jnp.dot(rows.astype(jnp.bfloat16), wf1_ref[ph],
                       preferred_element_type=jnp.float32)                      # (B, F1)
        acc = part if acc is None else acc + part
    h = jnp.maximum(acc + bf1_ref[...], 0.0)
    h = jnp.maximum(
        jnp.dot(h.astype(jnp.bfloat16), wf2_ref[...],
                preferred_element_type=jnp.float32) + bf2_ref[...], 0.0)
    o_ref[...] = (
        jnp.dot(h.astype(jnp.bfloat16), wf3_ref[...],
                preferred_element_type=jnp.float32) + bf3_ref[...])


# ------------------------------ wrapper ---------------------------------------

def cnn_forward(x_nchw, p):
    # NCHW -> strip layout: rows = (batch, row), lanes = (col, channel)
    xs = jnp.transpose(x_nchw, (0, 2, 3, 1)).reshape(B * H0, W0 * C0)
    args = (
        xs,
        p["w1"], p["bias1"], p["gamma1"], p["beta1"], p["gsel1"], p["gsel1t"],
        p["rsel1"], p["csel1"],
        p["w2"], p["bias2"], p["gamma2"], p["beta2"], p["gsel2"], p["gsel2t"],
        p["rsel2"], p["csel2"],
        p["msel"], p["wf1"], p["bf1"], p["wf2"], p["bf2"], p["wf3"], p["bf3"],
    )
    vmem = pl.BlockSpec(memory_space=pltpu.MemorySpace.VMEM)
    return pl.pallas_call(
        cnn_fused_kernel,
        out_shape=jax.ShapeDtypeStruct((B, F3), jnp.float32),
        in_specs=[vmem] * len(args),
        out_specs=vmem,
        scratch_shapes=[
            pltpu.VMEM((B * PH1, PW1 * C1), jnp.float32),   # pooled conv1 output
            pltpu.VMEM((B * PH2, PW2 * C2), jnp.float32),   # pooled conv2 output
        ],
    )(*args)


# --------------------------- parameter construction --------------------------

def _banded_conv_weight(w, in_w, out_w):
    # w: (Cout, Cin, KH, KW) ->  (KH, in_w*Cin, out_w*Cout) with
    # Wb[kh, wc*Cin+ci, ow*Cout+co] = w[co, ci, kh, wc-ow]  when 0 <= wc-ow < KW.
    cout, cin, nkh, nkw = w.shape
    out = np.zeros((nkh, in_w * cin, out_w * cout), np.float32)
    for kh in range(nkh):
        for ow in range(out_w):
            for kw in range(nkw):
                wc = ow + kw
                out[kh, wc * cin:(wc + 1) * cin, ow * cout:(ow + 1) * cout] = w[:, :, kh, kw].T
    return out


def _pool_row_sel(oh):
    ph = oh // 2
    out = np.zeros((2, ph, oh), np.float32)
    for dh in range(2):
        out[dh, np.arange(ph), 2 * np.arange(ph) + dh] = 1.0
    return out


def _pool_col_sel(ow, c):
    pw = ow // 2
    out = np.zeros((2, ow * c, pw * c), np.float32)
    for dw in range(2):
        for p in range(pw):
            for ch in range(c):
                out[dw, (2 * p + dw) * c + ch, p * c + ch] = 1.0
    return out


def _chan_sum_sel(ow, c):
    out = np.zeros((ow * c, c), np.float32)
    for o in range(ow):
        out[o * c:(o + 1) * c, :] = np.eye(c, dtype=np.float32)
    return out


def _fc1_blocks(fc1_w):
    # fc1_w rows follow PyTorch's NCHW flatten: idx = c*PH2*PW2 + ph*PW2 + pw.
    out = np.zeros((PH2, PW2 * C2, F1), np.float32)
    for ph in range(PH2):
        for pw in range(PW2):
            for c in range(C2):
                out[ph, pw * C2 + c, :] = fc1_w[c * PH2 * PW2 + ph * PW2 + pw, :]
    return out


def _mlp_row_sel():
    out = np.zeros((PH2, B, B * PH2), np.float32)
    for ph in range(PH2):
        for b in range(B):
            out[ph, b, b * PH2 + ph] = 1.0
    return out


def init_raw_params(key):
    ks = jax.random.split(key, 10)

    def rnd(k, shape, scl):
        return np.asarray(jax.random.normal(k, shape, jnp.float32)) * np.float32(scl)

    return dict(
        conv1_w=rnd(ks[0], (C1, C0, KS, KS), 1.0 / np.sqrt(C0 * KS * KS)),
        conv1_b=rnd(ks[1], (C1,), 0.1),
        conv2_w=rnd(ks[2], (C2, C1, KS, KS), 1.0 / np.sqrt(C1 * KS * KS)),
        conv2_b=rnd(ks[3], (C2,), 0.1),
        gamma1=np.ones((C1,), np.float32), beta1=np.zeros((C1,), np.float32),
        gamma2=np.ones((C2,), np.float32), beta2=np.zeros((C2,), np.float32),
        fc1_w=rnd(ks[4], (C2 * PH2 * PW2, F1), 1.0 / np.sqrt(C2 * PH2 * PW2)),
        fc1_b=rnd(ks[5], (F1,), 0.1),
        fc2_w=rnd(ks[6], (F1, F2), 1.0 / np.sqrt(F1)),
        fc2_b=rnd(ks[7], (F2,), 0.1),
        fc3_w=rnd(ks[8], (F2, F3), 1.0 / np.sqrt(F2)),
        fc3_b=rnd(ks[9], (F3,), 0.1),
    )


def pack_params(raw):
    gsel1 = _chan_sum_sel(OW1, C1)
    gsel2 = _chan_sum_sel(OW2, C2)
    return dict(
        w1=jnp.asarray(_banded_conv_weight(raw["conv1_w"], W0, OW1), jnp.bfloat16),
        bias1=jnp.asarray(np.tile(raw["conv1_b"], OW1)[None, :]),
        gamma1=jnp.asarray(raw["gamma1"][None, :]),
        beta1=jnp.asarray(raw["beta1"][None, :]),
        gsel1=jnp.asarray(gsel1),
        gsel1t=jnp.asarray(np.ascontiguousarray(gsel1.T)),
        rsel1=jnp.asarray(_pool_row_sel(OH1)),
        csel1=jnp.asarray(_pool_col_sel(OW1, C1)),
        w2=jnp.asarray(_banded_conv_weight(raw["conv2_w"], PW1, OW2), jnp.bfloat16),
        bias2=jnp.asarray(np.tile(raw["conv2_b"], OW2)[None, :]),
        gamma2=jnp.asarray(raw["gamma2"][None, :]),
        beta2=jnp.asarray(raw["beta2"][None, :]),
        gsel2=jnp.asarray(gsel2),
        gsel2t=jnp.asarray(np.ascontiguousarray(gsel2.T)),
        rsel2=jnp.asarray(_pool_row_sel(OH2)),
        csel2=jnp.asarray(_pool_col_sel(OW2, C2)),
        msel=jnp.asarray(_mlp_row_sel()),
        wf1=jnp.asarray(_fc1_blocks(raw["fc1_w"]), jnp.bfloat16),
        bf1=jnp.asarray(raw["fc1_b"][None, :]),
        wf2=jnp.asarray(raw["fc2_w"], jnp.bfloat16),
        bf2=jnp.asarray(raw["fc2_b"][None, :]),
        wf3=jnp.asarray(raw["fc3_w"], jnp.bfloat16),
        bf3=jnp.asarray(raw["fc3_b"][None, :]),
    )


# --------------------------- pure-JAX reference -------------------------------

def reference_forward(x_nchw, raw):
    x = jnp.transpose(x_nchw, (0, 2, 3, 1))

    def block(x, w, b, g, be):
        cout = w.shape[0]
        wh = jnp.transpose(jnp.asarray(w), (2, 3, 1, 0))  # OIHW -> HWIO
        y = lax.conv_general_dilated(x, wh, (1, 1), "VALID",
                                     dimension_numbers=("NHWC", "HWIO", "NHWC"))
        y = y + jnp.asarray(b).reshape(1, 1, 1, cout)
        mean = jnp.mean(y, axis=(0, 1, 2), keepdims=True)
        var = jnp.var(y, axis=(0, 1, 2), keepdims=True)
        y = (y - mean) * lax.rsqrt(var + BN_EPS) * jnp.asarray(g).reshape(1, 1, 1, cout) \
            + jnp.asarray(be).reshape(1, 1, 1, cout)
        y = jnp.maximum(y, 0.0)
        return lax.reduce_window(y, -jnp.inf, lax.max, (1, 2, 2, 1), (1, 2, 2, 1), "VALID")

    h = block(x, raw["conv1_w"], raw["conv1_b"], raw["gamma1"], raw["beta1"])
    h = block(h, raw["conv2_w"], raw["conv2_b"], raw["gamma2"], raw["beta2"])
    flat = jnp.transpose(h, (0, 3, 1, 2)).reshape(x.shape[0], C2 * PH2 * PW2)
    h = jnp.maximum(flat @ raw["fc1_w"] + raw["fc1_b"], 0.0)
    h = jnp.maximum(h @ raw["fc2_w"] + raw["fc2_b"], 0.0)
    return h @ raw["fc3_w"] + raw["fc3_b"]


# ------------------------------- main ----------------------------------------

if __name__ == "__main__":
    key = jax.random.PRNGKey(0)
    kx, kp = jax.random.split(key)
    x = jax.random.normal(kx, (B, C0, H0, W0), jnp.float32)  # NCHW, like PyTorch
    raw = init_raw_params(kp)
    packed = pack_params(raw)

    out = jax.jit(cnn_forward)(x, packed)
    out = jax.block_until_ready(out)
    assert out.shape == (B, F3), out.shape

    ref = reference_forward(x, raw)
    max_err = float(jnp.max(jnp.abs(out - ref)))
    if max_err > 1e-1:
        raise AssertionError(f"Pallas output mismatch vs reference, max abs err = {max_err}")

    print("KERNEL_OK")
</pallas_src>

<mosaic_0001>
module attributes {stable_mosaic.version = 11 : i64} {
  func.func @cnn_fused_kernel(%arg0: memref<64x96xf32, #tpu.memory_space<vmem>>, %arg1: memref<5x96x168xbf16, #tpu.memory_space<vmem>>, %arg2: memref<1x168xf32, #tpu.memory_space<vmem>>, %arg3: memref<1x6xf32, #tpu.memory_space<vmem>>, %arg4: memref<1x6xf32, #tpu.memory_space<vmem>>, %arg5: memref<168x6xf32, #tpu.memory_space<vmem>>, %arg6: memref<6x168xf32, #tpu.memory_space<vmem>>, %arg7: memref<2x14x28xf32, #tpu.memory_space<vmem>>, %arg8: memref<2x168x84xf32, #tpu.memory_space<vmem>>, %arg9: memref<5x84x160xbf16, #tpu.memory_space<vmem>>, %arg10: memref<1x160xf32, #tpu.memory_space<vmem>>, %arg11: memref<1x16xf32, #tpu.memory_space<vmem>>, %arg12: memref<1x16xf32, #tpu.memory_space<vmem>>, %arg13: memref<160x16xf32, #tpu.memory_space<vmem>>, %arg14: memref<16x160xf32, #tpu.memory_space<vmem>>, %arg15: memref<2x5x10xf32, #tpu.memory_space<vmem>>, %arg16: memref<2x160x80xf32, #tpu.memory_space<vmem>>, %arg17: memref<5x2x10xf32, #tpu.memory_space<vmem>>, %arg18: memref<5x80x120xbf16, #tpu.memory_space<vmem>>, %arg19: memref<1x120xf32, #tpu.memory_space<vmem>>, %arg20: memref<120x64xbf16, #tpu.memory_space<vmem>>, %arg21: memref<1x64xf32, #tpu.memory_space<vmem>>, %arg22: memref<64x10xbf16, #tpu.memory_space<vmem>>, %arg23: memref<1x10xf32, #tpu.memory_space<vmem>>, %arg24: memref<2x10xf32, #tpu.memory_space<vmem>>, %arg25: memref<28x84xf32, #tpu.memory_space<vmem>>, %arg26: memref<10x80xf32, #tpu.memory_space<vmem>>) attributes {dimension_semantics = [], scalar_prefetch = 0 : i64, scratch_operands = 2 : i64, tpu.core_type = #tpu.core_type<tc>} {
    %c0 = arith.constant 0 : index
    %c0_0 = arith.constant 0 : index
    %0 = vector.load %arg0[%c0, %c0_0] : memref<64x96xf32, #tpu.memory_space<vmem>>, vector<28x96xf32>
    %1 = arith.truncf %0 : vector<28x96xf32> to vector<28x96xbf16>
    %c0_1 = arith.constant 0 : index
    %c0_2 = arith.constant 0 : index
    %c0_3 = arith.constant 0 : index
    %2 = vector.load %arg1[%c0_1, %c0_2, %c0_3] : memref<5x96x168xbf16, #tpu.memory_space<vmem>>, vector<1x96x168xbf16>
    %3 = vector.shape_cast %2 : vector<1x96x168xbf16> to vector<96x168xbf16>
    %cst = arith.constant dense<0.000000e+00> : vector<28x168xf32>
    %4 = tpu.matmul %1, %3, %cst {dimension_numbers = #tpu.dot_dimension_numbers<[1], [0], [0], [1], [0, 0, 1, 1], [], []>} : vector<28x96xbf16>, vector<96x168xbf16>, vector<28x168xf32> -> vector<28x168xf32>
    %c1 = arith.constant 1 : index
    %c0_4 = arith.constant 0 : index
    %5 = vector.load %arg0[%c1, %c0_4] : memref<64x96xf32, #tpu.memory_space<vmem>>, vector<28x96xf32>
    %6 = arith.truncf %5 : vector<28x96xf32> to vector<28x96xbf16>
    %c1_5 = arith.constant 1 : index
    %c0_6 = arith.constant 0 : index
    %c0_7 = arith.constant 0 : index
    %7 = vector.load %arg1[%c1_5, %c0_6, %c0_7] : memref<5x96x168xbf16, #tpu.memory_space<vmem>>, vector<1x96x168xbf16>
    %8 = vector.shape_cast %7 : vector<1x96x168xbf16> to vector<96x168xbf16>
    %cst_8 = arith.constant dense<0.000000e+00> : vector<28x168xf32>
    %9 = tpu.matmul %6, %8, %cst_8 {dimension_numbers = #tpu.dot_dimension_numbers<[1], [0], [0], [1], [0, 0, 1, 1], [], []>} : vector<28x96xbf16>, vector<96x168xbf16>, vector<28x168xf32> -> vector<28x168xf32>
    %10 = arith.addf %4, %9 : vector<28x168xf32>
    %c2 = arith.constant 2 : index
    %c0_9 = arith.constant 0 : index
    %11 = vector.load %arg0[%c2, %c0_9] : memref<64x96xf32, #tpu.memory_space<vmem>>, vector<28x96xf32>
    %12 = arith.truncf %11 : vector<28x96xf32> to vector<28x96xbf16>
    %c2_10 = arith.constant 2 : index
    %c0_11 = arith.constant 0 : index
    %c0_12 = arith.constant 0 : index
    %13 = vector.load %arg1[%c2_10, %c0_11, %c0_12] : memref<5x96x168xbf16, #tpu.memory_space<vmem>>, vector<1x96x168xbf16>
    %14 = vector.shape_cast %13 : vector<1x96x168xbf16> to vector<96x168xbf16>
    %cst_13 = arith.constant dense<0.000000e+00> : vector<28x168xf32>
    %15 = tpu.matmul %12, %14, %cst_13 {dimension_numbers = #tpu.dot_dimension_numbers<[1], [0], [0], [1], [0, 0, 1, 1], [], []>} : vector<28x96xbf16>, vector<96x168xbf16>, vector<28x168xf32> -> vector<28x168xf32>
    %16 = arith.addf %10, %15 : vector<28x168xf32>
    %c3 = arith.constant 3 : index
    %c0_14 = arith.constant 0 : index
    %17 = vector.load %arg0[%c3, %c0_14] : memref<64x96xf32, #tpu.memory_space<vmem>>, vector<28x96xf32>
    %18 = arith.truncf %17 : vector<28x96xf32> to vector<28x96xbf16>
    %c3_15 = arith.constant 3 : index
    %c0_16 = arith.constant 0 : index
    %c0_17 = arith.constant 0 : index
    %19 = vector.load %arg1[%c3_15, %c0_16, %c0_17] : memref<5x96x168xbf16, #tpu.memory_space<vmem>>, vector<1x96x168xbf16>
    %20 = vector.shape_cast %19 : vector<1x96x168xbf16> to vector<96x168xbf16>
    %cst_18 = arith.constant dense<0.000000e+00> : vector<28x168xf32>
    %21 = tpu.matmul %18, %20, %cst_18 {dimension_numbers = #tpu.dot_dimension_numbers<[1], [0], [0], [1], [0, 0, 1, 1], [], []>} : vector<28x96xbf16>, vector<96x168xbf16>, vector<28x168xf32> -> vector<28x168xf32>
    %22 = arith.addf %16, %21 : vector<28x168xf32>
    %c4 = arith.constant 4 : index
    %c0_19 = arith.constant 0 : index
    %23 = vector.load %arg0[%c4, %c0_19] : memref<64x96xf32, #tpu.memory_space<vmem>>, vector<28x96xf32>
    %24 = arith.truncf %23 : vector<28x96xf32> to vector<28x96xbf16>
    %c4_20 = arith.constant 4 : index
    %c0_21 = arith.constant 0 : index
    %c0_22 = arith.constant 0 : index
    %25 = vector.load %arg1[%c4_20, %c0_21, %c0_22] : memref<5x96x168xbf16, #tpu.memory_space<vmem>>, vector<1x96x168xbf16>
    %26 = vector.shape_cast %25 : vector<1x96x168xbf16> to vector<96x168xbf16>
    %cst_23 = arith.constant dense<0.000000e+00> : vector<28x168xf32>
    %27 = tpu.matmul %24, %26, %cst_23 {dimension_numbers = #tpu.dot_dimension_numbers<[1], [0], [0], [1], [0, 0, 1, 1], [], []>} : vector<28x96xbf16>, vector<96x168xbf16>, vector<28x168xf32> -> vector<28x168xf32>
    %28 = arith.addf %22, %27 : vector<28x168xf32>
    %c0_24 = arith.constant 0 : index
    %c0_25 = arith.constant 0 : index
    %29 = vector.load %arg2[%c0_24, %c0_25] : memref<1x168xf32, #tpu.memory_space<vmem>>, vector<1x168xf32>
    %30 = vector.broadcast %29 : vector<1x168xf32> to vector<28x168xf32>
    %31 = arith.addf %28, %30 : vector<28x168xf32>
    %c0_26 = arith.constant 0 : index
    %c0_27 = arith.constant 0 : index
    %32 = vector.load %arg5[%c0_26, %c0_27] : memref<168x6xf32, #tpu.memory_space<vmem>>, vector<168x6xf32>
    %cst_28 = arith.constant dense<0.000000e+00> : vector<28x6xf32>
    %33 = tpu.matmul %31, %32, %cst_28 {dimension_numbers = #tpu.dot_dimension_numbers<[1], [0], [0], [1], [0, 0, 1, 1], [], []>} : vector<28x168xf32>, vector<168x6xf32>, vector<28x6xf32> -> vector<28x6xf32>
    %34 = arith.mulf %31, %31 : vector<28x168xf32>
    %c0_29 = arith.constant 0 : index
    %c0_30 = arith.constant 0 : index
    %35 = vector.load %arg5[%c0_29, %c0_30] : memref<168x6xf32, #tpu.memory_space<vmem>>, vector<168x6xf32>
    %cst_31 = arith.constant dense<0.000000e+00> : vector<28x6xf32>
    %36 = tpu.matmul %34, %35, %cst_31 {dimension_numbers = #tpu.dot_dimension_numbers<[1], [0], [0], [1], [0, 0, 1, 1], [], []>} : vector<28x168xf32>, vector<168x6xf32>, vector<28x6xf32> -> vector<28x6xf32>
    %cst_32 = arith.constant dense<0.000000e+00> : vector<6xf32>
    %37 = vector.multi_reduction <add>, %33, %cst_32 [0] : vector<28x6xf32> to vector<6xf32>
    %38 = vector.shape_cast %37 : vector<6xf32> to vector<1x6xf32>
    %cst_33 = arith.constant dense<0.000000e+00> : vector<6xf32>
    %39 = vector.multi_reduction <add>, %36, %cst_33 [0] : vector<28x6xf32> to vector<6xf32>
    %40 = vector.shape_cast %39 : vector<6xf32> to vector<1x6xf32>
    %c32 = arith.constant 32 : index
    %c0_34 = arith.constant 0 : index
    %41 = vector.load %arg0[%c32, %c0_34] : memref<64x96xf32, #tpu.memory_space<vmem>>, vector<28x96xf32>
    %42 = arith.truncf %41 : vector<28x96xf32> to vector<28x96xbf16>
    %c0_35 = arith.constant 0 : index
    %c0_36 = arith.constant 0 : index
    %c0_37 = arith.constant 0 : index
    %43 = vector.load %arg1[%c0_35, %c0_36, %c0_37] : memref<5x96x168xbf16, #tpu.memory_space<vmem>>, vector<1x96x168xbf16>
    %44 = vector.shape_cast %43 : vector<1x96x168xbf16> to vector<96x168xbf16>
    %cst_38 = arith.constant dense<0.000000e+00> : vector<28x168xf32>
    %45 = tpu.matmul %42, %44, %cst_38 {dimension_numbers = #tpu.dot_dimension_numbers<[1], [0], [0], [1], [0, 0, 1, 1], [], []>} : vector<28x96xbf16>, vector<96x168xbf16>, vector<28x168xf32> -> vector<28x168xf32>
    %c33 = arith.constant 33 : index
    %c0_39 = arith.constant 0 : index
    %46 = vector.load %arg0[%c33, %c0_39] : memref<64x96xf32, #tpu.memory_space<vmem>>, vector<28x96xf32>
    %47 = arith.truncf %46 : vector<28x96xf32> to vector<28x96xbf16>
    %c1_40 = arith.constant 1 : index
    %c0_41 = arith.constant 0 : index
    %c0_42 = arith.constant 0 : index
    %48 = vector.load %arg1[%c1_40, %c0_41, %c0_42] : memref<5x96x168xbf16, #tpu.memory_space<vmem>>, vector<1x96x168xbf16>
    %49 = vector.shape_cast %48 : vector<1x96x168xbf16> to vector<96x168xbf16>
    %cst_43 = arith.constant dense<0.000000e+00> : vector<28x168xf32>
    %50 = tpu.matmul %47, %49, %cst_43 {dimension_numbers = #tpu.dot_dimension_numbers<[1], [0], [0], [1], [0, 0, 1, 1], [], []>} : vector<28x96xbf16>, vector<96x168xbf16>, vector<28x168xf32> -> vector<28x168xf32>
    %51 = arith.addf %45, %50 : vector<28x168xf32>
    %c34 = arith.constant 34 : index
    %c0_44 = arith.constant 0 : index
    %52 = vector.load %arg0[%c34, %c0_44] : memref<64x96xf32, #tpu.memory_space<vmem>>, vector<28x96xf32>
    %53 = arith.truncf %52 : vector<28x96xf32> to vector<28x96xbf16>
    %c2_45 = arith.constant 2 : index
    %c0_46 = arith.constant 0 : index
    %c0_47 = arith.constant 0 : index
    %54 = vector.load %arg1[%c2_45, %c0_46, %c0_47] : memref<5x96x168xbf16, #tpu.memory_space<vmem>>, vector<1x96x168xbf16>
    %55 = vector.shape_cast %54 : vector<1x96x168xbf16> to vector<96x168xbf16>
    %cst_48 = arith.constant dense<0.000000e+00> : vector<28x168xf32>
    %56 = tpu.matmul %53, %55, %cst_48 {dimension_numbers = #tpu.dot_dimension_numbers<[1], [0], [0], [1], [0, 0, 1, 1], [], []>} : vector<28x96xbf16>, vector<96x168xbf16>, vector<28x168xf32> -> vector<28x168xf32>
    %57 = arith.addf %51, %56 : vector<28x168xf32>
    %c35 = arith.constant 35 : index
    %c0_49 = arith.constant 0 : index
    %58 = vector.load %arg0[%c35, %c0_49] : memref<64x96xf32, #tpu.memory_space<vmem>>, vector<28x96xf32>
    %59 = arith.truncf %58 : vector<28x96xf32> to vector<28x96xbf16>
    %c3_50 = arith.constant 3 : index
    %c0_51 = arith.constant 0 : index
    %c0_52 = arith.constant 0 : index
    %60 = vector.load %arg1[%c3_50, %c0_51, %c0_52] : memref<5x96x168xbf16, #tpu.memory_space<vmem>>, vector<1x96x168xbf16>
    %61 = vector.shape_cast %60 : vector<1x96x168xbf16> to vector<96x168xbf16>
    %cst_53 = arith.constant dense<0.000000e+00> : vector<28x168xf32>
    %62 = tpu.matmul %59, %61, %cst_53 {dimension_numbers = #tpu.dot_dimension_numbers<[1], [0], [0], [1], [0, 0, 1, 1], [], []>} : vector<28x96xbf16>, vector<96x168xbf16>, vector<28x168xf32> -> vector<28x168xf32>
    %63 = arith.addf %57, %62 : vector<28x168xf32>
    %c36 = arith.constant 36 : index
    %c0_54 = arith.constant 0 : index
    %64 = vector.load %arg0[%c36, %c0_54] : memref<64x96xf32, #tpu.memory_space<vmem>>, vector<28x96xf32>
    %65 = arith.truncf %64 : vector<28x96xf32> to vector<28x96xbf16>
    %c4_55 = arith.constant 4 : index
    %c0_56 = arith.constant 0 : index
    %c0_57 = arith.constant 0 : index
    %66 = vector.load %arg1[%c4_55, %c0_56, %c0_57] : memref<5x96x168xbf16, #tpu.memory_space<vmem>>, vector<1x96x168xbf16>
    %67 = vector.shape_cast %66 : vector<1x96x168xbf16> to vector<96x168xbf16>
    %cst_58 = arith.constant dense<0.000000e+00> : vector<28x168xf32>
    %68 = tpu.matmul %65, %67, %cst_58 {dimension_numbers = #tpu.dot_dimension_numbers<[1], [0], [0], [1], [0, 0, 1, 1], [], []>} : vector<28x96xbf16>, vector<96x168xbf16>, vector<28x168xf32> -> vector<28x168xf32>
    %69 = arith.addf %63, %68 : vector<28x168xf32>
    %c0_59 = arith.constant 0 : index
    %c0_60 = arith.constant 0 : index
    %70 = vector.load %arg2[%c0_59, %c0_60] : memref<1x168xf32, #tpu.memory_space<vmem>>, vector<1x168xf32>
    %71 = vector.broadcast %70 : vector<1x168xf32> to vector<28x168xf32>
    %72 = arith.addf %69, %71 : vector<28x168xf32>
    %c0_61 = arith.constant 0 : index
    %c0_62 = arith.constant 0 : index
    %73 = vector.load %arg5[%c0_61, %c0_62] : memref<168x6xf32, #tpu.memory_space<vmem>>, vector<168x6xf32>
    %cst_63 = arith.constant dense<0.000000e+00> : vector<28x6xf32>
    %74 = tpu.matmul %72, %73, %cst_63 {dimension_numbers = #tpu.dot_dimension_numbers<[1], [0], [0], [1], [0, 0, 1, 1], [], []>} : vector<28x168xf32>, vector<168x6xf32>, vector<28x6xf32> -> vector<28x6xf32>
    %75 = arith.mulf %72, %72 : vector<28x168xf32>
    %c0_64 = arith.constant 0 : index
    %c0_65 = arith.constant 0 : index
    %76 = vector.load %arg5[%c0_64, %c0_65] : memref<168x6xf32, #tpu.memory_space<vmem>>, vector<168x6xf32>
    %cst_66 = arith.constant dense<0.000000e+00> : vector<28x6xf32>
    %77 = tpu.matmul %75, %76, %cst_66 {dimension_numbers = #tpu.dot_dimension_numbers<[1], [0], [0], [1], [0, 0, 1, 1], [], []>} : vector<28x168xf32>, vector<168x6xf32>, vector<28x6xf32> -> vector<28x6xf32>
    %cst_67 = arith.constant dense<0.000000e+00> : vector<6xf32>
    %78 = vector.multi_reduction <add>, %74, %cst_67 [0] : vector<28x6xf32> to vector<6xf32>
    %79 = vector.shape_cast %78 : vector<6xf32> to vector<1x6xf32>
    %cst_68 = arith.constant dense<0.000000e+00> : vector<6xf32>
    %80 = vector.multi_reduction <add>, %77, %cst_68 [0] : vector<28x6xf32> to vector<6xf32>
    %81 = vector.shape_cast %80 : vector<6xf32> to vector<1x6xf32>
    %82 = arith.addf %38, %79 : vector<1x6xf32>
    %83 = arith.addf %40, %81 : vector<1x6xf32>
    %cst_69 = arith.constant 6.37755089E-4 : f32
    %84 = vector.broadcast %cst_69 : f32 to vector<1x6xf32>
    %85 = arith.mulf %82, %84 : vector<1x6xf32>
    %cst_70 = arith.constant 6.37755089E-4 : f32
    %86 = vector.broadcast %cst_70 : f32 to vector<1x6xf32>
    %87 = arith.mulf %83, %86 : vector<1x6xf32>
    %88 = arith.mulf %85, %85 : vector<1x6xf32>
    %89 = arith.subf %87, %88 : vector<1x6xf32>
    %c0_71 = arith.constant 0 : index
    %c0_72 = arith.constant 0 : index
    %90 = vector.load %arg3[%c0_71, %c0_72] : memref<1x6xf32, #tpu.memory_space<vmem>>, vector<1x6xf32>
    %cst_73 = arith.constant 9.99999974E-6 : f32
    %91 = vector.broadcast %cst_73 : f32 to vector<1x6xf32>
    %92 = arith.addf %89, %91 : vector<1x6xf32>
    %93 = math.rsqrt %92 : vector<1x6xf32>
    %94 = arith.mulf %90, %93 : vector<1x6xf32>
    %c0_74 = arith.constant 0 : index
    %c0_75 = arith.constant 0 : index
    %95 = vector.load %arg4[%c0_74, %c0_75] : memref<1x6xf32, #tpu.memory_space<vmem>>, vector<1x6xf32>
    %96 = arith.mulf %85, %94 : vector<1x6xf32>
    %97 = arith.subf %95, %96 : vector<1x6xf32>
    %98 = vector.shape_cast %94 : vector<1x6xf32> to vector<1x6xf32>
    %99 = vector.broadcast %98 : vector<1x6xf32> to vector<8x6xf32>
    %c0_76 = arith.constant 0 : index
    %c0_77 = arith.constant 0 : index
    %100 = vector.load %arg6[%c0_76, %c0_77] : memref<6x168xf32, #tpu.memory_space<vmem>>, vector<6x168xf32>
    %cst_78 = arith.constant dense<0.000000e+00> : vector<8x168xf32>
    %101 = tpu.matmul %99, %100, %cst_78 {dimension_numbers = #tpu.dot_dimension_numbers<[1], [0], [0], [1], [0, 0, 1, 1], [], []>} : vector<8x6xf32>, vector<6x168xf32>, vector<8x168xf32> -> vector<8x168xf32>
    %102 = vector.extract_strided_slice %101 {offsets = [0, 0], sizes = [1, 168], strides = [1, 1]} : vector<8x168xf32> to vector<1x168xf32>
    %103 = vector.shape_cast %97 : vector<1x6xf32> to vector<1x6xf32>
    %104 = vector.broadcast %103 : vector<1x6xf32> to vector<8x6xf32>
    %c0_79 = arith.constant 0 : index
    %c0_80 = arith.constant 0 : index
    %105 = vector.load %arg6[%c0_79, %c0_80] : memref<6x168xf32, #tpu.memory_space<vmem>>, vector<6x168xf32>
    %cst_81 = arith.constant dense<0.000000e+00> : vector<8x168xf32>
    %106 = tpu.matmul %104, %105, %cst_81 {dimension_numbers = #tpu.dot_dimension_numbers<[1], [0], [0], [1], [0, 0, 1, 1], [], []>} : vector<8x6xf32>, vector<6x168xf32>, vector<8x168xf32> -> vector<8x168xf32>
    %107 = vector.extract_strided_slice %106 {offsets = [0, 0], sizes = [1, 168], strides = [1, 1]} : vector<8x168xf32> to vector<1x168xf32>
    %108 = vector.broadcast %102 : vector<1x168xf32> to vector<28x168xf32>
    %109 = arith.mulf %31, %108 : vector<28x168xf32>
    %110 = vector.broadcast %107 : vector<1x168xf32> to vector<28x168xf32>
    %111 = arith.addf %109, %110 : vector<28x168xf32>
    %cst_82 = arith.constant 0.000000e+00 : f32
    %112 = vector.broadcast %cst_82 : f32 to vector<28x168xf32>
    %113 = arith.maximumf %111, %112 : vector<28x168xf32>
    %c0_83 = arith.constant 0 : index
    %c0_84 = arith.constant 0 : index
    %c0_85 = arith.constant 0 : index
    %114 = vector.load %arg7[%c0_83, %c0_84, %c0_85] : memref<2x14x28xf32, #tpu.memory_space<vmem>>, vector<1x14x28xf32>
    %115 = vector.shape_cast %114 : vector<1x14x28xf32> to vector<14x28xf32>
    %cst_86 = arith.constant dense<0.000000e+00> : vector<14x168xf32>
    %116 = tpu.matmul %115, %113, %cst_86 {dimension_numbers = #tpu.dot_dimension_numbers<[1], [0], [0], [1], [0, 0, 1, 1], [], []>} : vector<14x28xf32>, vector<28x168xf32>, vector<14x168xf32> -> vector<14x168xf32>
    %c0_87 = arith.constant 0 : index
    %c0_88 = arith.constant 0 : index
    %c0_89 = arith.constant 0 : index
    %117 = vector.load %arg8[%c0_87, %c0_88, %c0_89] : memref<2x168x84xf32, #tpu.memory_space<vmem>>, vector<1x168x84xf32>
    %118 = vector.shape_cast %117 : vector<1x168x84xf32> to vector<168x84xf32>
    %cst_90 = arith.constant dense<0.000000e+00> : vector<14x84xf32>
    %119 = tpu.matmul %116, %118, %cst_90 {dimension_numbers = #tpu.dot_dimension_numbers<[1], [0], [0], [1], [0, 0, 1, 1], [], []>} : vector<14x168xf32>, vector<168x84xf32>, vector<14x84xf32> -> vector<14x84xf32>
    %c1_91 = arith.constant 1 : index
    %c0_92 = arith.constant 0 : index
    %c0_93 = arith.constant 0 : index
    %120 = vector.load %arg8[%c1_91, %c0_92, %c0_93] : memref<2x168x84xf32, #tpu.memory_space<vmem>>, vector<1x168x84xf32>
    %121 = vector.shape_cast %120 : vector<1x168x84xf32> to vector<168x84xf32>
    %cst_94 = arith.constant dense<0.000000e+00> : vector<14x84xf32>
    %122 = tpu.matmul %116, %121, %cst_94 {dimension_numbers = #tpu.dot_dimension_numbers<[1], [0], [0], [1], [0, 0, 1, 1], [], []>} : vector<14x168xf32>, vector<168x84xf32>, vector<14x84xf32> -> vector<14x84xf32>
    %123 = arith.maximumf %119, %122 : vector<14x84xf32>
    %c1_95 = arith.constant 1 : index
    %c0_96 = arith.constant 0 : index
    %c0_97 = arith.constant 0 : index
    %124 = vector.load %arg7[%c1_95, %c0_96, %c0_97] : memref<2x14x28xf32, #tpu.memory_space<vmem>>, vector<1x14x28xf32>
    %125 = vector.shape_cast %124 : vector<1x14x28xf32> to vector<14x28xf32>
    %cst_98 = arith.constant dense<0.000000e+00> : vector<14x168xf32>
    %126 = tpu.matmul %125, %113, %cst_98 {dimension_numbers = #tpu.dot_dimension_numbers<[1], [0], [0], [1], [0, 0, 1, 1], [], []>} : vector<14x28xf32>, vector<28x168xf32>, vector<14x168xf32> -> vector<14x168xf32>
    %c0_99 = arith.constant 0 : index
    %c0_100 = arith.constant 0 : index
    %c0_101 = arith.constant 0 : index
    %127 = vector.load %arg8[%c0_99, %c0_100, %c0_101] : memref<2x168x84xf32, #tpu.memory_space<vmem>>, vector<1x168x84xf32>
    %128 = vector.shape_cast %127 : vector<1x168x84xf32> to vector<168x84xf32>
    %cst_102 = arith.constant dense<0.000000e+00> : vector<14x84xf32>
    %129 = tpu.matmul %126, %128, %cst_102 {dimension_numbers = #tpu.dot_dimension_numbers<[1], [0], [0], [1], [0, 0, 1, 1], [], []>} : vector<14x168xf32>, vector<168x84xf32>, vector<14x84xf32> -> vector<14x84xf32>
    %130 = arith.maximumf %123, %129 : vector<14x84xf32>
    %c1_103 = arith.constant 1 : index
    %c0_104 = arith.constant 0 : index
    %c0_105 = arith.constant 0 : index
    %131 = vector.load %arg8[%c1_103, %c0_104, %c0_105] : memref<2x168x84xf32, #tpu.memory_space<vmem>>, vector<1x168x84xf32>
    %132 = vector.shape_cast %131 : vector<1x168x84xf32> to vector<168x84xf32>
    %cst_106 = arith.constant dense<0.000000e+00> : vector<14x84xf32>
    %133 = tpu.matmul %126, %132, %cst_106 {dimension_numbers = #tpu.dot_dimension_numbers<[1], [0], [0], [1], [0, 0, 1, 1], [], []>} : vector<14x168xf32>, vector<168x84xf32>, vector<14x84xf32> -> vector<14x84xf32>
    %134 = arith.maximumf %130, %133 : vector<14x84xf32>
    %c0_107 = arith.constant 0 : index
    %c0_108 = arith.constant 0 : index
    %135 = vector.load %arg25[%c0_107, %c0_108] : memref<28x84xf32, #tpu.memory_space<vmem>>, vector<14x84xf32>
    tpu.vector_store %arg25[%c0_107, %c0_108], %134 {strides = array<i32>} : memref<28x84xf32, #tpu.memory_space<vmem>>, vector<14x84xf32>,
    %136 = vector.broadcast %102 : vector<1x168xf32> to vector<28x168xf32>
    %137 = arith.mulf %72, %136 : vector<28x168xf32>
    %138 = vector.broadcast %107 : vector<1x168xf32> to vector<28x168xf32>
    %139 = arith.addf %137, %138 : vector<28x168xf32>
    %cst_109 = arith.constant 0.000000e+00 : f32
    %140 = vector.broadcast %cst_109 : f32 to vector<28x168xf32>
    %141 = arith.maximumf %139, %140 : vector<28x168xf32>
    %c0_110 = arith.constant 0 : index
    %c0_111 = arith.constant 0 : index
    %c0_112 = arith.constant 0 : index
    %142 = vector.load %arg7[%c0_110, %c0_111, %c0_112] : memref<2x14x28xf32, #tpu.memory_space<vmem>>, vector<1x14x28xf32>
    %143 = vector.shape_cast %142 : vector<1x14x28xf32> to vector<14x28xf32>
    %cst_113 = arith.constant dense<0.000000e+00> : vector<14x168xf32>
    %144 = tpu.matmul %143, %141, %cst_113 {dimension_numbers = #tpu.dot_dimension_numbers<[1], [0], [0], [1], [0, 0, 1, 1], [], []>} : vector<14x28xf32>, vector<28x168xf32>, vector<14x168xf32> -> vector<14x168xf32>
    %c0_114 = arith.constant 0 : index
    %c0_115 = arith.constant 0 : index
    %c0_116 = arith.constant 0 : index
    %145 = vector.load %arg8[%c0_114, %c0_115, %c0_116] : memref<2x168x84xf32, #tpu.memory_space<vmem>>, vector<1x168x84xf32>
    %146 = vector.shape_cast %145 : vector<1x168x84xf32> to vector<168x84xf32>
    %cst_117 = arith.constant dense<0.000000e+00> : vector<14x84xf32>
    %147 = tpu.matmul %144, %146, %cst_117 {dimension_numbers = #tpu.dot_dimension_numbers<[1], [0], [0], [1], [0, 0, 1, 1], [], []>} : vector<14x168xf32>, vector<168x84xf32>, vector<14x84xf32> -> vector<14x84xf32>
    %c1_118 = arith.constant 1 : index
    %c0_119 = arith.constant 0 : index
    %c0_120 = arith.constant 0 : index
    %148 = vector.load %arg8[%c1_118, %c0_119, %c0_120] : memref<2x168x84xf32, #tpu.memory_space<vmem>>, vector<1x168x84xf32>
    %149 = vector.shape_cast %148 : vector<1x168x84xf32> to vector<168x84xf32>
    %cst_121 = arith.constant dense<0.000000e+00> : vector<14x84xf32>
    %150 = tpu.matmul %144, %149, %cst_121 {dimension_numbers = #tpu.dot_dimension_numbers<[1], [0], [0], [1], [0, 0, 1, 1], [], []>} : vector<14x168xf32>, vector<168x84xf32>, vector<14x84xf32> -> vector<14x84xf32>
    %151 = arith.maximumf %147, %150 : vector<14x84xf32>
    %c1_122 = arith.constant 1 : index
    %c0_123 = arith.constant 0 : index
    %c0_124 = arith.constant 0 : index
    %152 = vector.load %arg7[%c1_122, %c0_123, %c0_124] : memref<2x14x28xf32, #tpu.memory_space<vmem>>, vector<1x14x28xf32>
    %153 = vector.shape_cast %152 : vector<1x14x28xf32> to vector<14x28xf32>
    %cst_125 = arith.constant dense<0.000000e+00> : vector<14x168xf32>
    %154 = tpu.matmul %153, %141, %cst_125 {dimension_numbers = #tpu.dot_dimension_numbers<[1], [0], [0], [1], [0, 0, 1, 1], [], []>} : vector<14x28xf32>, vector<28x168xf32>, vector<14x168xf32> -> vector<14x168xf32>
    %c0_126 = arith.constant 0 : index
    %c0_127 = arith.constant 0 : index
    %c0_128 = arith.constant 0 : index
    %155 = vector.load %arg8[%c0_126, %c0_127, %c0_128] : memref<2x168x84xf32, #tpu.memory_space<vmem>>, vector<1x168x84xf32>
    %156 = vector.shape_cast %155 : vector<1x168x84xf32> to vector<168x84xf32>
    %cst_129 = arith.constant dense<0.000000e+00> : vector<14x84xf32>
    %157 = tpu.matmul %154, %156, %cst_129 {dimension_numbers = #tpu.dot_dimension_numbers<[1], [0], [0], [1], [0, 0, 1, 1], [], []>} : vector<14x168xf32>, vector<168x84xf32>, vector<14x84xf32> -> vector<14x84xf32>
    %158 = arith.maximumf %151, %157 : vector<14x84xf32>
    %c1_130 = arith.constant 1 : index
    %c0_131 = arith.constant 0 : index
    %c0_132 = arith.constant 0 : index
    %159 = vector.load %arg8[%c1_130, %c0_131, %c0_132] : memref<2x168x84xf32, #tpu.memory_space<vmem>>, vector<1x168x84xf32>
    %160 = vector.shape_cast %159 : vector<1x168x84xf32> to vector<168x84xf32>
    %cst_133 = arith.constant dense<0.000000e+00> : vector<14x84xf32>
    %161 = tpu.matmul %154, %160, %cst_133 {dimension_numbers = #tpu.dot_dimension_numbers<[1], [0], [0], [1], [0, 0, 1, 1], [], []>} : vector<14x168xf32>, vector<168x84xf32>, vector<14x84xf32> -> vector<14x84xf32>
    %162 = arith.maximumf %158, %161 : vector<14x84xf32>
    %c14 = arith.constant 14 : index
    %c0_134 = arith.constant 0 : index
    %163 = vector.load %arg25[%c14, %c0_134] : memref<28x84xf32, #tpu.memory_space<vmem>>, vector<14x84xf32>
    tpu.vector_store %arg25[%c14, %c0_134], %162 {strides = array<i32>} : memref<28x84xf32, #tpu.memory_space<vmem>>, vector<14x84xf32>,
    %c0_135 = arith.constant 0 : index
    %c0_136 = arith.constant 0 : index
    %164 = vector.load %arg25[%c0_135, %c0_136] : memref<28x84xf32, #tpu.memory_space<vmem>>, vector<10x84xf32>
    %165 = arith.truncf %164 : vector<10x84xf32> to vector<10x84xbf16>
    %c0_137 = arith.constant 0 : index
    %c0_138 = arith.constant 0 : index
    %c0_139 = arith.constant 0 : index
    %166 = vector.load %arg9[%c0_137, %c0_138, %c0_139] : memref<5x84x160xbf16, #tpu.memory_space<vmem>>, vector<1x84x160xbf16>
    %167 = vector.shape_cast %166 : vector<1x84x160xbf16> to vector<84x160xbf16>
    %cst_140 = arith.constant dense<0.000000e+00> : vector<10x160xf32>
    %168 = tpu.matmul %165, %167, %cst_140 {dimension_numbers = #tpu.dot_dimension_numbers<[1], [0], [0], [1], [0, 0, 1, 1], [], []>} : vector<10x84xbf16>, vector<84x160xbf16>, vector<10x160xf32> -> vector<10x160xf32>
    %c1_141 = arith.constant 1 : index
    %c0_142 = arith.constant 0 : index
    %169 = vector.load %arg25[%c1_141, %c0_142] : memref<28x84xf32, #tpu.memory_space<vmem>>, vector<10x84xf32>
    %170 = arith.truncf %169 : vector<10x84xf32> to vector<10x84xbf16>
    %c1_143 = arith.constant 1 : index
    %c0_144 = arith.constant 0 : index
    %c0_145 = arith.constant 0 : index
    %171 = vector.load %arg9[%c1_143, %c0_144, %c0_145] : memref<5x84x160xbf16, #tpu.memory_space<vmem>>, vector<1x84x160xbf16>
    %172 = vector.shape_cast %171 : vector<1x84x160xbf16> to vector<84x160xbf16>
    %cst_146 = arith.constant dense<0.000000e+00> : vector<10x160xf32>
    %173 = tpu.matmul %170, %172, %cst_146 {dimension_numbers = #tpu.dot_dimension_numbers<[1], [0], [0], [1], [0, 0, 1, 1], [], []>} : vector<10x84xbf16>, vector<84x160xbf16>, vector<10x160xf32> -> vector<10x160xf32>
    %174 = arith.addf %168, %173 : vector<10x160xf32>
    %c2_147 = arith.constant 2 : index
    %c0_148 = arith.constant 0 : index
    %175 = vector.load %arg25[%c2_147, %c0_148] : memref<28x84xf32, #tpu.memory_space<vmem>>, vector<10x84xf32>
    %176 = arith.truncf %175 : vector<10x84xf32> to vector<10x84xbf16>
    %c2_149 = arith.constant 2 : index
    %c0_150 = arith.constant 0 : index
    %c0_151 = arith.constant 0 : index
    %177 = vector.load %arg9[%c2_149, %c0_150, %c0_151] : memref<5x84x160xbf16, #tpu.memory_space<vmem>>, vector<1x84x160xbf16>
    %178 = vector.shape_cast %177 : vector<1x84x160xbf16> to vector<84x160xbf16>
    %cst_152 = arith.constant dense<0.000000e+00> : vector<10x160xf32>
    %179 = tpu.matmul %176, %178, %cst_152 {dimension_numbers = #tpu.dot_dimension_numbers<[1], [0], [0], [1], [0, 0, 1, 1], [], []>} : vector<10x84xbf16>, vector<84x160xbf16>, vector<10x160xf32> -> vector<10x160xf32>
    %180 = arith.addf %174, %179 : vector<10x160xf32>
    %c3_153 = arith.constant 3 : index
    %c0_154 = arith.constant 0 : index
    %181 = vector.load %arg25[%c3_153, %c0_154] : memref<28x84xf32, #tpu.memory_space<vmem>>, vector<10x84xf32>
    %182 = arith.truncf %181 : vector<10x84xf32> to vector<10x84xbf16>
    %c3_155 = arith.constant 3 : index
    %c0_156 = arith.constant 0 : index
    %c0_157 = arith.constant 0 : index
    %183 = vector.load %arg9[%c3_155, %c0_156, %c0_157] : memref<5x84x160xbf16, #tpu.memory_space<vmem>>, vector<1x84x160xbf16>
    %184 = vector.shape_cast %183 : vector<1x84x160xbf16> to vector<84x160xbf16>
    %cst_158 = arith.constant dense<0.000000e+00> : vector<10x160xf32>
    %185 = tpu.matmul %182, %184, %cst_158 {dimension_numbers = #tpu.dot_dimension_numbers<[1], [0], [0], [1], [0, 0, 1, 1], [], []>} : vector<10x84xbf16>, vector<84x160xbf16>, vector<10x160xf32> -> vector<10x160xf32>
    %186 = arith.addf %180, %185 : vector<10x160xf32>
    %c4_159 = arith.constant 4 : index
    %c0_160 = arith.constant 0 : index
    %187 = vector.load %arg25[%c4_159, %c0_160] : memref<28x84xf32, #tpu.memory_space<vmem>>, vector<10x84xf32>
    %188 = arith.truncf %187 : vector<10x84xf32> to vector<10x84xbf16>
    %c4_161 = arith.constant 4 : index
    %c0_162 = arith.constant 0 : index
    %c0_163 = arith.constant 0 : index
    %189 = vector.load %arg9[%c4_161, %c0_162, %c0_163] : memref<5x84x160xbf16, #tpu.memory_space<vmem>>, vector<1x84x160xbf16>
    %190 = vector.shape_cast %189 : vector<1x84x160xbf16> to vector<84x160xbf16>
    %cst_164 = arith.constant dense<0.000000e+00> : vector<10x160xf32>
    %191 = tpu.matmul %188, %190, %cst_164 {dimension_numbers = #tpu.dot_dimension_numbers<[1], [0], [0], [1], [0, 0, 1, 1], [], []>} : vector<10x84xbf16>, vector<84x160xbf16>, vector<10x160xf32> -> vector<10x160xf32>
    %192 = arith.addf %186, %191 : vector<10x160xf32>
    %c0_165 = arith.constant 0 : index
    %c0_166 = arith.constant 0 : index
    %193 = vector.load %arg10[%c0_165, %c0_166] : memref<1x160xf32, #tpu.memory_space<vmem>>, vector<1x160xf32>
    %194 = vector.broadcast %193 : vector<1x160xf32> to vector<10x160xf32>
    %195 = arith.addf %192, %194 : vector<10x160xf32>
    %c0_167 = arith.constant 0 : index
    %c0_168 = arith.constant 0 : index
    %196 = vector.load %arg13[%c0_167, %c0_168] : memref<160x16xf32, #tpu.memory_space<vmem>>, vector<160x16xf32>
    %cst_169 = arith.constant dense<0.000000e+00> : vector<10x16xf32>
    %197 = tpu.matmul %195, %196, %cst_169 {dimension_numbers = #tpu.dot_dimension_numbers<[1], [0], [0], [1], [0, 0, 1, 1], [], []>} : vector<10x160xf32>, vector<160x16xf32>, vector<10x16xf32> -> vector<10x16xf32>
    %198 = arith.mulf %195, %195 : vector<10x160xf32>
    %c0_170 = arith.constant 0 : index
    %c0_171 = arith.constant 0 : index
    %199 = vector.load %arg13[%c0_170, %c0_171] : memref<160x16xf32, #tpu.memory_space<vmem>>, vector<160x16xf32>
    %cst_172 = arith.constant dense<0.000000e+00> : vector<10x16xf32>
    %200 = tpu.matmul %198, %199, %cst_172 {dimension_numbers = #tpu.dot_dimension_numbers<[1], [0], [0], [1], [0, 0, 1, 1], [], []>} : vector<10x160xf32>, vector<160x16xf32>, vector<10x16xf32> -> vector<10x16xf32>
    %cst_173 = arith.constant dense<0.000000e+00> : vector<16xf32>
    %201 = vector.multi_reduction <add>, %197, %cst_173 [0] : vector<10x16xf32> to vector<16xf32>
    %202 = vector.shape_cast %201 : vector<16xf32> to vector<1x16xf32>
    %cst_174 = arith.constant dense<0.000000e+00> : vector<16xf32>
    %203 = vector.multi_reduction <add>, %200, %cst_174 [0] : vector<10x16xf32> to vector<16xf32>
    %204 = vector.shape_cast %203 : vector<16xf32> to vector<1x16xf32>
    %c14_175 = arith.constant 14 : index
    %c0_176 = arith.constant 0 : index
    %205 = vector.load %arg25[%c14_175, %c0_176] : memref<28x84xf32, #tpu.memory_space<vmem>>, vector<10x84xf32>
    %206 = arith.truncf %205 : vector<10x84xf32> to vector<10x84xbf16>
    %c0_177 = arith.constant 0 : index
    %c0_178 = arith.constant 0 : index
    %c0_179 = arith.constant 0 : index
    %207 = vector.load %arg9[%c0_177, %c0_178, %c0_179] : memref<5x84x160xbf16, #tpu.memory_space<vmem>>, vector<1x84x160xbf16>
    %208 = vector.shape_cast %207 : vector<1x84x160xbf16> to vector<84x160xbf16>
    %cst_180 = arith.constant dense<0.000000e+00> : vector<10x160xf32>
    %209 = tpu.matmul %206, %208, %cst_180 {dimension_numbers = #tpu.dot_dimension_numbers<[1], [0], [0], [1], [0, 0, 1, 1], [], []>} : vector<10x84xbf16>, vector<84x160xbf16>, vector<10x160xf32> -> vector<10x160xf32>
    %c15 = arith.constant 15 : index
    %c0_181 = arith.constant 0 : index
    %210 = vector.load %arg25[%c15, %c0_181] : memref<28x84xf32, #tpu.memory_space<vmem>>, vector<10x84xf32>
    %211 = arith.truncf %210 : vector<10x84xf32> to vector<10x84xbf16>
    %c1_182 = arith.constant 1 : index
    %c0_183 = arith.constant 0 : index
    %c0_184 = arith.constant 0 : index
    %212 = vector.load %arg9[%c1_182, %c0_183, %c0_184] : memref<5x84x160xbf16, #tpu.memory_space<vmem>>, vector<1x84x160xbf16>
    %213 = vector.shape_cast %212 : vector<1x84x160xbf16> to vector<84x160xbf16>
    %cst_185 = arith.constant dense<0.000000e+00> : vector<10x160xf32>
    %214 = tpu.matmul %211, %213, %cst_185 {dimension_numbers = #tpu.dot_dimension_numbers<[1], [0], [0], [1], [0, 0, 1, 1], [], []>} : vector<10x84xbf16>, vector<84x160xbf16>, vector<10x160xf32> -> vector<10x160xf32>
    %215 = arith.addf %209, %214 : vector<10x160xf32>
    %c16 = arith.constant 16 : index
    %c0_186 = arith.constant 0 : index
    %216 = vector.load %arg25[%c16, %c0_186] : memref<28x84xf32, #tpu.memory_space<vmem>>, vector<10x84xf32>
    %217 = arith.truncf %216 : vector<10x84xf32> to vector<10x84xbf16>
    %c2_187 = arith.constant 2 : index
    %c0_188 = arith.constant 0 : index
    %c0_189 = arith.constant 0 : index
    %218 = vector.load %arg9[%c2_187, %c0_188, %c0_189] : memref<5x84x160xbf16, #tpu.memory_space<vmem>>, vector<1x84x160xbf16>
    %219 = vector.shape_cast %218 : vector<1x84x160xbf16> to vector<84x160xbf16>
    %cst_190 = arith.constant dense<0.000000e+00> : vector<10x160xf32>
    %220 = tpu.matmul %217, %219, %cst_190 {dimension_numbers = #tpu.dot_dimension_numbers<[1], [0], [0], [1], [0, 0, 1, 1], [], []>} : vector<10x84xbf16>, vector<84x160xbf16>, vector<10x160xf32> -> vector<10x160xf32>
    %221 = arith.addf %215, %220 : vector<10x160xf32>
    %c17 = arith.constant 17 : index
    %c0_191 = arith.constant 0 : index
    %222 = vector.load %arg25[%c17, %c0_191] : memref<28x84xf32, #tpu.memory_space<vmem>>, vector<10x84xf32>
    %223 = arith.truncf %222 : vector<10x84xf32> to vector<10x84xbf16>
    %c3_192 = arith.constant 3 : index
    %c0_193 = arith.constant 0 : index
    %c0_194 = arith.constant 0 : index
    %224 = vector.load %arg9[%c3_192, %c0_193, %c0_194] : memref<5x84x160xbf16, #tpu.memory_space<vmem>>, vector<1x84x160xbf16>
    %225 = vector.shape_cast %224 : vector<1x84x160xbf16> to vector<84x160xbf16>
    %cst_195 = arith.constant dense<0.000000e+00> : vector<10x160xf32>
    %226 = tpu.matmul %223, %225, %cst_195 {dimension_numbers = #tpu.dot_dimension_numbers<[1], [0], [0], [1], [0, 0, 1, 1], [], []>} : vector<10x84xbf16>, vector<84x160xbf16>, vector<10x160xf32> -> vector<10x160xf32>
    %227 = arith.addf %221, %226 : vector<10x160xf32>
    %c18 = arith.constant 18 : index
    %c0_196 = arith.constant 0 : index
    %228 = vector.load %arg25[%c18, %c0_196] : memref<28x84xf32, #tpu.memory_space<vmem>>, vector<10x84xf32>
    %229 = arith.truncf %228 : vector<10x84xf32> to vector<10x84xbf16>
    %c4_197 = arith.constant 4 : index
    %c0_198 = arith.constant 0 : index
    %c0_199 = arith.constant 0 : index
    %230 = vector.load %arg9[%c4_197, %c0_198, %c0_199] : memref<5x84x160xbf16, #tpu.memory_space<vmem>>, vector<1x84x160xbf16>
    %231 = vector.shape_cast %230 : vector<1x84x160xbf16> to vector<84x160xbf16>
    %cst_200 = arith.constant dense<0.000000e+00> : vector<10x160xf32>
    %232 = tpu.matmul %229, %231, %cst_200 {dimension_numbers = #tpu.dot_dimension_numbers<[1], [0], [0], [1], [0, 0, 1, 1], [], []>} : vector<10x84xbf16>, vector<84x160xbf16>, vector<10x160xf32> -> vector<10x160xf32>
    %233 = arith.addf %227, %232 : vector<10x160xf32>
    %c0_201 = arith.constant 0 : index
    %c0_202 = arith.constant 0 : index
    %234 = vector.load %arg10[%c0_201, %c0_202] : memref<1x160xf32, #tpu.memory_space<vmem>>, vector<1x160xf32>
    %235 = vector.broadcast %234 : vector<1x160xf32> to vector<10x160xf32>
    %236 = arith.addf %233, %235 : vector<10x160xf32>
    %c0_203 = arith.constant 0 : index
    %c0_204 = arith.constant 0 : index
    %237 = vector.load %arg13[%c0_203, %c0_204] : memref<160x16xf32, #tpu.memory_space<vmem>>, vector<160x16xf32>
    %cst_205 = arith.constant dense<0.000000e+00> : vector<10x16xf32>
    %238 = tpu.matmul %236, %237, %cst_205 {dimension_numbers = #tpu.dot_dimension_numbers<[1], [0], [0], [1], [0, 0, 1, 1], [], []>} : vector<10x160xf32>, vector<160x16xf32>, vector<10x16xf32> -> vector<10x16xf32>
    %239 = arith.mulf %236, %236 : vector<10x160xf32>
    %c0_206 = arith.constant 0 : index
    %c0_207 = arith.constant 0 : index
    %240 = vector.load %arg13[%c0_206, %c0_207] : memref<160x16xf32, #tpu.memory_space<vmem>>, vector<160x16xf32>
    %cst_208 = arith.constant dense<0.000000e+00> : vector<10x16xf32>
    %241 = tpu.matmul %239, %240, %cst_208 {dimension_numbers = #tpu.dot_dimension_numbers<[1], [0], [0], [1], [0, 0, 1, 1], [], []>} : vector<10x160xf32>, vector<160x16xf32>, vector<10x16xf32> -> vector<10x16xf32>
    %cst_209 = arith.constant dense<0.000000e+00> : vector<16xf32>
    %242 = vector.multi_reduction <add>, %238, %cst_209 [0] : vector<10x16xf32> to vector<16xf32>
    %243 = vector.shape_cast %242 : vector<16xf32> to vector<1x16xf32>
    %cst_210 = arith.constant dense<0.000000e+00> : vector<16xf32>
    %244 = vector.multi_reduction <add>, %241, %cst_210 [0] : vector<10x16xf32> to vector<16xf32>
    %245 = vector.shape_cast %244 : vector<16xf32> to vector<1x16xf32>
    %246 = arith.addf %202, %243 : vector<1x16xf32>
    %247 = arith.addf %204, %245 : vector<1x16xf32>
    %cst_211 = arith.constant 5.000000e-03 : f32
    %248 = vector.broadcast %cst_211 : f32 to vector<1x16xf32>
    %249 = arith.mulf %246, %248 : vector<1x16xf32>
    %cst_212 = arith.constant 5.000000e-03 : f32
    %250 = vector.broadcast %cst_212 : f32 to vector<1x16xf32>
    %251 = arith.mulf %247, %250 : vector<1x16xf32>
    %252 = arith.mulf %249, %249 : vector<1x16xf32>
    %253 = arith.subf %251, %252 : vector<1x16xf32>
    %c0_213 = arith.constant 0 : index
    %c0_214 = arith.constant 0 : index
    %254 = vector.load %arg11[%c0_213, %c0_214] : memref<1x16xf32, #tpu.memory_space<vmem>>, vector<1x16xf32>
    %cst_215 = arith.constant 9.99999974E-6 : f32
    %255 = vector.broadcast %cst_215 : f32 to vector<1x16xf32>
    %256 = arith.addf %253, %255 : vector<1x16xf32>
    %257 = math.rsqrt %256 : vector<1x16xf32>
    %258 = arith.mulf %254, %257 : vector<1x16xf32>
    %c0_216 = arith.constant 0 : index
    %c0_217 = arith.constant 0 : index
    %259 = vector.load %arg12[%c0_216, %c0_217] : memref<1x16xf32, #tpu.memory_space<vmem>>, vector<1x16xf32>
    %260 = arith.mulf %249, %258 : vector<1x16xf32>
    %261 = arith.subf %259, %260 : vector<1x16xf32>
    %262 = vector.shape_cast %258 : vector<1x16xf32> to vector<1x16xf32>
    %263 = vector.broadcast %262 : vector<1x16xf32> to vector<8x16xf32>
    %c0_218 = arith.constant 0 : index
    %c0_219 = arith.constant 0 : index
    %264 = vector.load %arg14[%c0_218, %c0_219] : memref<16x160xf32, #tpu.memory_space<vmem>>, vector<16x160xf32>
    %cst_220 = arith.constant dense<0.000000e+00> : vector<8x160xf32>
    %265 = tpu.matmul %263, %264, %cst_220 {dimension_numbers = #tpu.dot_dimension_numbers<[1], [0], [0], [1], [0, 0, 1, 1], [], []>} : vector<8x16xf32>, vector<16x160xf32>, vector<8x160xf32> -> vector<8x160xf32>
    %266 = vector.extract_strided_slice %265 {offsets = [0, 0], sizes = [1, 160], strides = [1, 1]} : vector<8x160xf32> to vector<1x160xf32>
    %267 = vector.shape_cast %261 : vector<1x16xf32> to vector<1x16xf32>
    %268 = vector.broadcast %267 : vector<1x16xf32> to vector<8x16xf32>
    %c0_221 = arith.constant 0 : index
    %c0_222 = arith.constant 0 : index
    %269 = vector.load %arg14[%c0_221, %c0_222] : memref<16x160xf32, #tpu.memory_space<vmem>>, vector<16x160xf32>
    %cst_223 = arith.constant dense<0.000000e+00> : vector<8x160xf32>
    %270 = tpu.matmul %268, %269, %cst_223 {dimension_numbers = #tpu.dot_dimension_numbers<[1], [0], [0], [1], [0, 0, 1, 1], [], []>} : vector<8x16xf32>, vector<16x160xf32>, vector<8x160xf32> -> vector<8x160xf32>
    %271 = vector.extract_strided_slice %270 {offsets = [0, 0], sizes = [1, 160], strides = [1, 1]} : vector<8x160xf32> to vector<1x160xf32>
    %272 = vector.broadcast %266 : vector<1x160xf32> to vector<10x160xf32>
    %273 = arith.mulf %195, %272 : vector<10x160xf32>
    %274 = vector.broadcast %271 : vector<1x160xf32> to vector<10x160xf32>
    %275 = arith.addf %273, %274 : vector<10x160xf32>
    %cst_224 = arith.constant 0.000000e+00 : f32
    %276 = vector.broadcast %cst_224 : f32 to vector<10x160xf32>
    %277 = arith.maximumf %275, %276 : vector<10x160xf32>
    %c0_225 = arith.constant 0 : index
    %c0_226 = arith.constant 0 : index
    %c0_227 = arith.constant 0 : index
    %278 = vector.load %arg15[%c0_225, %c0_226, %c0_227] : memref<2x5x10xf32, #tpu.memory_space<vmem>>, vector<1x5x10xf32>
    %279 = vector.shape_cast %278 : vector<1x5x10xf32> to vector<5x10xf32>
    %cst_228 = arith.constant dense<0.000000e+00> : vector<5x160xf32>
    %280 = tpu.matmul %279, %277, %cst_228 {dimension_numbers = #tpu.dot_dimension_numbers<[1], [0], [0], [1], [0, 0, 1, 1], [], []>} : vector<5x10xf32>, vector<10x160xf32>, vector<5x160xf32> -> vector<5x160xf32>
    %c0_229 = arith.constant 0 : index
    %c0_230 = arith.constant 0 : index
    %c0_231 = arith.constant 0 : index
    %281 = vector.load %arg16[%c0_229, %c0_230, %c0_231] : memref<2x160x80xf32, #tpu.memory_space<vmem>>, vector<1x160x80xf32>
    %282 = vector.shape_cast %281 : vector<1x160x80xf32> to vector<160x80xf32>
    %cst_232 = arith.constant dense<0.000000e+00> : vector<5x80xf32>
    %283 = tpu.matmul %280, %282, %cst_232 {dimension_numbers = #tpu.dot_dimension_numbers<[1], [0], [0], [1], [0, 0, 1, 1], [], []>} : vector<5x160xf32>, vector<160x80xf32>, vector<5x80xf32> -> vector<5x80xf32>
    %c1_233 = arith.constant 1 : index
    %c0_234 = arith.constant 0 : index
    %c0_235 = arith.constant 0 : index
    %284 = vector.load %arg16[%c1_233, %c0_234, %c0_235] : memref<2x160x80xf32, #tpu.memory_space<vmem>>, vector<1x160x80xf32>
    %285 = vector.shape_cast %284 : vector<1x160x80xf32> to vector<160x80xf32>
    %cst_236 = arith.constant dense<0.000000e+00> : vector<5x80xf32>
    %286 = tpu.matmul %280, %285, %cst_236 {dimension_numbers = #tpu.dot_dimension_numbers<[1], [0], [0], [1], [0, 0, 1, 1], [], []>} : vector<5x160xf32>, vector<160x80xf32>, vector<5x80xf32> -> vector<5x80xf32>
    %287 = arith.maximumf %283, %286 : vector<5x80xf32>
    %c1_237 = arith.constant 1 : index
    %c0_238 = arith.constant 0 : index
    %c0_239 = arith.constant 0 : index
    %288 = vector.load %arg15[%c1_237, %c0_238, %c0_239] : memref<2x5x10xf32, #tpu.memory_space<vmem>>, vector<1x5x10xf32>
    %289 = vector.shape_cast %288 : vector<1x5x10xf32> to vector<5x10xf32>
    %cst_240 = arith.constant dense<0.000000e+00> : vector<5x160xf32>
    %290 = tpu.matmul %289, %277, %cst_240 {dimension_numbers = #tpu.dot_dimension_numbers<[1], [0], [0], [1], [0, 0, 1, 1], [], []>} : vector<5x10xf32>, vector<10x160xf32>, vector<5x160xf32> -> vector<5x160xf32>
    %c0_241 = arith.constant 0 : index
    %c0_242 = arith.constant 0 : index
    %c0_243 = arith.constant 0 : index
    %291 = vector.load %arg16[%c0_241, %c0_242, %c0_243] : memref<2x160x80xf32, #tpu.memory_space<vmem>>, vector<1x160x80xf32>
    %292 = vector.shape_cast %291 : vector<1x160x80xf32> to vector<160x80xf32>
    %cst_244 = arith.constant dense<0.000000e+00> : vector<5x80xf32>
    %293 = tpu.matmul %290, %292, %cst_244 {dimension_numbers = #tpu.dot_dimension_numbers<[1], [0], [0], [1], [0, 0, 1, 1], [], []>} : vector<5x160xf32>, vector<160x80xf32>, vector<5x80xf32> -> vector<5x80xf32>
    %294 = arith.maximumf %287, %293 : vector<5x80xf32>
    %c1_245 = arith.constant 1 : index
    %c0_246 = arith.constant 0 : index
    %c0_247 = arith.constant 0 : index
    %295 = vector.load %arg16[%c1_245, %c0_246, %c0_247] : memref<2x160x80xf32, #tpu.memory_space<vmem>>, vector<1x160x80xf32>
    %296 = vector.shape_cast %295 : vector<1x160x80xf32> to vector<160x80xf32>
    %cst_248 = arith.constant dense<0.000000e+00> : vector<5x80xf32>
    %297 = tpu.matmul %290, %296, %cst_248 {dimension_numbers = #tpu.dot_dimension_numbers<[1], [0], [0], [1], [0, 0, 1, 1], [], []>} : vector<5x160xf32>, vector<160x80xf32>, vector<5x80xf32> -> vector<5x80xf32>
    %298 = arith.maximumf %294, %297 : vector<5x80xf32>
    %c0_249 = arith.constant 0 : index
    %c0_250 = arith.constant 0 : index
    %299 = vector.load %arg26[%c0_249, %c0_250] : memref<10x80xf32, #tpu.memory_space<vmem>>, vector<5x80xf32>
    tpu.vector_store %arg26[%c0_249, %c0_250], %298 {strides = array<i32>} : memref<10x80xf32, #tpu.memory_space<vmem>>, vector<5x80xf32>,
    %300 = vector.broadcast %266 : vector<1x160xf32> to vector<10x160xf32>
    %301 = arith.mulf %236, %300 : vector<10x160xf32>
    %302 = vector.broadcast %271 : vector<1x160xf32> to vector<10x160xf32>
    %303 = arith.addf %301, %302 : vector<10x160xf32>
    %cst_251 = arith.constant 0.000000e+00 : f32
    %304 = vector.broadcast %cst_251 : f32 to vector<10x160xf32>
    %305 = arith.maximumf %303, %304 : vector<10x160xf32>
    %c0_252 = arith.constant 0 : index
    %c0_253 = arith.constant 0 : index
    %c0_254 = arith.constant 0 : index
    %306 = vector.load %arg15[%c0_252, %c0_253, %c0_254] : memref<2x5x10xf32, #tpu.memory_space<vmem>>, vector<1x5x10xf32>
    %307 = vector.shape_cast %306 : vector<1x5x10xf32> to vector<5x10xf32>
    %cst_255 = arith.constant dense<0.000000e+00> : vector<5x160xf32>
    %308 = tpu.matmul %307, %305, %cst_255 {dimension_numbers = #tpu.dot_dimension_numbers<[1], [0], [0], [1], [0, 0, 1, 1], [], []>} : vector<5x10xf32>, vector<10x160xf32>, vector<5x160xf32> -> vector<5x160xf32>
    %c0_256 = arith.constant 0 : index
    %c0_257 = arith.constant 0 : index
    %c0_258 = arith.constant 0 : index
    %309 = vector.load %arg16[%c0_256, %c0_257, %c0_258] : memref<2x160x80xf32, #tpu.memory_space<vmem>>, vector<1x160x80xf32>
    %310 = vector.shape_cast %309 : vector<1x160x80xf32> to vector<160x80xf32>
    %cst_259 = arith.constant dense<0.000000e+00> : vector<5x80xf32>
    %311 = tpu.matmul %308, %310, %cst_259 {dimension_numbers = #tpu.dot_dimension_numbers<[1], [0], [0], [1], [0, 0, 1, 1], [], []>} : vector<5x160xf32>, vector<160x80xf32>, vector<5x80xf32> -> vector<5x80xf32>
    %c1_260 = arith.constant 1 : index
    %c0_261 = arith.constant 0 : index
    %c0_262 = arith.constant 0 : index
    %312 = vector.load %arg16[%c1_260, %c0_261, %c0_262] : memref<2x160x80xf32, #tpu.memory_space<vmem>>, vector<1x160x80xf32>
    %313 = vector.shape_cast %312 : vector<1x160x80xf32> to vector<160x80xf32>
    %cst_263 = arith.constant dense<0.000000e+00> : vector<5x80xf32>
    %314 = tpu.matmul %308, %313, %cst_263 {dimension_numbers = #tpu.dot_dimension_numbers<[1], [0], [0], [1], [0, 0, 1, 1], [], []>} : vector<5x160xf32>, vector<160x80xf32>, vector<5x80xf32> -> vector<5x80xf32>
    %315 = arith.maximumf %311, %314 : vector<5x80xf32>
    %c1_264 = arith.constant 1 : index
    %c0_265 = arith.constant 0 : index
    %c0_266 = arith.constant 0 : index
    %316 = vector.load %arg15[%c1_264, %c0_265, %c0_266] : memref<2x5x10xf32, #tpu.memory_space<vmem>>, vector<1x5x10xf32>
    %317 = vector.shape_cast %316 : vector<1x5x10xf32> to vector<5x10xf32>
    %cst_267 = arith.constant dense<0.000000e+00> : vector<5x160xf32>
    %318 = tpu.matmul %317, %305, %cst_267 {dimension_numbers = #tpu.dot_dimension_numbers<[1], [0], [0], [1], [0, 0, 1, 1], [], []>} : vector<5x10xf32>, vector<10x160xf32>, vector<5x160xf32> -> vector<5x160xf32>
    %c0_268 = arith.constant 0 : index
    %c0_269 = arith.constant 0 : index
    %c0_270 = arith.constant 0 : index
    %319 = vector.load %arg16[%c0_268, %c0_269, %c0_270] : memref<2x160x80xf32, #tpu.memory_space<vmem>>, vector<1x160x80xf32>
    %320 = vector.shape_cast %319 : vector<1x160x80xf32> to vector<160x80xf32>
    %cst_271 = arith.constant dense<0.000000e+00> : vector<5x80xf32>
    %321 = tpu.matmul %318, %320, %cst_271 {dimension_numbers = #tpu.dot_dimension_numbers<[1], [0], [0], [1], [0, 0, 1, 1], [], []>} : vector<5x160xf32>, vector<160x80xf32>, vector<5x80xf32> -> vector<5x80xf32>
    %322 = arith.maximumf %315, %321 : vector<5x80xf32>
    %c1_272 = arith.constant 1 : index
    %c0_273 = arith.constant 0 : index
    %c0_274 = arith.constant 0 : index
    %323 = vector.load %arg16[%c1_272, %c0_273, %c0_274] : memref<2x160x80xf32, #tpu.memory_space<vmem>>, vector<1x160x80xf32>
    %324 = vector.shape_cast %323 : vector<1x160x80xf32> to vector<160x80xf32>
    %cst_275 = arith.constant dense<0.000000e+00> : vector<5x80xf32>
    %325 = tpu.matmul %318, %324, %cst_275 {dimension_numbers = #tpu.dot_dimension_numbers<[1], [0], [0], [1], [0, 0, 1, 1], [], []>} : vector<5x160xf32>, vector<160x80xf32>, vector<5x80xf32> -> vector<5x80xf32>
    %326 = arith.maximumf %322, %325 : vector<5x80xf32>
    %c5 = arith.constant 5 : index
    %c0_276 = arith.constant 0 : index
    %327 = vector.load %arg26[%c5, %c0_276] : memref<10x80xf32, #tpu.memory_space<vmem>>, vector<5x80xf32>
    tpu.vector_store %arg26[%c5, %c0_276], %326 {strides = array<i32>} : memref<10x80xf32, #tpu.memory_space<vmem>>, vector<5x80xf32>,
    %c0_277 = arith.constant 0 : index
    %c0_278 = arith.constant 0 : index
    %328 = vector.load %arg26[%c0_277, %c0_278] : memref<10x80xf32, #tpu.memory_space<vmem>>, vector<10x80xf32>
    %c0_279 = arith.constant 0 : index
    %c0_280 = arith.constant 0 : index
    %c0_281 = arith.constant 0 : index
    %329 = vector.load %arg17[%c0_279, %c0_280, %c0_281] : memref<5x2x10xf32, #tpu.memory_space<vmem>>, vector<1x2x10xf32>
    %330 = vector.shape_cast %329 : vector<1x2x10xf32> to vector<2x10xf32>
    %cst_282 = arith.constant dense<0.000000e+00> : vector<2x80xf32>
    %331 = tpu.matmul %330, %328, %cst_282 {dimension_numbers = #tpu.dot_dimension_numbers<[1], [0], [0], [1], [0, 0, 1, 1], [], []>} : vector<2x10xf32>, vector<10x80xf32>, vector<2x80xf32> -> vector<2x80xf32>
    %332 = arith.truncf %331 : vector<2x80xf32> to vector<2x80xbf16>
    %c0_283 = arith.constant 0 : index
    %c0_284 = arith.constant 0 : index
    %c0_285 = arith.constant 0 : index
    %333 = vector.load %arg18[%c0_283, %c0_284, %c0_285] : memref<5x80x120xbf16, #tpu.memory_space<vmem>>, vector<1x80x120xbf16>
    %334 = vector.shape_cast %333 : vector<1x80x120xbf16> to vector<80x120xbf16>
    %cst_286 = arith.constant dense<0.000000e+00> : vector<2x120xf32>
    %335 = tpu.matmul %332, %334, %cst_286 {dimension_numbers = #tpu.dot_dimension_numbers<[1], [0], [0], [1], [0, 0, 1, 1], [], []>} : vector<2x80xbf16>, vector<80x120xbf16>, vector<2x120xf32> -> vector<2x120xf32>
    %c1_287 = arith.constant 1 : index
    %c0_288 = arith.constant 0 : index
    %c0_289 = arith.constant 0 : index
    %336 = vector.load %arg17[%c1_287, %c0_288, %c0_289] : memref<5x2x10xf32, #tpu.memory_space<vmem>>, vector<1x2x10xf32>
    %337 = vector.shape_cast %336 : vector<1x2x10xf32> to vector<2x10xf32>
    %cst_290 = arith.constant dense<0.000000e+00> : vector<2x80xf32>
    %338 = tpu.matmul %337, %328, %cst_290 {dimension_numbers = #tpu.dot_dimension_numbers<[1], [0], [0], [1], [0, 0, 1, 1], [], []>} : vector<2x10xf32>, vector<10x80xf32>, vector<2x80xf32> -> vector<2x80xf32>
    %339 = arith.truncf %338 : vector<2x80xf32> to vector<2x80xbf16>
    %c1_291 = arith.constant 1 : index
    %c0_292 = arith.constant 0 : index
    %c0_293 = arith.constant 0 : index
    %340 = vector.load %arg18[%c1_291, %c0_292, %c0_293] : memref<5x80x120xbf16, #tpu.memory_space<vmem>>, vector<1x80x120xbf16>
    %341 = vector.shape_cast %340 : vector<1x80x120xbf16> to vector<80x120xbf16>
    %cst_294 = arith.constant dense<0.000000e+00> : vector<2x120xf32>
    %342 = tpu.matmul %339, %341, %cst_294 {dimension_numbers = #tpu.dot_dimension_numbers<[1], [0], [0], [1], [0, 0, 1, 1], [], []>} : vector<2x80xbf16>, vector<80x120xbf16>, vector<2x120xf32> -> vector<2x120xf32>
    %343 = arith.addf %335, %342 : vector<2x120xf32>
    %c2_295 = arith.constant 2 : index
    %c0_296 = arith.constant 0 : index
    %c0_297 = arith.constant 0 : index
    %344 = vector.load %arg17[%c2_295, %c0_296, %c0_297] : memref<5x2x10xf32, #tpu.memory_space<vmem>>, vector<1x2x10xf32>
    %345 = vector.shape_cast %344 : vector<1x2x10xf32> to vector<2x10xf32>
    %cst_298 = arith.constant dense<0.000000e+00> : vector<2x80xf32>
    %346 = tpu.matmul %345, %328, %cst_298 {dimension_numbers = #tpu.dot_dimension_numbers<[1], [0], [0], [1], [0, 0, 1, 1], [], []>} : vector<2x10xf32>, vector<10x80xf32>, vector<2x80xf32> -> vector<2x80xf32>
    %347 = arith.truncf %346 : vector<2x80xf32> to vector<2x80xbf16>
    %c2_299 = arith.constant 2 : index
    %c0_300 = arith.constant 0 : index
    %c0_301 = arith.constant 0 : index
    %348 = vector.load %arg18[%c2_299, %c0_300, %c0_301] : memref<5x80x120xbf16, #tpu.memory_space<vmem>>, vector<1x80x120xbf16>
    %349 = vector.shape_cast %348 : vector<1x80x120xbf16> to vector<80x120xbf16>
    %cst_302 = arith.constant dense<0.000000e+00> : vector<2x120xf32>
    %350 = tpu.matmul %347, %349, %cst_302 {dimension_numbers = #tpu.dot_dimension_numbers<[1], [0], [0], [1], [0, 0, 1, 1], [], []>} : vector<2x80xbf16>, vector<80x120xbf16>, vector<2x120xf32> -> vector<2x120xf32>
    %351 = arith.addf %343, %350 : vector<2x120xf32>
    %c3_303 = arith.constant 3 : index
    %c0_304 = arith.constant 0 : index
    %c0_305 = arith.constant 0 : index
    %352 = vector.load %arg17[%c3_303, %c0_304, %c0_305] : memref<5x2x10xf32, #tpu.memory_space<vmem>>, vector<1x2x10xf32>
    %353 = vector.shape_cast %352 : vector<1x2x10xf32> to vector<2x10xf32>
    %cst_306 = arith.constant dense<0.000000e+00> : vector<2x80xf32>
    %354 = tpu.matmul %353, %328, %cst_306 {dimension_numbers = #tpu.dot_dimension_numbers<[1], [0], [0], [1], [0, 0, 1, 1], [], []>} : vector<2x10xf32>, vector<10x80xf32>, vector<2x80xf32> -> vector<2x80xf32>
    %355 = arith.truncf %354 : vector<2x80xf32> to vector<2x80xbf16>
    %c3_307 = arith.constant 3 : index
    %c0_308 = arith.constant 0 : index
    %c0_309 = arith.constant 0 : index
    %356 = vector.load %arg18[%c3_307, %c0_308, %c0_309] : memref<5x80x120xbf16, #tpu.memory_space<vmem>>, vector<1x80x120xbf16>
    %357 = vector.shape_cast %356 : vector<1x80x120xbf16> to vector<80x120xbf16>
    %cst_310 = arith.constant dense<0.000000e+00> : vector<2x120xf32>
    %358 = tpu.matmul %355, %357, %cst_310 {dimension_numbers = #tpu.dot_dimension_numbers<[1], [0], [0], [1], [0, 0, 1, 1], [], []>} : vector<2x80xbf16>, vector<80x120xbf16>, vector<2x120xf32> -> vector<2x120xf32>
    %359 = arith.addf %351, %358 : vector<2x120xf32>
    %c4_311 = arith.constant 4 : index
    %c0_312 = arith.constant 0 : index
    %c0_313 = arith.constant 0 : index
    %360 = vector.load %arg17[%c4_311, %c0_312, %c0_313] : memref<5x2x10xf32, #tpu.memory_space<vmem>>, vector<1x2x10xf32>
    %361 = vector.shape_cast %360 : vector<1x2x10xf32> to vector<2x10xf32>
    %cst_314 = arith.constant dense<0.000000e+00> : vector<2x80xf32>
    %362 = tpu.matmul %361, %328, %cst_314 {dimension_numbers = #tpu.dot_dimension_numbers<[1], [0], [0], [1], [0, 0, 1, 1], [], []>} : vector<2x10xf32>, vector<10x80xf32>, vector<2x80xf32> -> vector<2x80xf32>
    %363 = arith.truncf %362 : vector<2x80xf32> to vector<2x80xbf16>
    %c4_315 = arith.constant 4 : index
    %c0_316 = arith.constant 0 : index
    %c0_317 = arith.constant 0 : index
    %364 = vector.load %arg18[%c4_315, %c0_316, %c0_317] : memref<5x80x120xbf16, #tpu.memory_space<vmem>>, vector<1x80x120xbf16>
    %365 = vector.shape_cast %364 : vector<1x80x120xbf16> to vector<80x120xbf16>
    %cst_318 = arith.constant dense<0.000000e+00> : vector<2x120xf32>
    %366 = tpu.matmul %363, %365, %cst_318 {dimension_numbers = #tpu.dot_dimension_numbers<[1], [0], [0], [1], [0, 0, 1, 1], [], []>} : vector<2x80xbf16>, vector<80x120xbf16>, vector<2x120xf32> -> vector<2x120xf32>
    %367 = arith.addf %359, %366 : vector<2x120xf32>
    %c0_319 = arith.constant 0 : index
    %c0_320 = arith.constant 0 : index
    %368 = vector.load %arg19[%c0_319, %c0_320] : memref<1x120xf32, #tpu.memory_space<vmem>>, vector<1x120xf32>
    %369 = vector.broadcast %368 : vector<1x120xf32> to vector<2x120xf32>
    %370 = arith.addf %367, %369 : vector<2x120xf32>
    %cst_321 = arith.constant 0.000000e+00 : f32
    %371 = vector.broadcast %cst_321 : f32 to vector<2x120xf32>
    %372 = arith.maximumf %370, %371 : vector<2x120xf32>
    %373 = arith.truncf %372 : vector<2x120xf32> to vector<2x120xbf16>
    %c0_322 = arith.constant 0 : index
    %c0_323 = arith.constant 0 : index
    %374 = vector.load %arg20[%c0_322, %c0_323] : memref<120x64xbf16, #tpu.memory_space<vmem>>, vector<120x64xbf16>
    %cst_324 = arith.constant dense<0.000000e+00> : vector<2x64xf32>
    %375 = tpu.matmul %373, %374, %cst_324 {dimension_numbers = #tpu.dot_dimension_numbers<[1], [0], [0], [1], [0, 0, 1, 1], [], []>} : vector<2x120xbf16>, vector<120x64xbf16>, vector<2x64xf32> -> vector<2x64xf32>
    %c0_325 = arith.constant 0 : index
    %c0_326 = arith.constant 0 : index
    %376 = vector.load %arg21[%c0_325, %c0_326] : memref<1x64xf32, #tpu.memory_space<vmem>>, vector<1x64xf32>
    %377 = vector.broadcast %376 : vector<1x64xf32> to vector<2x64xf32>
    %378 = arith.addf %375, %377 : vector<2x64xf32>
    %cst_327 = arith.constant 0.000000e+00 : f32
    %379 = vector.broadcast %cst_327 : f32 to vector<2x64xf32>
    %380 = arith.maximumf %378, %379 : vector<2x64xf32>
    %381 = arith.truncf %380 : vector<2x64xf32> to vector<2x64xbf16>
    %c0_328 = arith.constant 0 : index
    %c0_329 = arith.constant 0 : index
    %382 = vector.load %arg22[%c0_328, %c0_329] : memref<64x10xbf16, #tpu.memory_space<vmem>>, vector<64x10xbf16>
    %cst_330 = arith.constant dense<0.000000e+00> : vector<2x10xf32>
    %383 = tpu.matmul %381, %382, %cst_330 {dimension_numbers = #tpu.dot_dimension_numbers<[1], [0], [0], [1], [0, 0, 1, 1], [], []>} : vector<2x64xbf16>, vector<64x10xbf16>, vector<2x10xf32> -> vector<2x10xf32>
    %c0_331 = arith.constant 0 : index
    %c0_332 = arith.constant 0 : index
    %384 = vector.load %arg23[%c0_331, %c0_332] : memref<1x10xf32, #tpu.memory_space<vmem>>, vector<1x10xf32>
    %385 = vector.broadcast %384 : vector<1x10xf32> to vector<2x10xf32>
    %386 = arith.addf %383, %385 : vector<2x10xf32>
    %c0_333 = arith.constant 0 : index
    %c0_334 = arith.constant 0 : index
    %387 = vector.load %arg24[%c0_333, %c0_334] : memref<2x10xf32, #tpu.memory_space<vmem>>, vector<2x10xf32>
    tpu.vector_store %arg24[%c0_333, %c0_334], %386 {strides = array<i32>} : memref<2x10xf32, #tpu.memory_space<vmem>>, vector<2x10xf32>,
    return
  }
}

</mosaic_0001>

<llo_original>
// kernel: cnn_forward.1
$region0: #{cnn_forward.1}
  #allocation0 [shape = 'u32[]', space=smem, size = 0x4, offset = 0x4, fixed_abs, tag = 'smem constant byte address 0x4 - core index']
  #allocation1 [shape = 'u32[72,128]{1,0:T(1,128)}', space=vmem, size = 0x9000, scoped, tag = 'internal scratch']
  #allocation2 [shape = 'f32[28,84]{1,0:T(8,128)}', space=vmem, size = 0x4000, scoped, tag = 'scratch operand']
  #allocation3 [shape = 'f32[10,80]{1,0:T(8,128)}', space=vmem, size = 0x2000, scoped, tag = 'scratch operand']
  %s0 = inlined_call_operand.vmem [shape: f32[64,96], index: 0, kind: input, shape index: {}]
  %s1 = inlined_call_operand.vmem [shape: bf16[5,96,168], index: 1, kind: input, shape index: {}]
  %s2 = inlined_call_operand.vmem [shape: f32[1,168], index: 2, kind: input, shape index: {}]
  %s3 = inlined_call_operand.vmem [shape: f32[1,6], index: 3, kind: input, shape index: {}]
  %s4 = inlined_call_operand.vmem [shape: f32[1,6], index: 4, kind: input, shape index: {}]
  %s5 = inlined_call_operand.vmem [shape: f32[168,6], index: 5, kind: input, shape index: {}]
  %s6 = inlined_call_operand.vmem [shape: f32[6,168], index: 6, kind: input, shape index: {}]
  %s7 = inlined_call_operand.vmem [shape: f32[2,14,28], index: 7, kind: input, shape index: {}]
  %s8 = inlined_call_operand.vmem [shape: f32[2,168,84], index: 8, kind: input, shape index: {}]
  %s9 = inlined_call_operand.vmem [shape: bf16[5,84,160], index: 9, kind: input, shape index: {}]
  %s10 = inlined_call_operand.vmem [shape: f32[1,160], index: 10, kind: input, shape index: {}]
  %s11 = inlined_call_operand.vmem [shape: f32[1,16], index: 11, kind: input, shape index: {}]
  %s12 = inlined_call_operand.vmem [shape: f32[1,16], index: 12, kind: input, shape index: {}]
  %s13 = inlined_call_operand.vmem [shape: f32[160,16], index: 13, kind: input, shape index: {}]
  %s14 = inlined_call_operand.vmem [shape: f32[16,160], index: 14, kind: input, shape index: {}]
  %s15 = inlined_call_operand.vmem [shape: f32[2,5,10], index: 15, kind: input, shape index: {}]
  %s16 = inlined_call_operand.vmem [shape: f32[2,160,80], index: 16, kind: input, shape index: {}]
  %s17 = inlined_call_operand.vmem [shape: f32[5,2,10], index: 17, kind: input, shape index: {}]
  %s18 = inlined_call_operand.vmem [shape: bf16[5,80,120], index: 18, kind: input, shape index: {}]
  %s19 = inlined_call_operand.vmem [shape: f32[1,120], index: 19, kind: input, shape index: {}]
  %s20 = inlined_call_operand.vmem [shape: bf16[120,64], index: 20, kind: input, shape index: {}]
  %s21 = inlined_call_operand.vmem [shape: f32[1,64], index: 21, kind: input, shape index: {}]
  %s22 = inlined_call_operand.vmem [shape: bf16[64,10], index: 22, kind: input, shape index: {}]
  %s23 = inlined_call_operand.vmem [shape: f32[1,10], index: 23, kind: input, shape index: {}]
  %s24 = inlined_call_operand.hbm [shape: f32[2,10], index: 24, kind: output, shape index: {}]
  %s25 = sld [smem:[#allocation0]]
  $region106: #{cnn_forward.1} parent=0
    _
  %s27 = ssub.s32 1, %s25
  %s28 = scalar_select 0, %s27, %s25
  $region1: #{cnn_forward.1} parent=0
    #allocation4 [shape = 'u8[1024]{0}', space=vmem, size = 0x400, scoped, tag = 'output window, operand 0, single buffered']
    #allocation5 [shape = 's32[1]{0}', space=sflag, size = 0x4, scoped, tag = 'scoped memory for cnn_forward.1']
    %29 = vsyncpa [#allocation5], 0
    // Predicated region
    $region2: #{cnn_forward.1} parent=1 // pred_check
      _
    $region3: #{cnn_forward.1} parent=1 // pred_check_branch
      %31 = sbr.rel (0) target = $region5
    $region4: #{cnn_forward.1} parent=1 // pred_region
      _
    $region5: #{cnn_forward.1} parent=1 // pred_fallthru
      _
    // Predicated region
    $region6: #{cnn_forward.1} parent=1 // pred_check
      _
    $region7: #{cnn_forward.1} parent=1 // pred_check_branch
      %33 = sbr.rel (0) target = $region9
    $region8: #{cnn_forward.1} parent=1 // pred_region
      _
    $region9: #{cnn_forward.1} parent=1 // pred_fallthru
      _
    // Predicated region
    $region10: #{cnn_forward.1} parent=1 // pred_check
      _
    $region11: #{cnn_forward.1} parent=1 // pred_check_branch
      %35 = sbr.rel (0) target = $region13
    $region12: #{cnn_forward.1} parent=1 // pred_region
      _
    $region13: #{cnn_forward.1} parent=1 // pred_fallthru
      _
    // Predicated region
    $region14: #{cnn_forward.1} parent=1 // pred_check
      _
    $region15: #{cnn_forward.1} parent=1 // pred_check_branch
      %37 = sbr.rel (0) target = $region17
    $region16: #{cnn_forward.1} parent=1 // pred_region
      _
    $region17: #{cnn_forward.1} parent=1 // pred_fallthru
      _
    // Predicated region
    $region18: #{cnn_forward.1} parent=1 // pred_check
      _
    $region19: #{cnn_forward.1} parent=1 // pred_check_branch
      %39 = sbr.rel (0) target = $region21
    $region20: #{cnn_forward.1} parent=1 // pred_region
      _
    $region21: #{cnn_forward.1} parent=1 // pred_fallthru
      _
    // Predicated region
    $region22: #{cnn_forward.1} parent=1 // pred_check
      _
    $region23: #{cnn_forward.1} parent=1 // pred_check_branch
      %41 = sbr.rel (0) target = $region25
    $region24: #{cnn_forward.1} parent=1 // pred_region
      _
    $region25: #{cnn_forward.1} parent=1 // pred_fallthru
      _
    // Predicated region
    $region26: #{cnn_forward.1} parent=1 // pred_check
      _
    $region27: #{cnn_forward.1} parent=1 // pred_check_branch
      %43 = sbr.rel (0) target = $region29
    $region28: #{cnn_forward.1} parent=1 // pred_region
      _
    $region29: #{cnn_forward.1} parent=1 // pred_fallthru
      _
    // Predicated region
    $region30: #{cnn_forward.1} parent=1 // pred_check
      _
    $region31: #{cnn_forward.1} parent=1 // pred_check_branch
      %45 = sbr.rel (0) target = $region33
    $region32: #{cnn_forward.1} parent=1 // pred_region
      _
    $region33: #{cnn_forward.1} parent=1 // pred_fallthru
      _
    // Predicated region
    $region34: #{cnn_forward.1} parent=1 // pred_check
      _
    $region35: #{cnn_forward.1} parent=1 // pred_check_branch
      %47 = sbr.rel (0) target = $region37
    $region36: #{cnn_forward.1} parent=1 // pred_region
      _
    $region37: #{cnn_forward.1} parent=1 // pred_fallthru
      _
    // Predicated region
    $region38: #{cnn_forward.1} parent=1 // pred_check
      _
    $region39: #{cnn_forward.1} parent=1 // pred_check_branch
      %49 = sbr.rel (0) target = $region41
    $region40: #{cnn_forward.1} parent=1 // pred_region
      _
    $region41: #{cnn_forward.1} parent=1 // pred_fallthru
      _
    // Predicated region
    $region42: #{cnn_forward.1} parent=1 // pred_check
      _
    $region43: #{cnn_forward.1} parent=1 // pred_check_branch
      %51 = sbr.rel (0) target = $region45
    $region44: #{cnn_forward.1} parent=1 // pred_region
      _
    $region45: #{cnn_forward.1} parent=1 // pred_fallthru
      _
    // Predicated region
    $region46: #{cnn_forward.1} parent=1 // pred_check
      _
    $region47: #{cnn_forward.1} parent=1 // pred_check_branch
      %53 = sbr.rel (0) target = $region49
    $region48: #{cnn_forward.1} parent=1 // pred_region
      _
    $region49: #{cnn_forward.1} parent=1 // pred_fallthru
      _
    // Predicated region
    $region50: #{cnn_forward.1} parent=1 // pred_check
      _
    $region51: #{cnn_forward.1} parent=1 // pred_check_branch
      %55 = sbr.rel (0) target = $region53
    $region52: #{cnn_forward.1} parent=1 // pred_region
      _
    $region53: #{cnn_forward.1} parent=1 // pred_fallthru
      _
    // Predicated region
    $region54: #{cnn_forward.1} parent=1 // pred_check
      _
    $region55: #{cnn_forward.1} parent=1 // pred_check_branch
      %57 = sbr.rel (0) target = $region57
    $region56: #{cnn_forward.1} parent=1 // pred_region
      _
    $region57: #{cnn_forward.1} parent=1 // pred_fallthru
      _
    // Predicated region
    $region58: #{cnn_forward.1} parent=1 // pred_check
      _
    $region59: #{cnn_forward.1} parent=1 // pred_check_branch
      %59 = sbr.rel (0) target = $region61
    $region60: #{cnn_forward.1} parent=1 // pred_region
      _
    $region61: #{cnn_forward.1} parent=1 // pred_fallthru
      _
    // Predicated region
    $region62: #{cnn_forward.1} parent=1 // pred_check
      _
    $region63: #{cnn_forward.1} parent=1 // pred_check_branch
      %61 = sbr.rel (0) target = $region65
    $region64: #{cnn_forward.1} parent=1 // pred_region
      _
    $region65: #{cnn_forward.1} parent=1 // pred_fallthru
      _
    // Predicated region
    $region66: #{cnn_forward.1} parent=1 // pred_check
      _
    $region67: #{cnn_forward.1} parent=1 // pred_check_branch
      %63 = sbr.rel (0) target = $region69
    $region68: #{cnn_forward.1} parent=1 // pred_region
      _
    $region69: #{cnn_forward.1} parent=1 // pred_fallthru
      _
    // Predicated region
    $region70: #{cnn_forward.1} parent=1 // pred_check
      _
    $region71: #{cnn_forward.1} parent=1 // pred_check_branch
      %65 = sbr.rel (0) target = $region73
    $region72: #{cnn_forward.1} parent=1 // pred_region
      _
    $region73: #{cnn_forward.1} parent=1 // pred_fallthru
      _
    // Predicated region
    $region74: #{cnn_forward.1} parent=1 // pred_check
      _
    $region75: #{cnn_forward.1} parent=1 // pred_check_branch
      %67 = sbr.rel (0) target = $region77
    $region76: #{cnn_forward.1} parent=1 // pred_region
      _
    $region77: #{cnn_forward.1} parent=1 // pred_fallthru
      _
    // Predicated region
    $region78: #{cnn_forward.1} parent=1 // pred_check
      _
    $region79: #{cnn_forward.1} parent=1 // pred_check_branch
      %69 = sbr.rel (0) target = $region81
    $region80: #{cnn_forward.1} parent=1 // pred_region
      _
    $region81: #{cnn_forward.1} parent=1 // pred_fallthru
      _
    // Predicated region
    $region82: #{cnn_forward.1} parent=1 // pred_check
      _
    $region83: #{cnn_forward.1} parent=1 // pred_check_branch
      %71 = sbr.rel (0) target = $region85
    $region84: #{cnn_forward.1} parent=1 // pred_region
      _
    $region85: #{cnn_forward.1} parent=1 // pred_fallthru
      _
    // Predicated region
    $region86: #{cnn_forward.1} parent=1 // pred_check
      _
    $region87: #{cnn_forward.1} parent=1 // pred_check_branch
      %73 = sbr.rel (0) target = $region89
    $region88: #{cnn_forward.1} parent=1 // pred_region
      _
    $region89: #{cnn_forward.1} parent=1 // pred_fallthru
      _
    // Predicated region
    $region90: #{cnn_forward.1} parent=1 // pred_check
      _
    $region91: #{cnn_forward.1} parent=1 // pred_check_branch
      %75 = sbr.rel (0) target = $region93
    $region92: #{cnn_forward.1} parent=1 // pred_region
      _
    $region93: #{cnn_forward.1} parent=1 // pred_fallthru
      _
    // Predicated region
    $region94: #{cnn_forward.1} parent=1 // pred_check
      _
    $region95: #{cnn_forward.1} parent=1 // pred_check_branch
      %77 = sbr.rel (0) target = $region97
    $region96: #{cnn_forward.1} parent=1 // pred_region
      _
    $region97: #{cnn_forward.1} parent=1 // pred_fallthru
      _
    %v79 = vld [vmem:[%s0] sm:$0xff]
    %v80 = vld [vmem:[%s0 + $0x8] sm:$0xff]
    %v81 = vld [vmem:[%s0 + $0x10] sm:$0xff]
    %v82 = vld [vmem:[%s0 + $0x18] sm:$0xf]
    %v83 = vpack.c.bf16 %v80, %v79
    %v84 = vpack.c.bf16 %v82, %v81
    %v85 = vld [vmem:[%s1] sm:$0xff]
    %v86 = vld [vmem:[%s1 + $0x8] sm:$0xff]
    %v87 = vld [vmem:[%s1 + $0x10] sm:$0xff]
    %v88 = vld [vmem:[%s1 + $0x18] sm:$0xff]
    %v89 = vld [vmem:[%s1 + $0x20] sm:$0xff]
    %v90 = vld [vmem:[%s1 + $0x28] sm:$0xff]
    %v91 = vld [vmem:[%s1 + $0x30] sm:$0xff]
    %v92 = vld [vmem:[%s1 + $0x38] sm:$0xff]
    %v93 = vld [vmem:[%s1 + $0x40] sm:$0xff]
    %v94 = vld [vmem:[%s1 + $0x48] sm:$0xff]
    %v95 = vld [vmem:[%s1 + $0x50] sm:$0xff]
    %v96 = vld [vmem:[%s1 + $0x58] sm:$0xff]
    %v97 = vld [vmem:[%s0 + $0x1] sm:$0xff]
    %v98 = vld [vmem:[%s0 + $0x9] sm:$0xff]
    %v99 = vld [vmem:[%s0 + $0x11] sm:$0xff]
    %v100 = vld [vmem:[%s0 + $0x19] sm:$0xf]
    %v101 = vpack.c.bf16 %v98, %v97
    %v102 = vpack.c.bf16 %v100, %v99
    %s103 = scalar_lea.vmem %s1, 96
    %v104 = vld [vmem:[%s103] sm:$0xff]
    %v105 = vld [vmem:[%s103 + $0x8] sm:$0xff]
    %v106 = vld [vmem:[%s103 + $0x10] sm:$0xff]
    %v107 = vld [vmem:[%s103 + $0x18] sm:$0xff]
    %v108 = vld [vmem:[%s103 + $0x20] sm:$0xff]
    %v109 = vld [vmem:[%s103 + $0x28] sm:$0xff]
    %v110 = vld [vmem:[%s103 + $0x30] sm:$0xff]
    %v111 = vld [vmem:[%s103 + $0x38] sm:$0xff]
    %v112 = vld [vmem:[%s103 + $0x40] sm:$0xff]
    %v113 = vld [vmem:[%s103 + $0x48] sm:$0xff]
    %v114 = vld [vmem:[%s103 + $0x50] sm:$0xff]
    %v115 = vld [vmem:[%s103 + $0x58] sm:$0xff]
    %v128 = vunpack.c.l.b16 %v104
    %v129 = vunpack.c.h.b16 %v104
    %v130 = vunpack.c.l.b16 %v105
    %v131 = vunpack.c.h.b16 %v105
    %v132 = vunpack.c.l.b16 %v106
    %v133 = vunpack.c.h.b16 %v106
    %v134 = vunpack.c.l.b16 %v107
    %v135 = vunpack.c.h.b16 %v107
    %v136 = vunpack.c.l.b16 %v108
    %v137 = vunpack.c.h.b16 %v108
    %v138 = vunpack.c.l.b16 %v109
    %v139 = vunpack.c.h.b16 %v109
    %v140 = vunpack.c.l.b16 %v110
    %v141 = vunpack.c.h.b16 %v110
    %v142 = vunpack.c.l.b16 %v111
    %v143 = vunpack.c.h.b16 %v111
    %v144 = vunpack.c.l.b16 %v112
    %v145 = vunpack.c.h.b16 %v112
    %v146 = vunpack.c.l.b16 %v113
    %v147 = vunpack.c.h.b16 %v113
    %v148 = vunpack.c.l.b16 %v114
    %v149 = vunpack.c.h.b16 %v114
    %v150 = vunpack.c.l.b16 %v115
    %v151 = vunpack.c.h.b16 %v115
    %v152 = vpack.c.b16 %v130, %v128
    %v153 = vpack.c.b16 %v131, %v129
    %v154 = vpack.c.b16 %v134, %v132
    %v155 = vpack.c.b16 %v135, %v133
    %v156 = vpack.c.b16 %v138, %v136
    %v157 = vpack.c.b16 %v139, %v137
    %v158 = vpack.c.b16 %v142, %v140
    %v159 = vpack.c.b16 %v143, %v141
    %v160 = vpack.c.b16 %v146, %v144
    %v161 = vpack.c.b16 %v147, %v145
    %v162 = vpack.c.b16 %v150, %v148
    %v163 = vpack.c.b16 %v151, %v149
    %vm176 = vcmask 785408
    %v178 = vsel %vm176, %v101, 0
    %v181 = vsel %vm176, %v102, 0
    %183 = vmatpush.bf16.msra.mxu0 0
    %184 = vmatpush.bf16.msra.mxu0 0
    %185 = vmatpush.bf16.msra.mxu0 %v162
    %186 = vmatpush.bf16.msra.mxu0 %v160
    %187 = vmatpush.bf16.msra.mxu0 %v158
    %188 = vmatpush.bf16.msra.mxu0 %v156
    %189 = vmatpush.bf16.msra.mxu0 %v154
    %190 = vmatpush.bf16.msra.mxu0 %v152
    %191 = vmatmul.bf16.gmra.mxu0 %v178
    %v192 = vpop.f32.mrf.mxu0
    %v193 = vadd.f32 0.0, %v192
    %v194 = vpop.f32.mrf.mxu0
    %v195 = vadd.f32 0.0, %v194
    %196 = vmatmul.bf16.gmra.mxu0 %v181
    %v197 = vpop.f32.mrf.mxu0
    %v198 = vadd.f32 0.0, %v197
    %v199 = vpop.f32.mrf.mxu0
    %v200 = vadd.f32 0.0, %v199
    %201 = vdwg.mxu0
    %202 = vmatpush.bf16.msra.mxu0 0
    %203 = vmatpush.bf16.msra.mxu0 0
    %204 = vmatpush.bf16.msra.mxu0 %v163
    %205 = vmatpush.bf16.msra.mxu0 %v161
    %206 = vmatpush.bf16.msra.mxu0 %v159
    %207 = vmatpush.bf16.msra.mxu0 %v157
    %208 = vmatpush.bf16.msra.mxu0 %v155
    %209 = vmatpush.bf16.msra.mxu0 %v153
    %210 = vmatmul.bf16.gmra.mxu0 %v178
    %v211 = vpop.f32.mrf.mxu0
    %v212 = vadd.f32 0.0, %v211
    %v213 = vpop.f32.mrf.mxu0
    %v214 = vadd.f32 0.0, %v213
    %215 = vmatmul.bf16.gmra.mxu0 %v181
    %v216 = vpop.f32.mrf.mxu0
    %v217 = vadd.f32 0.0, %v216
    %v218 = vpop.f32.mrf.mxu0
    %v219 = vadd.f32 0.0, %v218
    %220 = vdwg.mxu0
    %v233 = vunpack.c.l.b16 %v85
    %v234 = vunpack.c.h.b16 %v85
    %v235 = vunpack.c.l.b16 %v86
    %v236 = vunpack.c.h.b16 %v86
    %v237 = vunpack.c.l.b16 %v87
    %v238 = vunpack.c.h.b16 %v87
    %v239 = vunpack.c.l.b16 %v88
    %v240 = vunpack.c.h.b16 %v88
    %v241 = vunpack.c.l.b16 %v89
    %v242 = vunpack.c.h.b16 %v89
    %v243 = vunpack.c.l.b16 %v90
    %v244 = vunpack.c.h.b16 %v90
    %v245 = vunpack.c.l.b16 %v91
    %v246 = vunpack.c.h.b16 %v91
    %v247 = vunpack.c.l.b16 %v92
    %v248 = vunpack.c.h.b16 %v92
    %v249 = vunpack.c.l.b16 %v93
    %v250 = vunpack.c.h.b16 %v93
    %v251 = vunpack.c.l.b16 %v94
    %v252 = vunpack.c.h.b16 %v94
    %v253 = vunpack.c.l.b16 %v95
    %v254 = vunpack.c.h.b16 %v95
    %v255 = vunpack.c.l.b16 %v96
    %v256 = vunpack.c.h.b16 %v96
    %v257 = vpack.c.b16 %v235, %v233
    %v258 = vpack.c.b16 %v236, %v234
    %v259 = vpack.c.b16 %v239, %v237
    %v260 = vpack.c.b16 %v240, %v238
    %v261 = vpack.c.b16 %v243, %v241
    %v262 = vpack.c.b16 %v244, %v242
    %v263 = vpack.c.b16 %v247, %v245
    %v264 = vpack.c.b16 %v248, %v246
    %v265 = vpack.c.b16 %v251, %v249
    %v266 = vpack.c.b16 %v252, %v250
    %v267 = vpack.c.b16 %v255, %v253
    %v268 = vpack.c.b16 %v256, %v254
    %v282 = vsel %vm176, %v83, 0
    %v285 = vsel %vm176, %v84, 0
    %287 = vmatpush.bf16.msra.mxu0 0
    %288 = vmatpush.bf16.msra.mxu0 0
    %289 = vmatpush.bf16.msra.mxu0 %v267
    %290 = vmatpush.bf16.msra.mxu0 %v265
    %291 = vmatpush.bf16.msra.mxu0 %v263
    %292 = vmatpush.bf16.msra.mxu0 %v261
    %293 = vmatpush.bf16.msra.mxu0 %v259
    %294 = vmatpush.bf16.msra.mxu0 %v257
    %295 = vmatmul.bf16.gmra.mxu0 %v282
    %v296 = vpop.f32.mrf.mxu0
    %v297 = vadd.f32 %v193, %v296
    %v298 = vpop.f32.mrf.mxu0
    %v299 = vadd.f32 %v195, %v298
    %300 = vmatmul.bf16.gmra.mxu0 %v285
    %v301 = vpop.f32.mrf.mxu0
    %v302 = vadd.f32 %v198, %v301
    %v303 = vpop.f32.mrf.mxu0
    %v304 = vadd.f32 %v200, %v303
    %305 = vdwg.mxu0
    %306 = vmatpush.bf16.msra.mxu0 0
    %307 = vmatpush.bf16.msra.mxu0 0
    %308 = vmatpush.bf16.msra.mxu0 %v268
    %309 = vmatpush.bf16.msra.mxu0 %v266
    %310 = vmatpush.bf16.msra.mxu0 %v264
    %311 = vmatpush.bf16.msra.mxu0 %v262
    %312 = vmatpush.bf16.msra.mxu0 %v260
    %313 = vmatpush.bf16.msra.mxu0 %v258
    %314 = vmatmul.bf16.gmra.mxu0 %v282
    %v315 = vpop.f32.mrf.mxu0
    %v316 = vadd.f32 %v212, %v315
    %v317 = vpop.f32.mrf.mxu0
    %v318 = vadd.f32 %v214, %v317
    %319 = vmatmul.bf16.gmra.mxu0 %v285
    %v320 = vpop.f32.mrf.mxu0
    %v321 = vadd.f32 %v217, %v320
    %v322 = vpop.f32.mrf.mxu0
    %v323 = vadd.f32 %v219, %v322
    %324 = vdwg.mxu0
    %v325 = vld [vmem:[%s0 + $0x2] sm:$0xff]
    %v326 = vld [vmem:[%s0 + $0xa] sm:$0xff]
    %v327 = vld [vmem:[%s0 + $0x12] sm:$0xff]
    %v328 = vld [vmem:[%s0 + $0x1a] sm:$0xf]
    %v329 = vpack.c.bf16 %v326, %v325
    %v330 = vpack.c.bf16 %v328, %v327
    %s331 = scalar_lea.vmem %s1, 192
    %v332 = vld [vmem:[%s331] sm:$0xff]
    %v333 = vld [vmem:[%s331 + $0x8] sm:$0xff]
    %v334 = vld [vmem:[%s331 + $0x10] sm:$0xff]
    %v335 = vld [vmem:[%s331 + $0x18] sm:$0xff]
    %v336 = vld [vmem:[%s331 + $0x20] sm:$0xff]
    %v337 = vld [vmem:[%s331 + $0x28] sm:$0xff]
    %v338 = vld [vmem:[%s331 + $0x30] sm:$0xff]
    %v339 = vld [vmem:[%s331 + $0x38] sm:$0xff]
    %v340 = vld [vmem:[%s331 + $0x40] sm:$0xff]
    %v341 = vld [vmem:[%s331 + $0x48] sm:$0xff]
    %v342 = vld [vmem:[%s331 + $0x50] sm:$0xff]
    %v343 = vld [vmem:[%s331 + $0x58] sm:$0xff]
    %v356 = vunpack.c.l.b16 %v332
    %v357 = vunpack.c.h.b16 %v332
    %v358 = vunpack.c.l.b16 %v333
    %v359 = vunpack.c.h.b16 %v333
    %v360 = vunpack.c.l.b16 %v334
    %v361 = vunpack.c.h.b16 %v334
    %v362 = vunpack.c.l.b16 %v335
    %v363 = vunpack.c.h.b16 %v335
    %v364 = vunpack.c.l.b16 %v336
    %v365 = vunpack.c.h.b16 %v336
    %v366 = vunpack.c.l.b16 %v337
    %v367 = vunpack.c.h.b16 %v337
    %v368 = vunpack.c.l.b16 %v338
    %v369 = vunpack.c.h.b16 %v338
    %v370 = vunpack.c.l.b16 %v339
    %v371 = vunpack.c.h.b16 %v339
    %v372 = vunpack.c.l.b16 %v340
    %v373 = vunpack.c.h.b16 %v340
    %v374 = vunpack.c.l.b16 %v341
    %v375 = vunpack.c.h.b16 %v341
    %v376 = vunpack.c.l.b16 %v342
    %v377 = vunpack.c.h.b16 %v342
    %v378 = vunpack.c.l.b16 %v343
    %v379 = vunpack.c.h.b16 %v343
    %v380 = vpack.c.b16 %v358, %v356
    %v381 = vpack.c.b16 %v359, %v357
    %v382 = vpack.c.b16 %v362, %v360
    %v383 = vpack.c.b16 %v363, %v361
    %v384 = vpack.c.b16 %v366, %v364
    %v385 = vpack.c.b16 %v367, %v365
    %v386 = vpack.c.b16 %v370, %v368
    %v387 = vpack.c.b16 %v371, %v369
    %v388 = vpack.c.b16 %v374, %v372
    %v389 = vpack.c.b16 %v375, %v373
    %v390 = vpack.c.b16 %v378, %v376
    %v391 = vpack.c.b16 %v379, %v377
    %v405 = vsel %vm176, %v329, 0
    %v408 = vsel %vm176, %v330, 0
    %410 = vmatpush.bf16.msra.mxu0 0
    %411 = vmatpush.bf16.msra.mxu0 0
    %412 = vmatpush.bf16.msra.mxu0 %v390
    %413 = vmatpush.bf16.msra.mxu0 %v388
    %414 = vmatpush.bf16.msra.mxu0 %v386
    %415 = vmatpush.bf16.msra.mxu0 %v384
    %416 = vmatpush.bf16.msra.mxu0 %v382
    %417 = vmatpush.bf16.msra.mxu0 %v380
    %418 = vmatmul.bf16.gmra.mxu0 %v405
    %v419 = vpop.f32.mrf.mxu0
    %v420 = vadd.f32 0.0, %v419
    %v421 = vpop.f32.mrf.mxu0
    %v422 = vadd.f32 0.0, %v421
    %423 = vmatmul.bf16.gmra.mxu0 %v408
    %v424 = vpop.f32.mrf.mxu0
    %v425 = vadd.f32 0.0, %v424
    %v426 = vpop.f32.mrf.mxu0
    %v427 = vadd.f32 0.0, %v426
    %428 = vdwg.mxu0
    %429 = vmatpush.bf16.msra.mxu0 0
    %430 = vmatpush.bf16.msra.mxu0 0
    %431 = vmatpush.bf16.msra.mxu0 %v391
    %432 = vmatpush.bf16.msra.mxu0 %v389
    %433 = vmatpush.bf16.msra.mxu0 %v387
    %434 = vmatpush.bf16.msra.mxu0 %v385
    %435 = vmatpush.bf16.msra.mxu0 %v383
    %436 = vmatpush.bf16.msra.mxu0 %v381
    %437 = vmatmul.bf16.gmra.mxu0 %v405
    %v438 = vpop.f32.mrf.mxu0
    %v439 = vadd.f32 0.0, %v438
    %v440 = vpop.f32.mrf.mxu0
    %v441 = vadd.f32 0.0, %v440
    %442 = vmatmul.bf16.gmra.mxu0 %v408
    %v443 = vpop.f32.mrf.mxu0
    %v444 = vadd.f32 0.0, %v443
    %v445 = vpop.f32.mrf.mxu0
    %v446 = vadd.f32 0.0, %v445
    %447 = vdwg.mxu0
    %v448 = vadd.f32 %v297, %v420
    %v449 = vadd.f32 %v316, %v439
    %v450 = vadd.f32 %v299, %v422
    %v451 = vadd.f32 %v318, %v441
    %v452 = vadd.f32 %v302, %v425
    %v453 = vadd.f32 %v321, %v444
    %v454 = vadd.f32 %v304, %v427
    %v455 = vadd.f32 %v323, %v446
    %v456 = vld [vmem:[%s0 + $0x3] sm:$0xff]
    %v457 = vld [vmem:[%s0 + $0xb] sm:$0xff]
    %v458 = vld [vmem:[%s0 + $0x13] sm:$0xff]
    %v459 = vld [vmem:[%s0 + $0x1b] sm:$0xf]
    %v460 = vpack.c.bf16 %v457, %v456
    %v461 = vpack.c.bf16 %v459, %v458
    %s462 = scalar_lea.vmem %s1, 288
    %v463 = vld [vmem:[%s462] sm:$0xff]
    %v464 = vld [vmem:[%s462 + $0x8] sm:$0xff]
    %v465 = vld [vmem:[%s462 + $0x10] sm:$0xff]
    %v466 = vld [vmem:[%s462 + $0x18] sm:$0xff]
    %v467 = vld [vmem:[%s462 + $0x20] sm:$0xff]
    %v468 = vld [vmem:[%s462 + $0x28] sm:$0xff]
    %v469 = vld [vmem:[%s462 + $0x30] sm:$0xff]
    %v470 = vld [vmem:[%s462 + $0x38] sm:$0xff]
    %v471 = vld [vmem:[%s462 + $0x40] sm:$0xff]
    %v472 = vld [vmem:[%s462 + $0x48] sm:$0xff]
    %v473 = vld [vmem:[%s462 + $0x50] sm:$0xff]
    %v474 = vld [vmem:[%s462 + $0x58] sm:$0xff]
    %v487 = vunpack.c.l.b16 %v463
    %v488 = vunpack.c.h.b16 %v463
    %v489 = vunpack.c.l.b16 %v464
    %v490 = vunpack.c.h.b16 %v464
    %v491 = vunpack.c.l.b16 %v465
    %v492 = vunpack.c.h.b16 %v465
    %v493 = vunpack.c.l.b16 %v466
    %v494 = vunpack.c.h.b16 %v466
    %v495 = vunpack.c.l.b16 %v467
    %v496 = vunpack.c.h.b16 %v467
    %v497 = vunpack.c.l.b16 %v468
    %v498 = vunpack.c.h.b16 %v468
    %v499 = vunpack.c.l.b16 %v469
    %v500 = vunpack.c.h.b16 %v469
    %v501 = vunpack.c.l.b16 %v470
    %v502 = vunpack.c.h.b16 %v470
    %v503 = vunpack.c.l.b16 %v471
    %v504 = vunpack.c.h.b16 %v471
    %v505 = vunpack.c.l.b16 %v472
    %v506 = vunpack.c.h.b16 %v472
    %v507 = vunpack.c.l.b16 %v473
    %v508 = vunpack.c.h.b16 %v473
    %v509 = vunpack.c.l.b16 %v474
    %v510 = vunpack.c.h.b16 %v474
    %v511 = vpack.c.b16 %v489, %v487
    %v512 = vpack.c.b16 %v490, %v488
    %v513 = vpack.c.b16 %v493, %v491
    %v514 = vpack.c.b16 %v494, %v492
    %v515 = vpack.c.b16 %v497, %v495
    %v516 = vpack.c.b16 %v498, %v496
    %v517 = vpack.c.b16 %v501, %v499
    %v518 = vpack.c.b16 %v502, %v500
    %v519 = vpack.c.b16 %v505, %v503
    %v520 = vpack.c.b16 %v506, %v504
    %v521 = vpack.c.b16 %v509, %v507
    %v522 = vpack.c.b16 %v510, %v508
    %v536 = vsel %vm176, %v460, 0
    %v539 = vsel %vm176, %v461, 0
    %541 = vmatpush.bf16.msra.mxu0 0
    %542 = vmatpush.bf16.msra.mxu0 0
    %543 = vmatpush.bf16.msra.mxu0 %v521
    %544 = vmatpush.bf16.msra.mxu0 %v519
    %545 = vmatpush.bf16.msra.mxu0 %v517
    %546 = vmatpush.bf16.msra.mxu0 %v515
    %547 = vmatpush.bf16.msra.mxu0 %v513
    %548 = vmatpush.bf16.msra.mxu0 %v511
    %549 = vmatmul.bf16.gmra.mxu0 %v536
    %v550 = vpop.f32.mrf.mxu0
    %v551 = vadd.f32 0.0, %v550
    %v552 = vpop.f32.mrf.mxu0
    %v553 = vadd.f32 0.0, %v552
    %554 = vmatmul.bf16.gmra.mxu0 %v539
    %v555 = vpop.f32.mrf.mxu0
    %v556 = vadd.f32 0.0, %v555
    %v557 = vpop.f32.mrf.mxu0
    %v558 = vadd.f32 0.0, %v557
    %559 = vdwg.mxu0
    %560 = vmatpush.bf16.msra.mxu0 0
    %561 = vmatpush.bf16.msra.mxu0 0
    %562 = vmatpush.bf16.msra.mxu0 %v522
    %563 = vmatpush.bf16.msra.mxu0 %v520
    %564 = vmatpush.bf16.msra.mxu0 %v518
    %565 = vmatpush.bf16.msra.mxu0 %v516
    %566 = vmatpush.bf16.msra.mxu0 %v514
    %567 = vmatpush.bf16.msra.mxu0 %v512
    %568 = vmatmul.bf16.gmra.mxu0 %v536
    %v569 = vpop.f32.mrf.mxu0
    %v570 = vadd.f32 0.0, %v569
    %v571 = vpop.f32.mrf.mxu0
    %v572 = vadd.f32 0.0, %v571
    %573 = vmatmul.bf16.gmra.mxu0 %v539
    %v574 = vpop.f32.mrf.mxu0
    %v575 = vadd.f32 0.0, %v574
    %v576 = vpop.f32.mrf.mxu0
    %v577 = vadd.f32 0.0, %v576
    %578 = vdwg.mxu0
    %v579 = vadd.f32 %v448, %v551
    %v580 = vadd.f32 %v449, %v570
    %v581 = vadd.f32 %v450, %v553
    %v582 = vadd.f32 %v451, %v572
    %v583 = vadd.f32 %v452, %v556
    %v584 = vadd.f32 %v453, %v575
    %v585 = vadd.f32 %v454, %v558
    %v586 = vadd.f32 %v455, %v577
    %v587 = vld [vmem:[%s0 + $0x4] sm:$0xff]
    %v588 = vld [vmem:[%s0 + $0xc] sm:$0xff]
    %v589 = vld [vmem:[%s0 + $0x14] sm:$0xff]
    %v590 = vld [vmem:[%s0 + $0x1c] sm:$0xf]
    %v591 = vpack.c.bf16 %v588, %v587
    %v592 = vpack.c.bf16 %v590, %v589
    %s593 = scalar_lea.vmem %s1, 384
    %v594 = vld [vmem:[%s593] sm:$0xff]
    %v595 = vld [vmem:[%s593 + $0x8] sm:$0xff]
    %v596 = vld [vmem:[%s593 + $0x10] sm:$0xff]
    %v597 = vld [vmem:[%s593 + $0x18] sm:$0xff]
    %v598 = vld [vmem:[%s593 + $0x20] sm:$0xff]
    %v599 = vld [vmem:[%s593 + $0x28] sm:$0xff]
    %v600 = vld [vmem:[%s593 + $0x30] sm:$0xff]
    %v601 = vld [vmem:[%s593 + $0x38] sm:$0xff]
    %v602 = vld [vmem:[%s593 + $0x40] sm:$0xff]
    %v603 = vld [vmem:[%s593 + $0x48] sm:$0xff]
    %v604 = vld [vmem:[%s593 + $0x50] sm:$0xff]
    %v605 = vld [vmem:[%s593 + $0x58] sm:$0xff]
    %v618 = vunpack.c.l.b16 %v594
    %v619 = vunpack.c.h.b16 %v594
    %v620 = vunpack.c.l.b16 %v595
    %v621 = vunpack.c.h.b16 %v595
    %v622 = vunpack.c.l.b16 %v596
    %v623 = vunpack.c.h.b16 %v596
    %v624 = vunpack.c.l.b16 %v597
    %v625 = vunpack.c.h.b16 %v597
    %v626 = vunpack.c.l.b16 %v598
    %v627 = vunpack.c.h.b16 %v598
    %v628 = vunpack.c.l.b16 %v599
    %v629 = vunpack.c.h.b16 %v599
    %v630 = vunpack.c.l.b16 %v600
    %v631 = vunpack.c.h.b16 %v600
    %v632 = vunpack.c.l.b16 %v601
    %v633 = vunpack.c.h.b16 %v601
    %v634 = vunpack.c.l.b16 %v602
    %v635 = vunpack.c.h.b16 %v602
    %v636 = vunpack.c.l.b16 %v603
    %v637 = vunpack.c.h.b16 %v603
    %v638 = vunpack.c.l.b16 %v604
    %v639 = vunpack.c.h.b16 %v604
    %v640 = vunpack.c.l.b16 %v605
    %v641 = vunpack.c.h.b16 %v605
    %v642 = vpack.c.b16 %v620, %v618
    %v643 = vpack.c.b16 %v621, %v619
    %v644 = vpack.c.b16 %v624, %v622
    %v645 = vpack.c.b16 %v625, %v623
    %v646 = vpack.c.b16 %v628, %v626
    %v647 = vpack.c.b16 %v629, %v627
    %v648 = vpack.c.b16 %v632, %v630
    %v649 = vpack.c.b16 %v633, %v631
    %v650 = vpack.c.b16 %v636, %v634
    %v651 = vpack.c.b16 %v637, %v635
    %v652 = vpack.c.b16 %v640, %v638
    %v653 = vpack.c.b16 %v641, %v639
    %v667 = vsel %vm176, %v591, 0
    %v670 = vsel %vm176, %v592, 0
    %672 = vmatpush.bf16.msra.mxu0 0
    %673 = vmatpush.bf16.msra.mxu0 0
    %674 = vmatpush.bf16.msra.mxu0 %v652
    %675 = vmatpush.bf16.msra.mxu0 %v650
    %676 = vmatpush.bf16.msra.mxu0 %v648
    %677 = vmatpush.bf16.msra.mxu0 %v646
    %678 = vmatpush.bf16.msra.mxu0 %v644
    %679 = vmatpush.bf16.msra.mxu0 %v642
    %680 = vmatmul.bf16.gmra.mxu0 %v667
    %v681 = vpop.f32.mrf.mxu0
    %v682 = vadd.f32 0.0, %v681
    %v683 = vpop.f32.mrf.mxu0
    %v684 = vadd.f32 0.0, %v683
    %685 = vmatmul.bf16.gmra.mxu0 %v670
    %v686 = vpop.f32.mrf.mxu0
    %v687 = vadd.f32 0.0, %v686
    %v688 = vpop.f32.mrf.mxu0
    %v689 = vadd.f32 0.0, %v688
    %690 = vdwg.mxu0
    %691 = vmatpush.bf16.msra.mxu0 0
    %692 = vmatpush.bf16.msra.mxu0 0
    %693 = vmatpush.bf16.msra.mxu0 %v653
    %694 = vmatpush.bf16.msra.mxu0 %v651
    %695 = vmatpush.bf16.msra.mxu0 %v649
    %696 = vmatpush.bf16.msra.mxu0 %v647
    %697 = vmatpush.bf16.msra.mxu0 %v645
    %698 = vmatpush.bf16.msra.mxu0 %v643
    %699 = vmatmul.bf16.gmra.mxu0 %v667
    %v700 = vpop.f32.mrf.mxu0
    %v701 = vadd.f32 0.0, %v700
    %v702 = vpop.f32.mrf.mxu0
    %v703 = vadd.f32 0.0, %v702
    %704 = vmatmul.bf16.gmra.mxu0 %v670
    %v705 = vpop.f32.mrf.mxu0
    %v706 = vadd.f32 0.0, %v705
    %v707 = vpop.f32.mrf.mxu0
    %v708 = vadd.f32 0.0, %v707
    %709 = vdwg.mxu0
    %v710 = vadd.f32 %v579, %v682
    %v711 = vadd.f32 %v580, %v701
    %v712 = vadd.f32 %v581, %v684
    %v713 = vadd.f32 %v582, %v703
    %v714 = vadd.f32 %v583, %v687
    %v715 = vadd.f32 %v584, %v706
    %v716 = vadd.f32 %v585, %v689
    %v717 = vadd.f32 %v586, %v708
    %v718 = vld [vmem:[%s2] sm:$0x3]
    %v720 = vperm.slane %v718, 0
    %v721 = vperm.slane %v718, 1
    %v724 = vadd.f32 %v710, %v720
    %v725 = vadd.f32 %v711, %v721
    %v726 = vadd.f32 %v712, %v720
    %v727 = vadd.f32 %v713, %v721
    %v728 = vadd.f32 %v714, %v720
    %v729 = vadd.f32 %v715, %v721
    %v730 = vadd.f32 %v716, %v720
    %v731 = vadd.f32 %v717, %v721
    %v732 = vld [vmem:[%s5] sm:$0xff]
    %v733 = vld [vmem:[%s5 + $0x8] sm:$0xff]
    %v734 = vld [vmem:[%s5 + $0x10] sm:$0xff]
    %v735 = vld [vmem:[%s5 + $0x18] sm:$0xff]
    %v736 = vld [vmem:[%s5 + $0x20] sm:$0xff]
    %v737 = vld [vmem:[%s5 + $0x28] sm:$0xff]
    %v738 = vld [vmem:[%s5 + $0x30] sm:$0xff]
    %v739 = vld [vmem:[%s5 + $0x38] sm:$0xff]
    %v740 = vld [vmem:[%s5 + $0x40] sm:$0xff]
    %v741 = vld [vmem:[%s5 + $0x48] sm:$0xff]
    %v742 = vld [vmem:[%s5 + $0x50] sm:$0xff]
    %v743 = vld [vmem:[%s5 + $0x58] sm:$0xff]
    %v744 = vld [vmem:[%s5 + $0x60] sm:$0xff]
    %v745 = vld [vmem:[%s5 + $0x68] sm:$0xff]
    %v746 = vld [vmem:[%s5 + $0x70] sm:$0xff]
    %v747 = vld [vmem:[%s5 + $0x78] sm:$0xff]
    %v748 = vld [vmem:[%s5 + $0x80] sm:$0xff]
    %v749 = vld [vmem:[%s5 + $0x88] sm:$0xff]
    %v750 = vld [vmem:[%s5 + $0x90] sm:$0xff]
    %v751 = vld [vmem:[%s5 + $0x98] sm:$0xff]
    %v752 = vld [vmem:[%s5 + $0xa0] sm:$0xff]
    %vm753 = vcmask 326656
    %v755 = vsel %vm753, %v725, 0
    %v758 = vsel %vm753, %v727, 0
    %v761 = vsel %vm753, %v729, 0
    %v764 = vsel %vm753, %v731, 0
    %766 = vmatpush.msra.mxu0 %v747
    %767 = vmatpush.msra.mxu0 %v746
    %768 = vmatpush.msra.mxu0 %v745
    %769 = vmatpush.msra.mxu0 %v744
    %770 = vmatpush.msra.mxu0 %v743
    %771 = vmatpush.msra.mxu0 %v742
    %772 = vmatpush.msra.mxu0 %v741
    %773 = vmatpush.msra.mxu0 %v740
    %774 = vmatpush.msra.mxu0 %v739
    %775 = vmatpush.msra.mxu0 %v738
    %776 = vmatpush.msra.mxu0 %v737
    %777 = vmatpush.msra.mxu0 %v736
    %778 = vmatpush.msra.mxu0 %v735
    %779 = vmatpush.msra.mxu0 %v734
    %780 = vmatpush.msra.mxu0 %v733
    %781 = vmatpush.msra.mxu0 %v732
    %782 = vmatmul.f32.gmra.mxu0 %v724
    %v783 = vpop.f32.mrf.mxu0
    %v784 = vadd.f32 0.0, %v783
    %785 = vmatmul.f32.gmra.mxu0 %v726
    %v786 = vpop.f32.mrf.mxu0
    %v787 = vadd.f32 0.0, %v786
    %788 = vmatmul.f32.gmra.mxu0 %v728
    %v789 = vpop.f32.mrf.mxu0
    %v790 = vadd.f32 0.0, %v789
    %791 = vmatmul.f32.gmra.mxu0 %v730
    %v792 = vpop.f32.mrf.mxu0
    %v793 = vadd.f32 0.0, %v792
    %794 = vdwg.mxu0
    %795 = vmatpush.msra.mxu0 0.0
    %796 = vmatpush.msra.mxu0 0.0
    %797 = vmatpush.msra.mxu0 0.0
    %798 = vmatpush.msra.mxu0 0.0
    %799 = vmatpush.msra.mxu0 0.0
    %800 = vmatpush.msra.mxu0 0.0
    %801 = vmatpush.msra.mxu0 0.0
    %802 = vmatpush.msra.mxu0 0.0
    %803 = vmatpush.msra.mxu0 0.0
    %804 = vmatpush.msra.mxu0 0.0
    %805 = vmatpush.msra.mxu0 0.0
    %806 = vmatpush.msra.mxu0 %v752
    %807 = vmatpush.msra.mxu0 %v751
    %808 = vmatpush.msra.mxu0 %v750
    %809 = vmatpush.msra.mxu0 %v749
    %810 = vmatpush.msra.mxu0 %v748
    %811 = vmatmul.f32.gmra.mxu0 %v755
    %v812 = vpop.f32.mrf.mxu0
    %v813 = vadd.f32 %v784, %v812
    %814 = vmatmul.f32.gmra.mxu0 %v758
    %v815 = vpop.f32.mrf.mxu0
    %v816 = vadd.f32 %v787, %v815
    %817 = vmatmul.f32.gmra.mxu0 %v761
    %v818 = vpop.f32.mrf.mxu0
    %v819 = vadd.f32 %v790, %v818
    %820 = vmatmul.f32.gmra.mxu0 %v764
    %v821 = vpop.f32.mrf.mxu0
    %v822 = vadd.f32 %v793, %v821
    %823 = vdwg.mxu0
    %v824 = vmul.f32 %v724, %v724
    %v825 = vmul.f32 %v725, %v725
    %v826 = vmul.f32 %v726, %v726
    %v827 = vmul.f32 %v727, %v727
    %v828 = vmul.f32 %v728, %v728
    %v829 = vmul.f32 %v729, %v729
    %v830 = vmul.f32 %v730, %v730
    %v831 = vmul.f32 %v731, %v731
    %v833 = vsel %vm753, %v825, 0
    %v836 = vsel %vm753, %v827, 0
    %v839 = vsel %vm753, %v829, 0
    %v842 = vsel %vm753, %v831, 0
    %844 = vmatpush.msra.mxu0 %v747
    %845 = vmatpush.msra.mxu0 %v746
    %846 = vmatpush.msra.mxu0 %v745
    %847 = vmatpush.msra.mxu0 %v744
    %848 = vmatpush.msra.mxu0 %v743
    %849 = vmatpush.msra.mxu0 %v742
    %850 = vmatpush.msra.mxu0 %v741
    %851 = vmatpush.msra.mxu0 %v740
    %852 = vmatpush.msra.mxu0 %v739
    %853 = vmatpush.msra.mxu0 %v738
    %854 = vmatpush.msra.mxu0 %v737
    %855 = vmatpush.msra.mxu0 %v736
    %856 = vmatpush.msra.mxu0 %v735
    %857 = vmatpush.msra.mxu0 %v734
    %858 = vmatpush.msra.mxu0 %v733
    %859 = vmatpush.msra.mxu0 %v732
    %860 = vmatmul.f32.gmra.mxu0 %v824
    %v861 = vpop.f32.mrf.mxu0
    %v862 = vadd.f32 0.0, %v861
    %863 = vmatmul.f32.gmra.mxu0 %v826
    %v864 = vpop.f32.mrf.mxu0
    %v865 = vadd.f32 0.0, %v864
    %866 = vmatmul.f32.gmra.mxu0 %v828
    %v867 = vpop.f32.mrf.mxu0
    %v868 = vadd.f32 0.0, %v867
    %869 = vmatmul.f32.gmra.mxu0 %v830
    %v870 = vpop.f32.mrf.mxu0
    %v871 = vadd.f32 0.0, %v870
    %872 = vdwg.mxu0
    %873 = vmatpush.msra.mxu0 0.0
    %874 = vmatpush.msra.mxu0 0.0
    %875 = vmatpush.msra.mxu0 0.0
    %876 = vmatpush.msra.mxu0 0.0
    %877 = vmatpush.msra.mxu0 0.0
    %878 = vmatpush.msra.mxu0 0.0
    %879 = vmatpush.msra.mxu0 0.0
    %880 = vmatpush.msra.mxu0 0.0
    %881 = vmatpush.msra.mxu0 0.0
    %882 = vmatpush.msra.mxu0 0.0
    %883 = vmatpush.msra.mxu0 0.0
    %884 = vmatpush.msra.mxu0 %v752
    %885 = vmatpush.msra.mxu0 %v751
    %886 = vmatpush.msra.mxu0 %v750
    %887 = vmatpush.msra.mxu0 %v749
    %888 = vmatpush.msra.mxu0 %v748
    %889 = vmatmul.f32.gmra.mxu0 %v833
    %v890 = vpop.f32.mrf.mxu0
    %v891 = vadd.f32 %v862, %v890
    %892 = vmatmul.f32.gmra.mxu0 %v836
    %v893 = vpop.f32.mrf.mxu0
    %v894 = vadd.f32 %v865, %v893
    %895 = vmatmul.f32.gmra.mxu0 %v839
    %v896 = vpop.f32.mrf.mxu0
    %v897 = vadd.f32 %v868, %v896
    %898 = vmatmul.f32.gmra.mxu0 %v842
    %v899 = vpop.f32.mrf.mxu0
    %v900 = vadd.f32 %v871, %v899
    %901 = vdwg.mxu0
    %vm902 = vcmask 48128
    %v903 = vsel %vm902, %v813, 0.0
    %v904 = vsel %vm902, %v816, 0.0
    %v905 = vadd.f32 %v903, %v904
    %v906 = vsel %vm902, %v819, 0.0
    %v907 = vadd.f32 %v905, %v906
    %vm908 = vcmask 44032
    %v909 = vsel %vm908, %v822, 0.0
    %v910 = vadd.f32 %v907, %v909
    %v911 = vrot.slane %v910, 4
    %v912 = vadd.f32 %v910, %v911
    %v913 = vrot.slane %v912, 2
    %v914 = vadd.f32 %v912, %v913
    %v915 = vrot.slane %v914, 1
    %v916 = vadd.f32 %v914, %v915
    %v917 = vsel %vm902, %v891, 0.0
    %v918 = vsel %vm902, %v894, 0.0
    %v919 = vadd.f32 %v917, %v918
    %v920 = vsel %vm902, %v897, 0.0
    %v921 = vadd.f32 %v919, %v920
    %v922 = vsel %vm908, %v900, 0.0
    %v923 = vadd.f32 %v921, %v922
    %v924 = vrot.slane %v923, 4
    %v925 = vadd.f32 %v923, %v924
    %v926 = vrot.slane %v925, 2
    %v927 = vadd.f32 %v925, %v926
    %v928 = vrot.slane %v927, 1
    %v929 = vadd.f32 %v927, %v928
    %v930 = vld [vmem:[%s0 + $0x20] sm:$0xff]
    %v931 = vld [vmem:[%s0 + $0x28] sm:$0xff]
    %v932 = vld [vmem:[%s0 + $0x30] sm:$0xff]
    %v933 = vld [vmem:[%s0 + $0x38] sm:$0xf]
    %v934 = vpack.c.bf16 %v931, %v930
    %v935 = vpack.c.bf16 %v933, %v932
    %v936 = vld [vmem:[%s0 + $0x21] sm:$0xff]
    %v937 = vld [vmem:[%s0 + $0x29] sm:$0xff]
    %v938 = vld [vmem:[%s0 + $0x31] sm:$0xff]
    %v939 = vld [vmem:[%s0 + $0x39] sm:$0xf]
    %v940 = vpack.c.bf16 %v937, %v936
    %v941 = vpack.c.bf16 %v939, %v938
    %v943 = vsel %vm176, %v940, 0
    %v946 = vsel %vm176, %v941, 0
    %948 = vmatpush.bf16.msra.mxu0 0
    %949 = vmatpush.bf16.msra.mxu0 0
    %950 = vmatpush.bf16.msra.mxu0 %v162
    %951 = vmatpush.bf16.msra.mxu0 %v160
    %952 = vmatpush.bf16.msra.mxu0 %v158
    %953 = vmatpush.bf16.msra.mxu0 %v156
    %954 = vmatpush.bf16.msra.mxu0 %v154
    %955 = vmatpush.bf16.msra.mxu0 %v152
    %956 = vmatmul.bf16.gmra.mxu0 %v943
    %v957 = vpop.f32.mrf.mxu0
    %v958 = vadd.f32 0.0, %v957
    %v959 = vpop.f32.mrf.mxu0
    %v960 = vadd.f32 0.0, %v959
    %961 = vmatmul.bf16.gmra.mxu0 %v946
    %v962 = vpop.f32.mrf.mxu0
    %v963 = vadd.f32 0.0, %v962
    %v964 = vpop.f32.mrf.mxu0
    %v965 = vadd.f32 0.0, %v964
    %966 = vdwg.mxu0
    %967 = vmatpush.bf16.msra.mxu0 0
    %968 = vmatpush.bf16.msra.mxu0 0
    %969 = vmatpush.bf16.msra.mxu0 %v163
    %970 = vmatpush.bf16.msra.mxu0 %v161
    %971 = vmatpush.bf16.msra.mxu0 %v159
    %972 = vmatpush.bf16.msra.mxu0 %v157
    %973 = vmatpush.bf16.msra.mxu0 %v155
    %974 = vmatpush.bf16.msra.mxu0 %v153
    %975 = vmatmul.bf16.gmra.mxu0 %v943
    %v976 = vpop.f32.mrf.mxu0
    %v977 = vadd.f32 0.0, %v976
    %v978 = vpop.f32.mrf.mxu0
    %v979 = vadd.f32 0.0, %v978
    %980 = vmatmul.bf16.gmra.mxu0 %v946
    %v981 = vpop.f32.mrf.mxu0
    %v982 = vadd.f32 0.0, %v981
    %v983 = vpop.f32.mrf.mxu0
    %v984 = vadd.f32 0.0, %v983
    %985 = vdwg.mxu0
    %v987 = vsel %vm176, %v934, 0
    %v990 = vsel %vm176, %v935, 0
    %992 = vmatpush.bf16.msra.mxu0 0
    %993 = vmatpush.bf16.msra.mxu0 0
    %994 = vmatpush.bf16.msra.mxu0 %v267
    %995 = vmatpush.bf16.msra.mxu0 %v265
    %996 = vmatpush.bf16.msra.mxu0 %v263
    %997 = vmatpush.bf16.msra.mxu0 %v261
    %998 = vmatpush.bf16.msra.mxu0 %v259
    %999 = vmatpush.bf16.msra.mxu0 %v257
    %1000 = vmatmul.bf16.gmra.mxu0 %v987
    %v1001 = vpop.f32.mrf.mxu0
    %v1002 = vadd.f32 %v958, %v1001
    %v1003 = vpop.f32.mrf.mxu0
    %v1004 = vadd.f32 %v960, %v1003
    %1005 = vmatmul.bf16.gmra.mxu0 %v990
    %v1006 = vpop.f32.mrf.mxu0
    %v1007 = vadd.f32 %v963, %v1006
    %v1008 = vpop.f32.mrf.mxu0
    %v1009 = vadd.f32 %v965, %v1008
    %1010 = vdwg.mxu0
    %1011 = vmatpush.bf16.msra.mxu0 0
    %1012 = vmatpush.bf16.msra.mxu0 0
    %1013 = vmatpush.bf16.msra.mxu0 %v268
    %1014 = vmatpush.bf16.msra.mxu0 %v266
    %1015 = vmatpush.bf16.msra.mxu0 %v264
    %1016 = vmatpush.bf16.msra.mxu0 %v262
    %1017 = vmatpush.bf16.msra.mxu0 %v260
    %1018 = vmatpush.bf16.msra.mxu0 %v258
    %1019 = vmatmul.bf16.gmra.mxu0 %v987
    %v1020 = vpop.f32.mrf.mxu0
    %v1021 = vadd.f32 %v977, %v1020
    %v1022 = vpop.f32.mrf.mxu0
    %v1023 = vadd.f32 %v979, %v1022
    %1024 = vmatmul.bf16.gmra.mxu0 %v990
    %v1025 = vpop.f32.mrf.mxu0
    %v1026 = vadd.f32 %v982, %v1025
    %v1027 = vpop.f32.mrf.mxu0
    %v1028 = vadd.f32 %v984, %v1027
    %1029 = vdwg.mxu0
    %v1030 = vld [vmem:[%s0 + $0x22] sm:$0xff]
    %v1031 = vld [vmem:[%s0 + $0x2a] sm:$0xff]
    %v1032 = vld [vmem:[%s0 + $0x32] sm:$0xff]
    %v1033 = vld [vmem:[%s0 + $0x3a] sm:$0xf]
    %v1034 = vpack.c.bf16 %v1031, %v1030
    %v1035 = vpack.c.bf16 %v1033, %v1032
    %v1037 = vsel %vm176, %v1034, 0
    %v1040 = vsel %vm176, %v1035, 0
    %1042 = vmatpush.bf16.msra.mxu0 0
    %1043 = vmatpush.bf16.msra.mxu0 0
    %1044 = vmatpush.bf16.msra.mxu0 %v390
    %1045 = vmatpush.bf16.msra.mxu0 %v388
    %1046 = vmatpush.bf16.msra.mxu0 %v386
    %1047 = vmatpush.bf16.msra.mxu0 %v384
    %1048 = vmatpush.bf16.msra.mxu0 %v382
    %1049 = vmatpush.bf16.msra.mxu0 %v380
    %1050 = vmatmul.bf16.gmra.mxu0 %v1037
    %v1051 = vpop.f32.mrf.mxu0
    %v1052 = vadd.f32 0.0, %v1051
    %v1053 = vpop.f32.mrf.mxu0
    %v1054 = vadd.f32 0.0, %v1053
    %1055 = vmatmul.bf16.gmra.mxu0 %v1040
    %v1056 = vpop.f32.mrf.mxu0
    %v1057 = vadd.f32 0.0, %v1056
    %v1058 = vpop.f32.mrf.mxu0
    %v1059 = vadd.f32 0.0, %v1058
    %1060 = vdwg.mxu0
    %1061 = vmatpush.bf16.msra.mxu0 0
    %1062 = vmatpush.bf16.msra.mxu0 0
    %1063 = vmatpush.bf16.msra.mxu0 %v391
    %1064 = vmatpush.bf16.msra.mxu0 %v389
    %1065 = vmatpush.bf16.msra.mxu0 %v387
    %1066 = vmatpush.bf16.msra.mxu0 %v385
    %1067 = vmatpush.bf16.msra.mxu0 %v383
    %1068 = vmatpush.bf16.msra.mxu0 %v381
    %1069 = vmatmul.bf16.gmra.mxu0 %v1037
    %v1070 = vpop.f32.mrf.mxu0
    %v1071 = vadd.f32 0.0, %v1070
    %v1072 = vpop.f32.mrf.mxu0
    %v1073 = vadd.f32 0.0, %v1072
    %1074 = vmatmul.bf16.gmra.mxu0 %v1040
    %v1075 = vpop.f32.mrf.mxu0
    %v1076 = vadd.f32 0.0, %v1075
    %v1077 = vpop.f32.mrf.mxu0
    %v1078 = vadd.f32 0.0, %v1077
    %1079 = vdwg.mxu0
    %v1080 = vadd.f32 %v1002, %v1052
    %v1081 = vadd.f32 %v1021, %v1071
    %v1082 = vadd.f32 %v1004, %v1054
    %v1083 = vadd.f32 %v1023, %v1073
    %v1084 = vadd.f32 %v1007, %v1057
    %v1085 = vadd.f32 %v1026, %v1076
    %v1086 = vadd.f32 %v1009, %v1059
    %v1087 = vadd.f32 %v1028, %v1078
    %v1088 = vld [vmem:[%s0 + $0x23] sm:$0xff]
    %v1089 = vld [vmem:[%s0 + $0x2b] sm:$0xff]
    %v1090 = vld [vmem:[%s0 + $0x33] sm:$0xff]
    %v1091 = vld [vmem:[%s0 + $0x3b] sm:$0xf]
    %v1092 = vpack.c.bf16 %v1089, %v1088
    %v1093 = vpack.c.bf16 %v1091, %v1090
    %v1095 = vsel %vm176, %v1092, 0
    %v1098 = vsel %vm176, %v1093, 0
    %1100 = vmatpush.bf16.msra.mxu0 0
    %1101 = vmatpush.bf16.msra.mxu0 0
    %1102 = vmatpush.bf16.msra.mxu0 %v521
    %1103 = vmatpush.bf16.msra.mxu0 %v519
    %1104 = vmatpush.bf16.msra.mxu0 %v517
    %1105 = vmatpush.bf16.msra.mxu0 %v515
    %1106 = vmatpush.bf16.msra.mxu0 %v513
    %1107 = vmatpush.bf16.msra.mxu0 %v511
    %1108 = vmatmul.bf16.gmra.mxu0 %v1095
    %v1109 = vpop.f32.mrf.mxu0
    %v1110 = vadd.f32 0.0, %v1109
    %v1111 = vpop.f32.mrf.mxu0
    %v1112 = vadd.f32 0.0, %v1111
    %1113 = vmatmul.bf16.gmra.mxu0 %v1098
    %v1114 = vpop.f32.mrf.mxu0
    %v1115 = vadd.f32 0.0, %v1114
    %v1116 = vpop.f32.mrf.mxu0
    %v1117 = vadd.f32 0.0, %v1116
    %1118 = vdwg.mxu0
    %1119 = vmatpush.bf16.msra.mxu0 0
    %1120 = vmatpush.bf16.msra.mxu0 0
    %1121 = vmatpush.bf16.msra.mxu0 %v522
    %1122 = vmatpush.bf16.msra.mxu0 %v520
    %1123 = vmatpush.bf16.msra.mxu0 %v518
    %1124 = vmatpush.bf16.msra.mxu0 %v516
    %1125 = vmatpush.bf16.msra.mxu0 %v514
    %1126 = vmatpush.bf16.msra.mxu0 %v512
    %1127 = vmatmul.bf16.gmra.mxu0 %v1095
    %v1128 = vpop.f32.mrf.mxu0
    %v1129 = vadd.f32 0.0, %v1128
    %v1130 = vpop.f32.mrf.mxu0
    %v1131 = vadd.f32 0.0, %v1130
    %1132 = vmatmul.bf16.gmra.mxu0 %v1098
    %v1133 = vpop.f32.mrf.mxu0
    %v1134 = vadd.f32 0.0, %v1133
    %v1135 = vpop.f32.mrf.mxu0
    %v1136 = vadd.f32 0.0, %v1135
    %1137 = vdwg.mxu0
    %v1138 = vadd.f32 %v1080, %v1110
    %v1139 = vadd.f32 %v1081, %v1129
    %v1140 = vadd.f32 %v1082, %v1112
    %v1141 = vadd.f32 %v1083, %v1131
    %v1142 = vadd.f32 %v1084, %v1115
    %v1143 = vadd.f32 %v1085, %v1134
    %v1144 = vadd.f32 %v1086, %v1117
    %v1145 = vadd.f32 %v1087, %v1136
    %v1146 = vld [vmem:[%s0 + $0x24] sm:$0xff]
    %v1147 = vld [vmem:[%s0 + $0x2c] sm:$0xff]
    %v1148 = vld [vmem:[%s0 + $0x34] sm:$0xff]
    %v1149 = vld [vmem:[%s0 + $0x3c] sm:$0xf]
    %v1150 = vpack.c.bf16 %v1147, %v1146
    %v1151 = vpack.c.bf16 %v1149, %v1148
    %v1153 = vsel %vm176, %v1150, 0
    %v1156 = vsel %vm176, %v1151, 0
    %1158 = vmatpush.bf16.msra.mxu0 0
    %1159 = vmatpush.bf16.msra.mxu0 0
    %1160 = vmatpush.bf16.msra.mxu0 %v652
    %1161 = vmatpush.bf16.msra.mxu0 %v650
    %1162 = vmatpush.bf16.msra.mxu0 %v648
    %1163 = vmatpush.bf16.msra.mxu0 %v646
    %1164 = vmatpush.bf16.msra.mxu0 %v644
    %1165 = vmatpush.bf16.msra.mxu0 %v642
    %1166 = vmatmul.bf16.gmra.mxu0 %v1153
    %v1167 = vpop.f32.mrf.mxu0
    %v1168 = vadd.f32 0.0, %v1167
    %v1169 = vpop.f32.mrf.mxu0
    %v1170 = vadd.f32 0.0, %v1169
    %1171 = vmatmul.bf16.gmra.mxu0 %v1156
    %v1172 = vpop.f32.mrf.mxu0
    %v1173 = vadd.f32 0.0, %v1172
    %v1174 = vpop.f32.mrf.mxu0
    %v1175 = vadd.f32 0.0, %v1174
    %1176 = vdwg.mxu0
    %1177 = vmatpush.bf16.msra.mxu0 0
    %1178 = vmatpush.bf16.msra.mxu0 0
    %1179 = vmatpush.bf16.msra.mxu0 %v653
    %1180 = vmatpush.bf16.msra.mxu0 %v651
    %1181 = vmatpush.bf16.msra.mxu0 %v649
    %1182 = vmatpush.bf16.msra.mxu0 %v647
    %1183 = vmatpush.bf16.msra.mxu0 %v645
    %1184 = vmatpush.bf16.msra.mxu0 %v643
    %1185 = vmatmul.bf16.gmra.mxu0 %v1153
    %v1186 = vpop.f32.mrf.mxu0
    %v1187 = vadd.f32 0.0, %v1186
    %v1188 = vpop.f32.mrf.mxu0
    %v1189 = vadd.f32 0.0, %v1188
    %1190 = vmatmul.bf16.gmra.mxu0 %v1156
    %v1191 = vpop.f32.mrf.mxu0
    %v1192 = vadd.f32 0.0, %v1191
    %v1193 = vpop.f32.mrf.mxu0
    %v1194 = vadd.f32 0.0, %v1193
    %1195 = vdwg.mxu0
    %v1196 = vadd.f32 %v1138, %v1168
    %v1197 = vadd.f32 %v1139, %v1187
    %v1198 = vadd.f32 %v1140, %v1170
    %v1199 = vadd.f32 %v1141, %v1189
    %v1200 = vadd.f32 %v1142, %v1173
    %v1201 = vadd.f32 %v1143, %v1192
    %v1202 = vadd.f32 %v1144, %v1175
    %v1203 = vadd.f32 %v1145, %v1194
    %v1204 = vadd.f32 %v1196, %v720
    %v1205 = vadd.f32 %v1197, %v721
    %v1206 = vadd.f32 %v1198, %v720
    %v1207 = vadd.f32 %v1199, %v721
    %v1208 = vadd.f32 %v1200, %v720
    %v1209 = vadd.f32 %v1201, %v721
    %v1210 = vadd.f32 %v1202, %v720
    %v1211 = vadd.f32 %v1203, %v721
    %v1213 = vsel %vm753, %v1205, 0
    %v1216 = vsel %vm753, %v1207, 0
    %v1219 = vsel %vm753, %v1209, 0
    %v1222 = vsel %vm753, %v1211, 0
    %1224 = vmatpush.msra.mxu0 %v747
    %1225 = vmatpush.msra.mxu0 %v746
    %1226 = vmatpush.msra.mxu0 %v745
    %1227 = vmatpush.msra.mxu0 %v744
    %1228 = vmatpush.msra.mxu0 %v743
    %1229 = vmatpush.msra.mxu0 %v742
    %1230 = vmatpush.msra.mxu0 %v741
    %1231 = vmatpush.msra.mxu0 %v740
    %1232 = vmatpush.msra.mxu0 %v739
    %1233 = vmatpush.msra.mxu0 %v738
    %1234 = vmatpush.msra.mxu0 %v737
    %1235 = vmatpush.msra.mxu0 %v736
    %1236 = vmatpush.msra.mxu0 %v735
    %1237 = vmatpush.msra.mxu0 %v734
    %1238 = vmatpush.msra.mxu0 %v733
    %1239 = vmatpush.msra.mxu0 %v732
    %1240 = vmatmul.f32.gmra.mxu0 %v1204
    %v1241 = vpop.f32.mrf.mxu0
    %v1242 = vadd.f32 0.0, %v1241
    %1243 = vmatmul.f32.gmra.mxu0 %v1206
    %v1244 = vpop.f32.mrf.mxu0
    %v1245 = vadd.f32 0.0, %v1244
    %1246 = vmatmul.f32.gmra.mxu0 %v1208
    %v1247 = vpop.f32.mrf.mxu0
    %v1248 = vadd.f32 0.0, %v1247
    %1249 = vmatmul.f32.gmra.mxu0 %v1210
    %v1250 = vpop.f32.mrf.mxu0
    %v1251 = vadd.f32 0.0, %v1250
    %1252 = vdwg.mxu0
    %1253 = vmatpush.msra.mxu0 0.0
    %1254 = vmatpush.msra.mxu0 0.0
    %1255 = vmatpush.msra.mxu0 0.0
    %1256 = vmatpush.msra.mxu0 0.0
    %1257 = vmatpush.msra.mxu0 0.0
    %1258 = vmatpush.msra.mxu0 0.0
    %1259 = vmatpush.msra.mxu0 0.0
    %1260 = vmatpush.msra.mxu0 0.0
    %1261 = vmatpush.msra.mxu0 0.0
    %1262 = vmatpush.msra.mxu0 0.0
    %1263 = vmatpush.msra.mxu0 0.0
    %1264 = vmatpush.msra.mxu0 %v752
    %1265 = vmatpush.msra.mxu0 %v751
    %1266 = vmatpush.msra.mxu0 %v750
    %1267 = vmatpush.msra.mxu0 %v749
    %1268 = vmatpush.msra.mxu0 %v748
    %1269 = vmatmul.f32.gmra.mxu0 %v1213
    %v1270 = vpop.f32.mrf.mxu0
    %v1271 = vadd.f32 %v1242, %v1270
    %1272 = vmatmul.f32.gmra.mxu0 %v1216
    %v1273 = vpop.f32.mrf.mxu0
    %v1274 = vadd.f32 %v1245, %v1273
    %1275 = vmatmul.f32.gmra.mxu0 %v1219
    %v1276 = vpop.f32.mrf.mxu0
    %v1277 = vadd.f32 %v1248, %v1276
    %1278 = vmatmul.f32.gmra.mxu0 %v1222
    %v1279 = vpop.f32.mrf.mxu0
    %v1280 = vadd.f32 %v1251, %v1279
    %1281 = vdwg.mxu0
    %v1282 = vmul.f32 %v1204, %v1204
    %v1283 = vmul.f32 %v1205, %v1205
    %v1284 = vmul.f32 %v1206, %v1206
    %v1285 = vmul.f32 %v1207, %v1207
    %v1286 = vmul.f32 %v1208, %v1208
    %v1287 = vmul.f32 %v1209, %v1209
    %v1288 = vmul.f32 %v1210, %v1210
    %v1289 = vmul.f32 %v1211, %v1211
    %v1291 = vsel %vm753, %v1283, 0
    %v1294 = vsel %vm753, %v1285, 0
    %v1297 = vsel %vm753, %v1287, 0
    %v1300 = vsel %vm753, %v1289, 0
    %1302 = vmatpush.msra.mxu0 %v747
    %1303 = vmatpush.msra.mxu0 %v746
    %1304 = vmatpush.msra.mxu0 %v745
    %1305 = vmatpush.msra.mxu0 %v744
    %1306 = vmatpush.msra.mxu0 %v743
    %1307 = vmatpush.msra.mxu0 %v742
    %1308 = vmatpush.msra.mxu0 %v741
    %1309 = vmatpush.msra.mxu0 %v740
    %1310 = vmatpush.msra.mxu0 %v739
    %1311 = vmatpush.msra.mxu0 %v738
    %1312 = vmatpush.msra.mxu0 %v737
    %1313 = vmatpush.msra.mxu0 %v736
    %1314 = vmatpush.msra.mxu0 %v735
    %1315 = vmatpush.msra.mxu0 %v734
    %1316 = vmatpush.msra.mxu0 %v733
    %1317 = vmatpush.msra.mxu0 %v732
    %1318 = vmatmul.f32.gmra.mxu0 %v1282
    %v1319 = vpop.f32.mrf.mxu0
    %v1320 = vadd.f32 0.0, %v1319
    %1321 = vmatmul.f32.gmra.mxu0 %v1284
    %v1322 = vpop.f32.mrf.mxu0
    %v1323 = vadd.f32 0.0, %v1322
    %1324 = vmatmul.f32.gmra.mxu0 %v1286
    %v1325 = vpop.f32.mrf.mxu0
    %v1326 = vadd.f32 0.0, %v1325
    %1327 = vmatmul.f32.gmra.mxu0 %v1288
    %v1328 = vpop.f32.mrf.mxu0
    %v1329 = vadd.f32 0.0, %v1328
    %1330 = vdwg.mxu0
    %1331 = vmatpush.msra.mxu0 0.0
    %1332 = vmatpush.msra.mxu0 0.0
    %1333 = vmatpush.msra.mxu0 0.0
    %1334 = vmatpush.msra.mxu0 0.0
    %1335 = vmatpush.msra.mxu0 0.0
    %1336 = vmatpush.msra.mxu0 0.0
    %1337 = vmatpush.msra.mxu0 0.0
    %1338 = vmatpush.msra.mxu0 0.0
    %1339 = vmatpush.msra.mxu0 0.0
    %1340 = vmatpush.msra.mxu0 0.0
    %1341 = vmatpush.msra.mxu0 0.0
    %1342 = vmatpush.msra.mxu0 %v752
    %1343 = vmatpush.msra.mxu0 %v751
    %1344 = vmatpush.msra.mxu0 %v750
    %1345 = vmatpush.msra.mxu0 %v749
    %1346 = vmatpush.msra.mxu0 %v748
    %1347 = vmatmul.f32.gmra.mxu0 %v1291
    %v1348 = vpop.f32.mrf.mxu0
    %v1349 = vadd.f32 %v1320, %v1348
    %1350 = vmatmul.f32.gmra.mxu0 %v1294
    %v1351 = vpop.f32.mrf.mxu0
    %v1352 = vadd.f32 %v1323, %v1351
    %1353 = vmatmul.f32.gmra.mxu0 %v1297
    %v1354 = vpop.f32.mrf.mxu0
    %v1355 = vadd.f32 %v1326, %v1354
    %1356 = vmatmul.f32.gmra.mxu0 %v1300
    %v1357 = vpop.f32.mrf.mxu0
    %v1358 = vadd.f32 %v1329, %v1357
    %1359 = vdwg.mxu0
    %v1360 = vsel %vm902, %v1271, 0.0
    %v1361 = vsel %vm902, %v1274, 0.0
    %v1362 = vadd.f32 %v1360, %v1361
    %v1363 = vsel %vm902, %v1277, 0.0
    %v1364 = vadd.f32 %v1362, %v1363
    %v1365 = vsel %vm908, %v1280, 0.0
    %v1366 = vadd.f32 %v1364, %v1365
    %v1367 = vrot.slane %v1366, 4
    %v1368 = vadd.f32 %v1366, %v1367
    %v1369 = vrot.slane %v1368, 2
    %v1370 = vadd.f32 %v1368, %v1369
    %v1371 = vrot.slane %v1370, 1
    %v1372 = vadd.f32 %v1370, %v1371
    %v1373 = vsel %vm902, %v1349, 0.0
    %v1374 = vsel %vm902, %v1352, 0.0
    %v1375 = vadd.f32 %v1373, %v1374
    %v1376 = vsel %vm902, %v1355, 0.0
    %v1377 = vadd.f32 %v1375, %v1376
    %v1378 = vsel %vm908, %v1358, 0.0
    %v1379 = vadd.f32 %v1377, %v1378
    %v1380 = vrot.slane %v1379, 4
    %v1381 = vadd.f32 %v1379, %v1380
    %v1382 = vrot.slane %v1381, 2
    %v1383 = vadd.f32 %v1381, %v1382
    %v1384 = vrot.slane %v1383, 1
    %v1385 = vadd.f32 %v1383, %v1384
    %v1386 = vadd.f32 %v916, %v1372
    %v1387 = vadd.f32 %v929, %v1385
    %v1388 = vmul.f32 %v1386, 0.0006377551
    %v1389 = vmul.f32 %v1387, 0.0006377551
    %v1390 = vmul.f32 %v1388, %v1388
    %v1391 = vsub.f32 %v1389, %v1390
    %v1392 = vld [vmem:[%s3] sm:$0x1]
    %v1393 = vadd.f32 %v1391, 1e-05
    %v1394 = vrsqrt.pop %v1393
    %v1395 = vmul.f32 %v1394, %v1393
    %v1396 = vmul.f32 %v1395, %v1394
    %v1397 = vmul.f32 0.5, %v1396
    %v1398 = vsub.f32 1.5, %v1397
    %v1399 = vmul.f32 %v1394, %v1398
    %vm1400 = vweird.f32 %v1393
    %vm1401 = vweird.f32 %v1394
    %vm1402 = vmor %vm1400, %vm1401
    %v1403 = vsel %vm1402, %v1394, %v1399
    %v1404 = vmul.f32 %v1392, %v1403
    %v1405 = vld [vmem:[%s4] sm:$0x1]
    %v1406 = vmul.f32 %v1388, %v1404
    %v1407 = vsub.f32 %v1405, %v1406
    %v1409 = vperm.slane %v1404, 0
    %v1410 = vld [vmem:[%s6] sm:$0x3f]
    %v1411 = vld [vmem:[%s6 + $0x8] sm:$0x3f]
    %v1412 = vsel %vm902, %v1409, 0
    %vm1414 = vcmask 1045504
    %v1416 = vsel %vm1414, %v1410, 0
    %v1419 = vsel %vm1414, %v1411, 0
    %1421 = vmatpush.msra.mxu0 0.0
    %1422 = vmatpush.msra.mxu0 0.0
    %1423 = vmatpush.msra.mxu0 0.0
    %1424 = vmatpush.msra.mxu0 0.0
    %1425 = vmatpush.msra.mxu0 0.0
    %1426 = vmatpush.msra.mxu0 0.0
    %1427 = vmatpush.msra.mxu0 0.0
    %1428 = vmatpush.msra.mxu0 0.0
    %1429 = vmatpush.msra.mxu0 0.0
    %1430 = vmatpush.msra.mxu0 0.0
    %1431 = vmatpush.msra.mxu0 0.0
    %1432 = vmatpush.msra.mxu0 0.0
    %1433 = vmatpush.msra.mxu0 0.0
    %1434 = vmatpush.msra.mxu0 0.0
    %1435 = vmatpush.msra.mxu0 0.0
    %1436 = vmatpush.msra.mxu0 %v1416
    %1437 = vmatmul.f32.gmra.mxu0 %v1412
    %v1438 = vpop.f32.mrf.mxu0
    %v1439 = vadd.f32 0.0, %v1438
    %1440 = vdwg.mxu0
    %1441 = vmatpush.msra.mxu0 0.0
    %1442 = vmatpush.msra.mxu0 0.0
    %1443 = vmatpush.msra.mxu0 0.0
    %1444 = vmatpush.msra.mxu0 0.0
    %1445 = vmatpush.msra.mxu0 0.0
    %1446 = vmatpush.msra.mxu0 0.0
    %1447 = vmatpush.msra.mxu0 0.0
    %1448 = vmatpush.msra.mxu0 0.0
    %1449 = vmatpush.msra.mxu0 0.0
    %1450 = vmatpush.msra.mxu0 0.0
    %1451 = vmatpush.msra.mxu0 0.0
    %1452 = vmatpush.msra.mxu0 0.0
    %1453 = vmatpush.msra.mxu0 0.0
    %1454 = vmatpush.msra.mxu0 0.0
    %1455 = vmatpush.msra.mxu0 0.0
    %1456 = vmatpush.msra.mxu0 %v1419
    %1457 = vmatmul.f32.gmra.mxu0 %v1412
    %v1458 = vpop.f32.mrf.mxu0
    %v1459 = vadd.f32 0.0, %v1458
    %1460 = vdwg.mxu0
    %v1462 = vperm.slane %v1407, 0
    %v1463 = vsel %vm902, %v1462, 0
    %1465 = vmatpush.msra.mxu0 0.0
    %1466 = vmatpush.msra.mxu0 0.0
    %1467 = vmatpush.msra.mxu0 0.0
    %1468 = vmatpush.msra.mxu0 0.0
    %1469 = vmatpush.msra.mxu0 0.0
    %1470 = vmatpush.msra.mxu0 0.0
    %1471 = vmatpush.msra.mxu0 0.0
    %1472 = vmatpush.msra.mxu0 0.0
    %1473 = vmatpush.msra.mxu0 0.0
    %1474 = vmatpush.msra.mxu0 0.0
    %1475 = vmatpush.msra.mxu0 0.0
    %1476 = vmatpush.msra.mxu0 0.0
    %1477 = vmatpush.msra.mxu0 0.0
    %1478 = vmatpush.msra.mxu0 0.0
    %1479 = vmatpush.msra.mxu0 0.0
    %1480 = vmatpush.msra.mxu0 %v1416
    %1481 = vmatmul.f32.gmra.mxu0 %v1463
    %v1482 = vpop.f32.mrf.mxu0
    %v1483 = vadd.f32 0.0, %v1482
    %1484 = vdwg.mxu0
    %1485 = vmatpush.msra.mxu0 0.0
    %1486 = vmatpush.msra.mxu0 0.0
    %1487 = vmatpush.msra.mxu0 0.0
    %1488 = vmatpush.msra.mxu0 0.0
    %1489 = vmatpush.msra.mxu0 0.0
    %1490 = vmatpush.msra.mxu0 0.0
    %1491 = vmatpush.msra.mxu0 0.0
    %1492 = vmatpush.msra.mxu0 0.0
    %1493 = vmatpush.msra.mxu0 0.0
    %1494 = vmatpush.msra.mxu0 0.0
    %1495 = vmatpush.msra.mxu0 0.0
    %1496 = vmatpush.msra.mxu0 0.0
    %1497 = vmatpush.msra.mxu0 0.0
    %1498 = vmatpush.msra.mxu0 0.0
    %1499 = vmatpush.msra.mxu0 0.0
    %1500 = vmatpush.msra.mxu0 %v1419
    %1501 = vmatmul.f32.gmra.mxu0 %v1463
    %v1502 = vpop.f32.mrf.mxu0
    %v1503 = vadd.f32 0.0, %v1502
    %1504 = vdwg.mxu0
    %v1505 = vperm.slane %v1439, 0
    %v1506 = vperm.slane %v1459, 0
    %v1507 = vmul.f32 %v724, %v1505
    %v1508 = vmul.f32 %v725, %v1506
    %v1509 = vmul.f32 %v726, %v1505
    %v1510 = vmul.f32 %v727, %v1506
    %v1511 = vmul.f32 %v728, %v1505
    %v1512 = vmul.f32 %v729, %v1506
    %v1513 = vmul.f32 %v730, %v1505
    %v1514 = vmul.f32 %v731, %v1506
    %v1515 = vperm.slane %v1483, 0
    %v1516 = vperm.slane %v1503, 0
    %v1517 = vadd.f32 %v1507, %v1515
    %v1518 = vadd.f32 %v1508, %v1516
    %v1519 = vadd.f32 %v1509, %v1515
    %v1520 = vadd.f32 %v1510, %v1516
    %v1521 = vadd.f32 %v1511, %v1515
    %v1522 = vadd.f32 %v1512, %v1516
    %v1523 = vadd.f32 %v1513, %v1515
    %v1524 = vadd.f32 %v1514, %v1516
    %v1525 = vmax.f32 %v1517, 0.0
    %v1526 = vmax.f32 %v1518, 0.0
    %v1527 = vmax.f32 %v1519, 0.0
    %v1528 = vmax.f32 %v1520, 0.0
    %v1529 = vmax.f32 %v1521, 0.0
    %v1530 = vmax.f32 %v1522, 0.0
    %v1531 = vmax.f32 %v1523, 0.0
    %v1532 = vmax.f32 %v1524, 0.0
    %v1533 = vld [vmem:[%s7] sm:$0xff]
    %v1534 = vld [vmem:[%s7 + $0x8] sm:$0x3f]
    %vm1535 = vcmask 228352
    %v1537 = vsel %vm1535, %v1533, 0
    %v1540 = vsel %vm1535, %v1534, 0
    %vm1542 = vcmask 1043456
    %v1544 = vsel %vm1542, %v1531, 0
    %v1547 = vsel %vm1542, %v1532, 0
    %1549 = vmatpush.msra.mxu0 0.0
    %1550 = vmatpush.msra.mxu0 0.0
    %1551 = vmatpush.msra.mxu0 0.0
    %1552 = vmatpush.msra.mxu0 0.0
    %1553 = vmatpush.msra.mxu0 0.0
    %1554 = vmatpush.msra.mxu0 0.0
    %1555 = vmatpush.msra.mxu0 0.0
    %1556 = vmatpush.msra.mxu0 0.0
    %1557 = vmatpush.msra.mxu0 0.0
    %1558 = vmatpush.msra.mxu0 0.0
    %1559 = vmatpush.msra.mxu0 0.0
    %1560 = vmatpush.msra.mxu0 0.0
    %1561 = vmatpush.msra.mxu0 %v1544
    %1562 = vmatpush.msra.mxu0 %v1529
    %1563 = vmatpush.msra.mxu0 %v1527
    %1564 = vmatpush.msra.mxu0 %v1525
    %1565 = vmatmul.f32.gmra.mxu0 %v1537
    %v1566 = vpop.f32.mrf.mxu0
    %v1567 = vadd.f32 0.0, %v1566
    %1568 = vmatmul.f32.gmra.mxu0 %v1540
    %v1569 = vpop.f32.mrf.mxu0
    %v1570 = vadd.f32 0.0, %v1569
    %1571 = vdwg.mxu0
    %1572 = vmatpush.msra.mxu0 0.0
    %1573 = vmatpush.msra.mxu0 0.0
    %1574 = vmatpush.msra.mxu0 0.0
    %1575 = vmatpush.msra.mxu0 0.0
    %1576 = vmatpush.msra.mxu0 0.0
    %1577 = vmatpush.msra.mxu0 0.0
    %1578 = vmatpush.msra.mxu0 0.0
    %1579 = vmatpush.msra.mxu0 0.0
    %1580 = vmatpush.msra.mxu0 0.0
    %1581 = vmatpush.msra.mxu0 0.0
    %1582 = vmatpush.msra.mxu0 0.0
    %1583 = vmatpush.msra.mxu0 0.0
    %1584 = vmatpush.msra.mxu0 %v1547
    %1585 = vmatpush.msra.mxu0 %v1530
    %1586 = vmatpush.msra.mxu0 %v1528
    %1587 = vmatpush.msra.mxu0 %v1526
    %1588 = vmatmul.f32.gmra.mxu0 %v1537
    %v1589 = vpop.f32.mrf.mxu0
    %v1590 = vadd.f32 0.0, %v1589
    %1591 = vmatmul.f32.gmra.mxu0 %v1540
    %v1592 = vpop.f32.mrf.mxu0
    %v1593 = vadd.f32 0.0, %v1592
    %1594 = vdwg.mxu0
    %v1595 = vld [vmem:[%s8] sm:$0xff]
    %v1596 = vld [vmem:[%s8 + $0x8] sm:$0xff]
    %v1597 = vld [vmem:[%s8 + $0x10] sm:$0xff]
    %v1598 = vld [vmem:[%s8 + $0x18] sm:$0xff]
    %v1599 = vld [vmem:[%s8 + $0x20] sm:$0xff]
    %v1600 = vld [vmem:[%s8 + $0x28] sm:$0xff]
    %v1601 = vld [vmem:[%s8 + $0x30] sm:$0xff]
    %v1602 = vld [vmem:[%s8 + $0x38] sm:$0xff]
    %v1603 = vld [vmem:[%s8 + $0x40] sm:$0xff]
    %v1604 = vld [vmem:[%s8 + $0x48] sm:$0xff]
    %v1605 = vld [vmem:[%s8 + $0x50] sm:$0xff]
    %v1606 = vld [vmem:[%s8 + $0x58] sm:$0xff]
    %v1607 = vld [vmem:[%s8 + $0x60] sm:$0xff]
    %v1608 = vld [vmem:[%s8 + $0x68] sm:$0xff]
    %v1609 = vld [vmem:[%s8 + $0x70] sm:$0xff]
    %v1610 = vld [vmem:[%s8 + $0x78] sm:$0xff]
    %v1611 = vld [vmem:[%s8 + $0x80] sm:$0xff]
    %v1612 = vld [vmem:[%s8 + $0x88] sm:$0xff]
    %v1613 = vld [vmem:[%s8 + $0x90] sm:$0xff]
    %v1614 = vld [vmem:[%s8 + $0x98] sm:$0xff]
    %v1615 = vld [vmem:[%s8 + $0xa0] sm:$0xff]
    %v1617 = vsel %vm753, %v1590, 0
    %v1620 = vsel %vm753, %v1593, 0
    %1622 = vmatpush.msra.mxu0 %v1610
    %1623 = vmatpush.msra.mxu0 %v1609
    %1624 = vmatpush.msra.mxu0 %v1608
    %1625 = vmatpush.msra.mxu0 %v1607
    %1626 = vmatpush.msra.mxu0 %v1606
    %1627 = vmatpush.msra.mxu0 %v1605
    %1628 = vmatpush.msra.mxu0 %v1604
    %1629 = vmatpush.msra.mxu0 %v1603
    %1630 = vmatpush.msra.mxu0 %v1602
    %1631 = vmatpush.msra.mxu0 %v1601
    %1632 = vmatpush.msra.mxu0 %v1600
    %1633 = vmatpush.msra.mxu0 %v1599
    %1634 = vmatpush.msra.mxu0 %v1598
    %1635 = vmatpush.msra.mxu0 %v1597
    %1636 = vmatpush.msra.mxu0 %v1596
    %1637 = vmatpush.msra.mxu0 %v1595
    %1638 = vmatmul.f32.gmra.mxu0 %v1567
    %v1639 = vpop.f32.mrf.mxu0
    %v1640 = vadd.f32 0.0, %v1639
    %1641 = vmatmul.f32.gmra.mxu0 %v1570
    %v1642 = vpop.f32.mrf.mxu0
    %v1643 = vadd.f32 0.0, %v1642
    %1644 = vdwg.mxu0
    %1645 = vmatpush.msra.mxu0 0.0
    %1646 = vmatpush.msra.mxu0 0.0
    %1647 = vmatpush.msra.mxu0 0.0
    %1648 = vmatpush.msra.mxu0 0.0
    %1649 = vmatpush.msra.mxu0 0.0
    %1650 = vmatpush.msra.mxu0 0.0
    %1651 = vmatpush.msra.mxu0 0.0
    %1652 = vmatpush.msra.mxu0 0.0
    %1653 = vmatpush.msra.mxu0 0.0
    %1654 = vmatpush.msra.mxu0 0.0
    %1655 = vmatpush.msra.mxu0 0.0
    %1656 = vmatpush.msra.mxu0 %v1615
    %1657 = vmatpush.msra.mxu0 %v1614
    %1658 = vmatpush.msra.mxu0 %v1613
    %1659 = vmatpush.msra.mxu0 %v1612
    %1660 = vmatpush.msra.mxu0 %v1611
    %1661 = vmatmul.f32.gmra.mxu0 %v1617
    %v1662 = vpop.f32.mrf.mxu0
    %v1663 = vadd.f32 %v1640, %v1662
    %1664 = vmatmul.f32.gmra.mxu0 %v1620
    %v1665 = vpop.f32.mrf.mxu0
    %v1666 = vadd.f32 %v1643, %v1665
    %1667 = vdwg.mxu0
    %s1668 = scalar_lea.vmem %s8, 168
    %v1669 = vld [vmem:[%s1668] sm:$0xff]
    %v1670 = vld [vmem:[%s1668 + $0x8] sm:$0xff]
    %v1671 = vld [vmem:[%s1668 + $0x10] sm:$0xff]
    %v1672 = vld [vmem:[%s1668 + $0x18] sm:$0xff]
    %v1673 = vld [vmem:[%s1668 + $0x20] sm:$0xff]
    %v1674 = vld [vmem:[%s1668 + $0x28] sm:$0xff]
    %v1675 = vld [vmem:[%s1668 + $0x30] sm:$0xff]
    %v1676 = vld [vmem:[%s1668 + $0x38] sm:$0xff]
    %v1677 = vld [vmem:[%s1668 + $0x40] sm:$0xff]
    %v1678 = vld [vmem:[%s1668 + $0x48] sm:$0xff]
    %v1679 = vld [vmem:[%s1668 + $0x50] sm:$0xff]
    %v1680 = vld [vmem:[%s1668 + $0x58] sm:$0xff]
    %v1681 = vld [vmem:[%s1668 + $0x60] sm:$0xff]
    %v1682 = vld [vmem:[%s1668 + $0x68] sm:$0xff]
    %v1683 = vld [vmem:[%s1668 + $0x70] sm:$0xff]
    %v1684 = vld [vmem:[%s1668 + $0x78] sm:$0xff]
    %v1685 = vld [vmem:[%s1668 + $0x80] sm:$0xff]
    %v1686 = vld [vmem:[%s1668 + $0x88] sm:$0xff]
    %v1687 = vld [vmem:[%s1668 + $0x90] sm:$0xff]
    %v1688 = vld [vmem:[%s1668 + $0x98] sm:$0xff]
    %v1689 = vld [vmem:[%s1668 + $0xa0] sm:$0xff]
    %1690 = vmatpush.msra.mxu0 %v1684
    %1691 = vmatpush.msra.mxu0 %v1683
    %1692 = vmatpush.msra.mxu0 %v1682
    %1693 = vmatpush.msra.mxu0 %v1681
    %1694 = vmatpush.msra.mxu0 %v1680
    %1695 = vmatpush.msra.mxu0 %v1679
    %1696 = vmatpush.msra.mxu0 %v1678
    %1697 = vmatpush.msra.mxu0 %v1677
    %1698 = vmatpush.msra.mxu0 %v1676
    %1699 = vmatpush.msra.mxu0 %v1675
    %1700 = vmatpush.msra.mxu0 %v1674
    %1701 = vmatpush.msra.mxu0 %v1673
    %1702 = vmatpush.msra.mxu0 %v1672
    %1703 = vmatpush.msra.mxu0 %v1671
    %1704 = vmatpush.msra.mxu0 %v1670
    %1705 = vmatpush.msra.mxu0 %v1669
    %1706 = vmatmul.f32.gmra.mxu0 %v1567
    %v1707 = vpop.f32.mrf.mxu0
    %v1708 = vadd.f32 0.0, %v1707
    %1709 = vmatmul.f32.gmra.mxu0 %v1570
    %v1710 = vpop.f32.mrf.mxu0
    %v1711 = vadd.f32 0.0, %v1710
    %1712 = vdwg.mxu0
    %1713 = vmatpush.msra.mxu0 0.0
    %1714 = vmatpush.msra.mxu0 0.0
    %1715 = vmatpush.msra.mxu0 0.0
    %1716 = vmatpush.msra.mxu0 0.0
    %1717 = vmatpush.msra.mxu0 0.0
    %1718 = vmatpush.msra.mxu0 0.0
    %1719 = vmatpush.msra.mxu0 0.0
    %1720 = vmatpush.msra.mxu0 0.0
    %1721 = vmatpush.msra.mxu0 0.0
    %1722 = vmatpush.msra.mxu0 0.0
    %1723 = vmatpush.msra.mxu0 0.0
    %1724 = vmatpush.msra.mxu0 %v1689
    %1725 = vmatpush.msra.mxu0 %v1688
    %1726 = vmatpush.msra.mxu0 %v1687
    %1727 = vmatpush.msra.mxu0 %v1686
    %1728 = vmatpush.msra.mxu0 %v1685
    %1729 = vmatmul.f32.gmra.mxu0 %v1617
    %v1730 = vpop.f32.mrf.mxu0
    %v1731 = vadd.f32 %v1708, %v1730
    %1732 = vmatmul.f32.gmra.mxu0 %v1620
    %v1733 = vpop.f32.mrf.mxu0
    %v1734 = vadd.f32 %v1711, %v1733
    %1735 = vdwg.mxu0
    %v1736 = vmax.f32 %v1663, %v1731
    %v1737 = vmax.f32 %v1666, %v1734
    %s1738 = scalar_lea.vmem %s7, 16
    %v1739 = vld [vmem:[%s1738] sm:$0xff]
    %v1740 = vld [vmem:[%s1738 + $0x8] sm:$0x3f]
    %v1742 = vsel %vm1535, %v1739, 0
    %v1745 = vsel %vm1535, %v1740, 0
    %1747 = vmatpush.msra.mxu0 0.0
    %1748 = vmatpush.msra.mxu0 0.0
    %1749 = vmatpush.msra.mxu0 0.0
    %1750 = vmatpush.msra.mxu0 0.0
    %1751 = vmatpush.msra.mxu0 0.0
    %1752 = vmatpush.msra.mxu0 0.0
    %1753 = vmatpush.msra.mxu0 0.0
    %1754 = vmatpush.msra.mxu0 0.0
    %1755 = vmatpush.msra.mxu0 0.0
    %1756 = vmatpush.msra.mxu0 0.0
    %1757 = vmatpush.msra.mxu0 0.0
    %1758 = vmatpush.msra.mxu0 0.0
    %1759 = vmatpush.msra.mxu0 %v1544
    %1760 = vmatpush.msra.mxu0 %v1529
    %1761 = vmatpush.msra.mxu0 %v1527
    %1762 = vmatpush.msra.mxu0 %v1525
    %1763 = vmatmul.f32.gmra.mxu0 %v1742
    %v1764 = vpop.f32.mrf.mxu0
    %v1765 = vadd.f32 0.0, %v1764
    %1766 = vmatmul.f32.gmra.mxu0 %v1745
    %v1767 = vpop.f32.mrf.mxu0
    %v1768 = vadd.f32 0.0, %v1767
    %1769 = vdwg.mxu0
    %1770 = vmatpush.msra.mxu0 0.0
    %1771 = vmatpush.msra.mxu0 0.0
    %1772 = vmatpush.msra.mxu0 0.0
    %1773 = vmatpush.msra.mxu0 0.0
    %1774 = vmatpush.msra.mxu0 0.0
    %1775 = vmatpush.msra.mxu0 0.0
    %1776 = vmatpush.msra.mxu0 0.0
    %1777 = vmatpush.msra.mxu0 0.0
    %1778 = vmatpush.msra.mxu0 0.0
    %1779 = vmatpush.msra.mxu0 0.0
    %1780 = vmatpush.msra.mxu0 0.0
    %1781 = vmatpush.msra.mxu0 0.0
    %1782 = vmatpush.msra.mxu0 %v1547
    %1783 = vmatpush.msra.mxu0 %v1530
    %1784 = vmatpush.msra.mxu0 %v1528
    %1785 = vmatpush.msra.mxu0 %v1526
    %1786 = vmatmul.f32.gmra.mxu0 %v1742
    %v1787 = vpop.f32.mrf.mxu0
    %v1788 = vadd.f32 0.0, %v1787
    %1789 = vmatmul.f32.gmra.mxu0 %v1745
    %v1790 = vpop.f32.mrf.mxu0
    %v1791 = vadd.f32 0.0, %v1790
    %1792 = vdwg.mxu0
    %v1794 = vsel %vm753, %v1788, 0
    %v1797 = vsel %vm753, %v1791, 0
    %1799 = vmatpush.msra.mxu0 %v1610
    %1800 = vmatpush.msra.mxu0 %v1609
    %1801 = vmatpush.msra.mxu0 %v1608
    %1802 = vmatpush.msra.mxu0 %v1607
    %1803 = vmatpush.msra.mxu0 %v1606
    %1804 = vmatpush.msra.mxu0 %v1605
    %1805 = vmatpush.msra.mxu0 %v1604
    %1806 = vmatpush.msra.mxu0 %v1603
    %1807 = vmatpush.msra.mxu0 %v1602
    %1808 = vmatpush.msra.mxu0 %v1601
    %1809 = vmatpush.msra.mxu0 %v1600
    %1810 = vmatpush.msra.mxu0 %v1599
    %1811 = vmatpush.msra.mxu0 %v1598
    %1812 = vmatpush.msra.mxu0 %v1597
    %1813 = vmatpush.msra.mxu0 %v1596
    %1814 = vmatpush.msra.mxu0 %v1595
    %1815 = vmatmul.f32.gmra.mxu0 %v1765
    %v1816 = vpop.f32.mrf.mxu0
    %v1817 = vadd.f32 0.0, %v1816
    %1818 = vmatmul.f32.gmra.mxu0 %v1768
    %v1819 = vpop.f32.mrf.mxu0
    %v1820 = vadd.f32 0.0, %v1819
    %1821 = vdwg.mxu0
    %1822 = vmatpush.msra.mxu0 0.0
    %1823 = vmatpush.msra.mxu0 0.0
    %1824 = vmatpush.msra.mxu0 0.0
    %1825 = vmatpush.msra.mxu0 0.0
    %1826 = vmatpush.msra.mxu0 0.0
    %1827 = vmatpush.msra.mxu0 0.0
    %1828 = vmatpush.msra.mxu0 0.0
    %1829 = vmatpush.msra.mxu0 0.0
    %1830 = vmatpush.msra.mxu0 0.0
    %1831 = vmatpush.msra.mxu0 0.0
    %1832 = vmatpush.msra.mxu0 0.0
    %1833 = vmatpush.msra.mxu0 %v1615
    %1834 = vmatpush.msra.mxu0 %v1614
    %1835 = vmatpush.msra.mxu0 %v1613
    %1836 = vmatpush.msra.mxu0 %v1612
    %1837 = vmatpush.msra.mxu0 %v1611
    %1838 = vmatmul.f32.gmra.mxu0 %v1794
    %v1839 = vpop.f32.mrf.mxu0
    %v1840 = vadd.f32 %v1817, %v1839
    %1841 = vmatmul.f32.gmra.mxu0 %v1797
    %v1842 = vpop.f32.mrf.mxu0
    %v1843 = vadd.f32 %v1820, %v1842
    %1844 = vdwg.mxu0
    %v1845 = vmax.f32 %v1736, %v1840
    %v1846 = vmax.f32 %v1737, %v1843
    %1847 = vmatpush.msra.mxu0 %v1684
    %1848 = vmatpush.msra.mxu0 %v1683
    %1849 = vmatpush.msra.mxu0 %v1682
    %1850 = vmatpush.msra.mxu0 %v1681
    %1851 = vmatpush.msra.mxu0 %v1680
    %1852 = vmatpush.msra.mxu0 %v1679
    %1853 = vmatpush.msra.mxu0 %v1678
    %1854 = vmatpush.msra.mxu0 %v1677
    %1855 = vmatpush.msra.mxu0 %v1676
    %1856 = vmatpush.msra.mxu0 %v1675
    %1857 = vmatpush.msra.mxu0 %v1674
    %1858 = vmatpush.msra.mxu0 %v1673
    %1859 = vmatpush.msra.mxu0 %v1672
    %1860 = vmatpush.msra.mxu0 %v1671
    %1861 = vmatpush.msra.mxu0 %v1670
    %1862 = vmatpush.msra.mxu0 %v1669
    %1863 = vmatmul.f32.gmra.mxu0 %v1765
    %v1864 = vpop.f32.mrf.mxu0
    %v1865 = vadd.f32 0.0, %v1864
    %1866 = vmatmul.f32.gmra.mxu0 %v1768
    %v1867 = vpop.f32.mrf.mxu0
    %v1868 = vadd.f32 0.0, %v1867
    %1869 = vdwg.mxu0
    %1870 = vmatpush.msra.mxu0 0.0
    %1871 = vmatpush.msra.mxu0 0.0
    %1872 = vmatpush.msra.mxu0 0.0
    %1873 = vmatpush.msra.mxu0 0.0
    %1874 = vmatpush.msra.mxu0 0.0
    %1875 = vmatpush.msra.mxu0 0.0
    %1876 = vmatpush.msra.mxu0 0.0
    %1877 = vmatpush.msra.mxu0 0.0
    %1878 = vmatpush.msra.mxu0 0.0
    %1879 = vmatpush.msra.mxu0 0.0
    %1880 = vmatpush.msra.mxu0 0.0
    %1881 = vmatpush.msra.mxu0 %v1689
    %1882 = vmatpush.msra.mxu0 %v1688
    %1883 = vmatpush.msra.mxu0 %v1687
    %1884 = vmatpush.msra.mxu0 %v1686
    %1885 = vmatpush.msra.mxu0 %v1685
    %1886 = vmatmul.f32.gmra.mxu0 %v1794
    %v1887 = vpop.f32.mrf.mxu0
    %v1888 = vadd.f32 %v1865, %v1887
    %1889 = vmatmul.f32.gmra.mxu0 %v1797
    %v1890 = vpop.f32.mrf.mxu0
    %v1891 = vadd.f32 %v1868, %v1890
    %1892 = vdwg.mxu0
    %v1893 = vmax.f32 %v1845, %v1888
    %v1894 = vmax.f32 %v1846, %v1891
    %vm1895 = vcmask 687104
    %1896 = vst.msk [vmem:[#allocation2] sm:$0xff] %vm1895, %v1893
    %vm1897 = vcmask 685056
    %1898 = vst.msk [vmem:[#allocation2 + $0x8] sm:$0x3f] %vm1897, %v1894
    %v1899 = vmul.f32 %v1204, %v1505
    %v1900 = vmul.f32 %v1205, %v1506
    %v1901 = vmul.f32 %v1206, %v1505
    %v1902 = vmul.f32 %v1207, %v1506
    %v1903 = vmul.f32 %v1208, %v1505
    %v1904 = vmul.f32 %v1209, %v1506
    %v1905 = vmul.f32 %v1210, %v1505
    %v1906 = vmul.f32 %v1211, %v1506
    %v1907 = vadd.f32 %v1899, %v1515
    %v1908 = vadd.f32 %v1900, %v1516
    %v1909 = vadd.f32 %v1901, %v1515
    %v1910 = vadd.f32 %v1902, %v1516
    %v1911 = vadd.f32 %v1903, %v1515
    %v1912 = vadd.f32 %v1904, %v1516
    %v1913 = vadd.f32 %v1905, %v1515
    %v1914 = vadd.f32 %v1906, %v1516
    %v1915 = vmax.f32 %v1907, 0.0
    %v1916 = vmax.f32 %v1908, 0.0
    %v1917 = vmax.f32 %v1909, 0.0
    %v1918 = vmax.f32 %v1910, 0.0
    %v1919 = vmax.f32 %v1911, 0.0
    %v1920 = vmax.f32 %v1912, 0.0
    %v1921 = vmax.f32 %v1913, 0.0
    %v1922 = vmax.f32 %v1914, 0.0
    %v1923 = vld [vmem:[%s7] sm:$0xff]
    %v1924 = vld [vmem:[%s7 + $0x8] sm:$0x3f]
    %v1926 = vsel %vm1535, %v1923, 0
    %v1929 = vsel %vm1535, %v1924, 0
    %v1932 = vsel %vm1542, %v1921, 0
    %v1935 = vsel %vm1542, %v1922, 0
    %1937 = vmatpush.msra.mxu0 0.0
    %1938 = vmatpush.msra.mxu0 0.0
    %1939 = vmatpush.msra.mxu0 0.0
    %1940 = vmatpush.msra.mxu0 0.0
    %1941 = vmatpush.msra.mxu0 0.0
    %1942 = vmatpush.msra.mxu0 0.0
    %1943 = vmatpush.msra.mxu0 0.0
    %1944 = vmatpush.msra.mxu0 0.0
    %1945 = vmatpush.msra.mxu0 0.0
    %1946 = vmatpush.msra.mxu0 0.0
    %1947 = vmatpush.msra.mxu0 0.0
    %1948 = vmatpush.msra.mxu0 0.0
    %1949 = vmatpush.msra.mxu0 %v1932
    %1950 = vmatpush.msra.mxu0 %v1919
    %1951 = vmatpush.msra.mxu0 %v1917
    %1952 = vmatpush.msra.mxu0 %v1915
    %1953 = vmatmul.f32.gmra.mxu0 %v1926
    %v1954 = vpop.f32.mrf.mxu0
    %v1955 = vadd.f32 0.0, %v1954
    %1956 = vmatmul.f32.gmra.mxu0 %v1929
    %v1957 = vpop.f32.mrf.mxu0
    %v1958 = vadd.f32 0.0, %v1957
    %1959 = vdwg.mxu0
    %1960 = vmatpush.msra.mxu0 0.0
    %1961 = vmatpush.msra.mxu0 0.0
    %1962 = vmatpush.msra.mxu0 0.0
    %1963 = vmatpush.msra.mxu0 0.0
    %1964 = vmatpush.msra.mxu0 0.0
    %1965 = vmatpush.msra.mxu0 0.0
    %1966 = vmatpush.msra.mxu0 0.0
    %1967 = vmatpush.msra.mxu0 0.0
    %1968 = vmatpush.msra.mxu0 0.0
    %1969 = vmatpush.msra.mxu0 0.0
    %1970 = vmatpush.msra.mxu0 0.0
    %1971 = vmatpush.msra.mxu0 0.0
    %1972 = vmatpush.msra.mxu0 %v1935
    %1973 = vmatpush.msra.mxu0 %v1920
    %1974 = vmatpush.msra.mxu0 %v1918
    %1975 = vmatpush.msra.mxu0 %v1916
    %1976 = vmatmul.f32.gmra.mxu0 %v1926
    %v1977 = vpop.f32.mrf.mxu0
    %v1978 = vadd.f32 0.0, %v1977
    %1979 = vmatmul.f32.gmra.mxu0 %v1929
    %v1980 = vpop.f32.mrf.mxu0
    %v1981 = vadd.f32 0.0, %v1980
    %1982 = vdwg.mxu0
    %v1983 = vld [vmem:[%s8] sm:$0xff]
    %v1984 = vld [vmem:[%s8 + $0x8] sm:$0xff]
    %v1985 = vld [vmem:[%s8 + $0x10] sm:$0xff]
    %v1986 = vld [vmem:[%s8 + $0x18] sm:$0xff]
    %v1987 = vld [vmem:[%s8 + $0x20] sm:$0xff]
    %v1988 = vld [vmem:[%s8 + $0x28] sm:$0xff]
    %v1989 = vld [vmem:[%s8 + $0x30] sm:$0xff]
    %v1990 = vld [vmem:[%s8 + $0x38] sm:$0xff]
    %v1991 = vld [vmem:[%s8 + $0x40] sm:$0xff]
    %v1992 = vld [vmem:[%s8 + $0x48] sm:$0xff]
    %v1993 = vld [vmem:[%s8 + $0x50] sm:$0xff]
    %v1994 = vld [vmem:[%s8 + $0x58] sm:$0xff]
    %v1995 = vld [vmem:[%s8 + $0x60] sm:$0xff]
    %v1996 = vld [vmem:[%s8 + $0x68] sm:$0xff]
    %v1997 = vld [vmem:[%s8 + $0x70] sm:$0xff]
    %v1998 = vld [vmem:[%s8 + $0x78] sm:$0xff]
    %v1999 = vld [vmem:[%s8 + $0x80] sm:$0xff]
    %v2000 = vld [vmem:[%s8 + $0x88] sm:$0xff]
    %v2001 = vld [vmem:[%s8 + $0x90] sm:$0xff]
    %v2002 = vld [vmem:[%s8 + $0x98] sm:$0xff]
    %v2003 = vld [vmem:[%s8 + $0xa0] sm:$0xff]
    %v2005 = vsel %vm753, %v1978, 0
    %v2008 = vsel %vm753, %v1981, 0
    %2010 = vmatpush.msra.mxu0 %v1998
    %2011 = vmatpush.msra.mxu0 %v1997
    %2012 = vmatpush.msra.mxu0 %v1996
    %2013 = vmatpush.msra.mxu0 %v1995
    %2014 = vmatpush.msra.mxu0 %v1994
    %2015 = vmatpush.msra.mxu0 %v1993
    %2016 = vmatpush.msra.mxu0 %v1992
    %2017 = vmatpush.msra.mxu0 %v1991
    %2018 = vmatpush.msra.mxu0 %v1990
    %2019 = vmatpush.msra.mxu0 %v1989
    %2020 = vmatpush.msra.mxu0 %v1988
    %2021 = vmatpush.msra.mxu0 %v1987
    %2022 = vmatpush.msra.mxu0 %v1986
    %2023 = vmatpush.msra.mxu0 %v1985
    %2024 = vmatpush.msra.mxu0 %v1984
    %2025 = vmatpush.msra.mxu0 %v1983
    %2026 = vmatmul.f32.gmra.mxu0 %v1955
    %v2027 = vpop.f32.mrf.mxu0
    %v2028 = vadd.f32 0.0, %v2027
    %2029 = vmatmul.f32.gmra.mxu0 %v1958
    %v2030 = vpop.f32.mrf.mxu0
    %v2031 = vadd.f32 0.0, %v2030
    %2032 = vdwg.mxu0
    %2033 = vmatpush.msra.mxu0 0.0
    %2034 = vmatpush.msra.mxu0 0.0
    %2035 = vmatpush.msra.mxu0 0.0
    %2036 = vmatpush.msra.mxu0 0.0
    %2037 = vmatpush.msra.mxu0 0.0
    %2038 = vmatpush.msra.mxu0 0.0
    %2039 = vmatpush.msra.mxu0 0.0
    %2040 = vmatpush.msra.mxu0 0.0
    %2041 = vmatpush.msra.mxu0 0.0
    %2042 = vmatpush.msra.mxu0 0.0
    %2043 = vmatpush.msra.mxu0 0.0
    %2044 = vmatpush.msra.mxu0 %v2003
    %2045 = vmatpush.msra.mxu0 %v2002
    %2046 = vmatpush.msra.mxu0 %v2001
    %2047 = vmatpush.msra.mxu0 %v2000
    %2048 = vmatpush.msra.mxu0 %v1999
    %2049 = vmatmul.f32.gmra.mxu0 %v2005
    %v2050 = vpop.f32.mrf.mxu0
    %v2051 = vadd.f32 %v2028, %v2050
    %2052 = vmatmul.f32.gmra.mxu0 %v2008
    %v2053 = vpop.f32.mrf.mxu0
    %v2054 = vadd.f32 %v2031, %v2053
    %2055 = vdwg.mxu0
    %v2056 = vld [vmem:[%s1668] sm:$0xff]
    %v2057 = vld [vmem:[%s1668 + $0x8] sm:$0xff]
    %v2058 = vld [vmem:[%s1668 + $0x10] sm:$0xff]
    %v2059 = vld [vmem:[%s1668 + $0x18] sm:$0xff]
    %v2060 = vld [vmem:[%s1668 + $0x20] sm:$0xff]
    %v2061 = vld [vmem:[%s1668 + $0x28] sm:$0xff]
    %v2062 = vld [vmem:[%s1668 + $0x30] sm:$0xff]
    %v2063 = vld [vmem:[%s1668 + $0x38] sm:$0xff]
    %v2064 = vld [vmem:[%s1668 + $0x40] sm:$0xff]
    %v2065 = vld [vmem:[%s1668 + $0x48] sm:$0xff]
    %v2066 = vld [vmem:[%s1668 + $0x50] sm:$0xff]
    %v2067 = vld [vmem:[%s1668 + $0x58] sm:$0xff]
    %v2068 = vld [vmem:[%s1668 + $0x60] sm:$0xff]
    %v2069 = vld [vmem:[%s1668 + $0x68] sm:$0xff]
    %v2070 = vld [vmem:[%s1668 + $0x70] sm:$0xff]
    %v2071 = vld [vmem:[%s1668 + $0x78] sm:$0xff]
    %v2072 = vld [vmem:[%s1668 + $0x80] sm:$0xff]
    %v2073 = vld [vmem:[%s1668 + $0x88] sm:$0xff]
    %v2074 = vld [vmem:[%s1668 + $0x90] sm:$0xff]
    %v2075 = vld [vmem:[%s1668 + $0x98] sm:$0xff]
    %v2076 = vld [vmem:[%s1668 + $0xa0] sm:$0xff]
    %2077 = vmatpush.msra.mxu0 %v2071
    %2078 = vmatpush.msra.mxu0 %v2070
    %2079 = vmatpush.msra.mxu0 %v2069
    %2080 = vmatpush.msra.mxu0 %v2068
    %2081 = vmatpush.msra.mxu0 %v2067
    %2082 = vmatpush.msra.mxu0 %v2066
    %2083 = vmatpush.msra.mxu0 %v2065
    %2084 = vmatpush.msra.mxu0 %v2064
    %2085 = vmatpush.msra.mxu0 %v2063
    %2086 = vmatpush.msra.mxu0 %v2062
    %2087 = vmatpush.msra.mxu0 %v2061
    %2088 = vmatpush.msra.mxu0 %v2060
    %2089 = vmatpush.msra.mxu0 %v2059
    %2090 = vmatpush.msra.mxu0 %v2058
    %2091 = vmatpush.msra.mxu0 %v2057
    %2092 = vmatpush.msra.mxu0 %v2056
    %2093 = vmatmul.f32.gmra.mxu0 %v1955
    %v2094 = vpop.f32.mrf.mxu0
    %v2095 = vadd.f32 0.0, %v2094
    %2096 = vmatmul.f32.gmra.mxu0 %v1958
    %v2097 = vpop.f32.mrf.mxu0
    %v2098 = vadd.f32 0.0, %v2097
    %2099 = vdwg.mxu0
    %2100 = vmatpush.msra.mxu0 0.0
    %2101 = vmatpush.msra.mxu0 0.0
    %2102 = vmatpush.msra.mxu0 0.0
    %2103 = vmatpush.msra.mxu0 0.0
    %2104 = vmatpush.msra.mxu0 0.0
    %2105 = vmatpush.msra.mxu0 0.0
    %2106 = vmatpush.msra.mxu0 0.0
    %2107 = vmatpush.msra.mxu0 0.0
    %2108 = vmatpush.msra.mxu0 0.0
    %2109 = vmatpush.msra.mxu0 0.0
    %2110 = vmatpush.msra.mxu0 0.0
    %2111 = vmatpush.msra.mxu0 %v2076
    %2112 = vmatpush.msra.mxu0 %v2075
    %2113 = vmatpush.msra.mxu0 %v2074
    %2114 = vmatpush.msra.mxu0 %v2073
    %2115 = vmatpush.msra.mxu0 %v2072
    %2116 = vmatmul.f32.gmra.mxu0 %v2005
    %v2117 = vpop.f32.mrf.mxu0
    %v2118 = vadd.f32 %v2095, %v2117
    %2119 = vmatmul.f32.gmra.mxu0 %v2008
    %v2120 = vpop.f32.mrf.mxu0
    %v2121 = vadd.f32 %v2098, %v2120
    %2122 = vdwg.mxu0
    %v2123 = vmax.f32 %v2051, %v2118
    %v2124 = vmax.f32 %v2054, %v2121
    %v2125 = vld [vmem:[%s1738] sm:$0xff]
    %v2126 = vld [vmem:[%s1738 + $0x8] sm:$0x3f]
    %v2128 = vsel %vm1535, %v2125, 0
    %v2131 = vsel %vm1535, %v2126, 0
    %2133 = vmatpush.msra.mxu0 0.0
    %2134 = vmatpush.msra.mxu0 0.0
    %2135 = vmatpush.msra.mxu0 0.0
    %2136 = vmatpush.msra.mxu0 0.0
    %2137 = vmatpush.msra.mxu0 0.0
    %2138 = vmatpush.msra.mxu0 0.0
    %2139 = vmatpush.msra.mxu0 0.0
    %2140 = vmatpush.msra.mxu0 0.0
    %2141 = vmatpush.msra.mxu0 0.0
    %2142 = vmatpush.msra.mxu0 0.0
    %2143 = vmatpush.msra.mxu0 0.0
    %2144 = vmatpush.msra.mxu0 0.0
    %2145 = vmatpush.msra.mxu0 %v1932
    %2146 = vmatpush.msra.mxu0 %v1919
    %2147 = vmatpush.msra.mxu0 %v1917
    %2148 = vmatpush.msra.mxu0 %v1915
    %2149 = vmatmul.f32.gmra.mxu0 %v2128
    %v2150 = vpop.f32.mrf.mxu0
    %v2151 = vadd.f32 0.0, %v2150
    %2152 = vmatmul.f32.gmra.mxu0 %v2131
    %v2153 = vpop.f32.mrf.mxu0
    %v2154 = vadd.f32 0.0, %v2153
    %2155 = vdwg.mxu0
    %2156 = vmatpush.msra.mxu0 0.0
    %2157 = vmatpush.msra.mxu0 0.0
    %2158 = vmatpush.msra.mxu0 0.0
    %2159 = vmatpush.msra.mxu0 0.0
    %2160 = vmatpush.msra.mxu0 0.0
    %2161 = vmatpush.msra.mxu0 0.0
    %2162 = vmatpush.msra.mxu0 0.0
    %2163 = vmatpush.msra.mxu0 0.0
    %2164 = vmatpush.msra.mxu0 0.0
    %2165 = vmatpush.msra.mxu0 0.0
    %2166 = vmatpush.msra.mxu0 0.0
    %2167 = vmatpush.msra.mxu0 0.0
    %2168 = vmatpush.msra.mxu0 %v1935
    %2169 = vmatpush.msra.mxu0 %v1920
    %2170 = vmatpush.msra.mxu0 %v1918
    %2171 = vmatpush.msra.mxu0 %v1916
    %2172 = vmatmul.f32.gmra.mxu0 %v2128
    %v2173 = vpop.f32.mrf.mxu0
    %v2174 = vadd.f32 0.0, %v2173
    %2175 = vmatmul.f32.gmra.mxu0 %v2131
    %v2176 = vpop.f32.mrf.mxu0
    %v2177 = vadd.f32 0.0, %v2176
    %2178 = vdwg.mxu0
    %v2180 = vsel %vm753, %v2174, 0
    %v2183 = vsel %vm753, %v2177, 0
    %2185 = vmatpush.msra.mxu0 %v1998
    %2186 = vmatpush.msra.mxu0 %v1997
    %2187 = vmatpush.msra.mxu0 %v1996
    %2188 = vmatpush.msra.mxu0 %v1995
    %2189 = vmatpush.msra.mxu0 %v1994
    %2190 = vmatpush.msra.mxu0 %v1993
    %2191 = vmatpush.msra.mxu0 %v1992
    %2192 = vmatpush.msra.mxu0 %v1991
    %2193 = vmatpush.msra.mxu0 %v1990
    %2194 = vmatpush.msra.mxu0 %v1989
    %2195 = vmatpush.msra.mxu0 %v1988
    %2196 = vmatpush.msra.mxu0 %v1987
    %2197 = vmatpush.msra.mxu0 %v1986
    %2198 = vmatpush.msra.mxu0 %v1985
    %2199 = vmatpush.msra.mxu0 %v1984
    %2200 = vmatpush.msra.mxu0 %v1983
    %2201 = vmatmul.f32.gmra.mxu0 %v2151
    %v2202 = vpop.f32.mrf.mxu0
    %v2203 = vadd.f32 0.0, %v2202
    %2204 = vmatmul.f32.gmra.mxu0 %v2154
    %v2205 = vpop.f32.mrf.mxu0
    %v2206 = vadd.f32 0.0, %v2205
    %2207 = vdwg.mxu0
    %2208 = vmatpush.msra.mxu0 0.0
    %2209 = vmatpush.msra.mxu0 0.0
    %2210 = vmatpush.msra.mxu0 0.0
    %2211 = vmatpush.msra.mxu0 0.0
    %2212 = vmatpush.msra.mxu0 0.0
    %2213 = vmatpush.msra.mxu0 0.0
    %2214 = vmatpush.msra.mxu0 0.0
    %2215 = vmatpush.msra.mxu0 0.0
    %2216 = vmatpush.msra.mxu0 0.0
    %2217 = vmatpush.msra.mxu0 0.0
    %2218 = vmatpush.msra.mxu0 0.0
    %2219 = vmatpush.msra.mxu0 %v2003
    %2220 = vmatpush.msra.mxu0 %v2002
    %2221 = vmatpush.msra.mxu0 %v2001
    %2222 = vmatpush.msra.mxu0 %v2000
    %2223 = vmatpush.msra.mxu0 %v1999
    %2224 = vmatmul.f32.gmra.mxu0 %v2180
    %v2225 = vpop.f32.mrf.mxu0
    %v2226 = vadd.f32 %v2203, %v2225
    %2227 = vmatmul.f32.gmra.mxu0 %v2183
    %v2228 = vpop.f32.mrf.mxu0
    %v2229 = vadd.f32 %v2206, %v2228
    %2230 = vdwg.mxu0
    %v2231 = vmax.f32 %v2123, %v2226
    %v2232 = vmax.f32 %v2124, %v2229
    %2233 = vmatpush.msra.mxu0 %v2071
    %2234 = vmatpush.msra.mxu0 %v2070
    %2235 = vmatpush.msra.mxu0 %v2069
    %2236 = vmatpush.msra.mxu0 %v2068
    %2237 = vmatpush.msra.mxu0 %v2067
    %2238 = vmatpush.msra.mxu0 %v2066
    %2239 = vmatpush.msra.mxu0 %v2065
    %2240 = vmatpush.msra.mxu0 %v2064
    %2241 = vmatpush.msra.mxu0 %v2063
    %2242 = vmatpush.msra.mxu0 %v2062
    %2243 = vmatpush.msra.mxu0 %v2061
    %2244 = vmatpush.msra.mxu0 %v2060
    %2245 = vmatpush.msra.mxu0 %v2059
    %2246 = vmatpush.msra.mxu0 %v2058
    %2247 = vmatpush.msra.mxu0 %v2057
    %2248 = vmatpush.msra.mxu0 %v2056
    %2249 = vmatmul.f32.gmra.mxu0 %v2151
    %v2250 = vpop.f32.mrf.mxu0
    %v2251 = vadd.f32 0.0, %v2250
    %2252 = vmatmul.f32.gmra.mxu0 %v2154
    %v2253 = vpop.f32.mrf.mxu0
    %v2254 = vadd.f32 0.0, %v2253
    %2255 = vdwg.mxu0
    %2256 = vmatpush.msra.mxu0 0.0
    %2257 = vmatpush.msra.mxu0 0.0
    %2258 = vmatpush.msra.mxu0 0.0
    %2259 = vmatpush.msra.mxu0 0.0
    %2260 = vmatpush.msra.mxu0 0.0
    %2261 = vmatpush.msra.mxu0 0.0
    %2262 = vmatpush.msra.mxu0 0.0
    %2263 = vmatpush.msra.mxu0 0.0
    %2264 = vmatpush.msra.mxu0 0.0
    %2265 = vmatpush.msra.mxu0 0.0
    %2266 = vmatpush.msra.mxu0 0.0
    %2267 = vmatpush.msra.mxu0 %v2076
    %2268 = vmatpush.msra.mxu0 %v2075
    %2269 = vmatpush.msra.mxu0 %v2074
    %2270 = vmatpush.msra.mxu0 %v2073
    %2271 = vmatpush.msra.mxu0 %v2072
    %2272 = vmatmul.f32.gmra.mxu0 %v2180
    %v2273 = vpop.f32.mrf.mxu0
    %v2274 = vadd.f32 %v2251, %v2273
    %2275 = vmatmul.f32.gmra.mxu0 %v2183
    %v2276 = vpop.f32.mrf.mxu0
    %v2277 = vadd.f32 %v2254, %v2276
    %2278 = vdwg.mxu0
    %v2279 = vmax.f32 %v2231, %v2274
    %v2280 = vmax.f32 %v2232, %v2277
    %2281 = vst.msk [vmem:[#allocation2 + $0xe] sm:$0xff] %vm1895, %v2279
    %2282 = vst.msk [vmem:[#allocation2 + $0x16] sm:$0x3f] %vm1897, %v2280
    %v2283 = vld [vmem:[#allocation2] sm:$0xff]
    %v2284 = vld [vmem:[#allocation2 + $0x8] sm:$0x3]
    %v2285 = vpack.c.bf16 %v2284, %v2283
    %v2286 = vld [vmem:[%s9] sm:$0xff]
    %v2287 = vld [vmem:[%s9 + $0x8] sm:$0xff]
    %v2288 = vld [vmem:[%s9 + $0x10] sm:$0xff]
    %v2289 = vld [vmem:[%s9 + $0x18] sm:$0xff]
    %v2290 = vld [vmem:[%s9 + $0x20] sm:$0xff]
    %v2291 = vld [vmem:[%s9 + $0x28] sm:$0xff]
    %v2292 = vld [vmem:[%s9 + $0x30] sm:$0xff]
    %v2293 = vld [vmem:[%s9 + $0x38] sm:$0xff]
    %v2294 = vld [vmem:[%s9 + $0x40] sm:$0xff]
    %v2295 = vld [vmem:[%s9 + $0x48] sm:$0xff]
    %v2296 = vld [vmem:[%s9 + $0x50] sm:$0x33]
    %v2297 = vld [vmem:[#allocation2 + $0x1] sm:$0xff]
    %v2298 = vld [vmem:[#allocation2 + $0x9] sm:$0x3]
    %v2299 = vpack.c.bf16 %v2298, %v2297
    %s2300 = scalar_lea.vmem %s9, 88
    %v2301 = vld [vmem:[%s2300] sm:$0xff]
    %v2302 = vld [vmem:[%s2300 + $0x8] sm:$0xff]
    %v2303 = vld [vmem:[%s2300 + $0x10] sm:$0xff]
    %v2304 = vld [vmem:[%s2300 + $0x18] sm:$0xff]
    %v2305 = vld [vmem:[%s2300 + $0x20] sm:$0xff]
    %v2306 = vld [vmem:[%s2300 + $0x28] sm:$0xff]
    %v2307 = vld [vmem:[%s2300 + $0x30] sm:$0xff]
    %v2308 = vld [vmem:[%s2300 + $0x38] sm:$0xff]
    %v2309 = vld [vmem:[%s2300 + $0x40] sm:$0xff]
    %v2310 = vld [vmem:[%s2300 + $0x48] sm:$0xff]
    %v2311 = vld [vmem:[%s2300 + $0x50] sm:$0x33]
    %v2323 = vunpack.c.l.b16 %v2301
    %v2324 = vunpack.c.h.b16 %v2301
    %v2325 = vunpack.c.l.b16 %v2302
    %v2326 = vunpack.c.h.b16 %v2302
    %v2327 = vunpack.c.l.b16 %v2303
    %v2328 = vunpack.c.h.b16 %v2303
    %v2329 = vunpack.c.l.b16 %v2304
    %v2330 = vunpack.c.h.b16 %v2304
    %v2331 = vunpack.c.l.b16 %v2305
    %v2332 = vunpack.c.h.b16 %v2305
    %v2333 = vunpack.c.l.b16 %v2306
    %v2334 = vunpack.c.h.b16 %v2306
    %v2335 = vunpack.c.l.b16 %v2307
    %v2336 = vunpack.c.h.b16 %v2307
    %v2337 = vunpack.c.l.b16 %v2308
    %v2338 = vunpack.c.h.b16 %v2308
    %v2339 = vunpack.c.l.b16 %v2309
    %v2340 = vunpack.c.h.b16 %v2309
    %v2341 = vunpack.c.l.b16 %v2310
    %v2342 = vunpack.c.h.b16 %v2310
    %v2343 = vunpack.c.l.b16 %v2311
    %v2344 = vunpack.c.h.b16 %v2311
    %v2345 = vpack.c.b16 %v2325, %v2323
    %v2346 = vpack.c.b16 %v2326, %v2324
    %v2347 = vpack.c.b16 %v2329, %v2327
    %v2348 = vpack.c.b16 %v2330, %v2328
    %v2349 = vpack.c.b16 %v2333, %v2331
    %v2350 = vpack.c.b16 %v2334, %v2332
    %v2351 = vpack.c.b16 %v2337, %v2335
    %v2352 = vpack.c.b16 %v2338, %v2336
    %v2353 = vpack.c.b16 %v2341, %v2339
    %v2354 = vpack.c.b16 %v2342, %v2340
    %v2355 = vpack.c.b16 %v2343, %v2343
    %v2356 = vpack.c.b16 %v2344, %v2344
    %v2368 = vsel %vm1895, %v2299, 0
    %vm2370 = vcmask 1041408
    %v2372 = vsel %vm2370, %v2355, 0
    %v2375 = vsel %vm2370, %v2356, 0
    %2377 = vmatpush.bf16.msra.mxu0 0
    %2378 = vmatpush.bf16.msra.mxu0 0
    %2379 = vmatpush.bf16.msra.mxu0 %v2372
    %2380 = vmatpush.bf16.msra.mxu0 %v2353
    %2381 = vmatpush.bf16.msra.mxu0 %v2351
    %2382 = vmatpush.bf16.msra.mxu0 %v2349
    %2383 = vmatpush.bf16.msra.mxu0 %v2347
    %2384 = vmatpush.bf16.msra.mxu0 %v2345
    %2385 = vmatmul.bf16.gmra.mxu0 %v2368
    %v2386 = vpop.f32.mrf.mxu0
    %v2387 = vadd.f32 0.0, %v2386
    %v2388 = vpop.f32.mrf.mxu0
    %v2389 = vadd.f32 0.0, %v2388
    %2390 = vdwg.mxu0
    %2391 = vmatpush.bf16.msra.mxu0 0
    %2392 = vmatpush.bf16.msra.mxu0 0
    %2393 = vmatpush.bf16.msra.mxu0 %v2375
    %2394 = vmatpush.bf16.msra.mxu0 %v2354
    %2395 = vmatpush.bf16.msra.mxu0 %v2352
    %2396 = vmatpush.bf16.msra.mxu0 %v2350
    %2397 = vmatpush.bf16.msra.mxu0 %v2348
    %2398 = vmatpush.bf16.msra.mxu0 %v2346
    %2399 = vmatmul.bf16.gmra.mxu0 %v2368
    %v2400 = vpop.f32.mrf.mxu0
    %v2401 = vadd.f32 0.0, %v2400
    %v2402 = vpop.f32.mrf.mxu0
    %v2403 = vadd.f32 0.0, %v2402
    %2404 = vdwg.mxu0
    %v2416 = vunpack.c.l.b16 %v2286
    %v2417 = vunpack.c.h.b16 %v2286
    %v2418 = vunpack.c.l.b16 %v2287
    %v2419 = vunpack.c.h.b16 %v2287
    %v2420 = vunpack.c.l.b16 %v2288
    %v2421 = vunpack.c.h.b16 %v2288
    %v2422 = vunpack.c.l.b16 %v2289
    %v2423 = vunpack.c.h.b16 %v2289
    %v2424 = vunpack.c.l.b16 %v2290
    %v2425 = vunpack.c.h.b16 %v2290
    %v2426 = vunpack.c.l.b16 %v2291
    %v2427 = vunpack.c.h.b16 %v2291
    %v2428 = vunpack.c.l.b16 %v2292
    %v2429 = vunpack.c.h.b16 %v2292
    %v2430 = vunpack.c.l.b16 %v2293
    %v2431 = vunpack.c.h.b16 %v2293
    %v2432 = vunpack.c.l.b16 %v2294
    %v2433 = vunpack.c.h.b16 %v2294
    %v2434 = vunpack.c.l.b16 %v2295
    %v2435 = vunpack.c.h.b16 %v2295
    %v2436 = vunpack.c.l.b16 %v2296
    %v2437 = vunpack.c.h.b16 %v2296
    %v2438 = vpack.c.b16 %v2418, %v2416
    %v2439 = vpack.c.b16 %v2419, %v2417
    %v2440 = vpack.c.b16 %v2422, %v2420
    %v2441 = vpack.c.b16 %v2423, %v2421
    %v2442 = vpack.c.b16 %v2426, %v2424
    %v2443 = vpack.c.b16 %v2427, %v2425
    %v2444 = vpack.c.b16 %v2430, %v2428
    %v2445 = vpack.c.b16 %v2431, %v2429
    %v2446 = vpack.c.b16 %v2434, %v2432
    %v2447 = vpack.c.b16 %v2435, %v2433
    %v2448 = vpack.c.b16 %v2436, %v2436
    %v2449 = vpack.c.b16 %v2437, %v2437
    %v2461 = vsel %vm1895, %v2285, 0
    %v2464 = vsel %vm2370, %v2448, 0
    %v2467 = vsel %vm2370, %v2449, 0
    %2469 = vmatpush.bf16.msra.mxu0 0
    %2470 = vmatpush.bf16.msra.mxu0 0
    %2471 = vmatpush.bf16.msra.mxu0 %v2464
    %2472 = vmatpush.bf16.msra.mxu0 %v2446
    %2473 = vmatpush.bf16.msra.mxu0 %v2444
    %2474 = vmatpush.bf16.msra.mxu0 %v2442
    %2475 = vmatpush.bf16.msra.mxu0 %v2440
    %2476 = vmatpush.bf16.msra.mxu0 %v2438
    %2477 = vmatmul.bf16.gmra.mxu0 %v2461
    %v2478 = vpop.f32.mrf.mxu0
    %v2479 = vadd.f32 %v2387, %v2478
    %v2480 = vpop.f32.mrf.mxu0
    %v2481 = vadd.f32 %v2389, %v2480
    %2482 = vdwg.mxu0
    %2483 = vmatpush.bf16.msra.mxu0 0
    %2484 = vmatpush.bf16.msra.mxu0 0
    %2485 = vmatpush.bf16.msra.mxu0 %v2467
    %2486 = vmatpush.bf16.msra.mxu0 %v2447
    %2487 = vmatpush.bf16.msra.mxu0 %v2445
    %2488 = vmatpush.bf16.msra.mxu0 %v2443
    %2489 = vmatpush.bf16.msra.mxu0 %v2441
    %2490 = vmatpush.bf16.msra.mxu0 %v2439
    %2491 = vmatmul.bf16.gmra.mxu0 %v2461
    %v2492 = vpop.f32.mrf.mxu0
    %v2493 = vadd.f32 %v2401, %v2492
    %v2494 = vpop.f32.mrf.mxu0
    %v2495 = vadd.f32 %v2403, %v2494
    %2496 = vdwg.mxu0
    %v2497 = vld [vmem:[#allocation2 + $0x2] sm:$0xff]
    %v2498 = vld [vmem:[#allocation2 + $0xa] sm:$0x3]
    %v2499 = vpack.c.bf16 %v2498, %v2497
    %s2500 = scalar_lea.vmem %s9, 176
    %v2501 = vld [vmem:[%s2500] sm:$0xff]
    %v2502 = vld [vmem:[%s2500 + $0x8] sm:$0xff]
    %v2503 = vld [vmem:[%s2500 + $0x10] sm:$0xff]
    %v2504 = vld [vmem:[%s2500 + $0x18] sm:$0xff]
    %v2505 = vld [vmem:[%s2500 + $0x20] sm:$0xff]
    %v2506 = vld [vmem:[%s2500 + $0x28] sm:$0xff]
    %v2507 = vld [vmem:[%s2500 + $0x30] sm:$0xff]
    %v2508 = vld [vmem:[%s2500 + $0x38] sm:$0xff]
    %v2509 = vld [vmem:[%s2500 + $0x40] sm:$0xff]
    %v2510 = vld [vmem:[%s2500 + $0x48] sm:$0xff]
    %v2511 = vld [vmem:[%s2500 + $0x50] sm:$0x33]
    %v2523 = vunpack.c.l.b16 %v2501
    %v2524 = vunpack.c.h.b16 %v2501
    %v2525 = vunpack.c.l.b16 %v2502
    %v2526 = vunpack.c.h.b16 %v2502
    %v2527 = vunpack.c.l.b16 %v2503
    %v2528 = vunpack.c.h.b16 %v2503
    %v2529 = vunpack.c.l.b16 %v2504
    %v2530 = vunpack.c.h.b16 %v2504
    %v2531 = vunpack.c.l.b16 %v2505
    %v2532 = vunpack.c.h.b16 %v2505
    %v2533 = vunpack.c.l.b16 %v2506
    %v2534 = vunpack.c.h.b16 %v2506
    %v2535 = vunpack.c.l.b16 %v2507
    %v2536 = vunpack.c.h.b16 %v2507
    %v2537 = vunpack.c.l.b16 %v2508
    %v2538 = vunpack.c.h.b16 %v2508
    %v2539 = vunpack.c.l.b16 %v2509
    %v2540 = vunpack.c.h.b16 %v2509
    %v2541 = vunpack.c.l.b16 %v2510
    %v2542 = vunpack.c.h.b16 %v2510
    %v2543 = vunpack.c.l.b16 %v2511
    %v2544 = vunpack.c.h.b16 %v2511
    %v2545 = vpack.c.b16 %v2525, %v2523
    %v2546 = vpack.c.b16 %v2526, %v2524
    %v2547 = vpack.c.b16 %v2529, %v2527
    %v2548 = vpack.c.b16 %v2530, %v2528
    %v2549 = vpack.c.b16 %v2533, %v2531
    %v2550 = vpack.c.b16 %v2534, %v2532
    %v2551 = vpack.c.b16 %v2537, %v2535
    %v2552 = vpack.c.b16 %v2538, %v2536
    %v2553 = vpack.c.b16 %v2541, %v2539
    %v2554 = vpack.c.b16 %v2542, %v2540
    %v2555 = vpack.c.b16 %v2543, %v2543
    %v2556 = vpack.c.b16 %v2544, %v2544
    %v2568 = vsel %vm1895, %v2499, 0
    %v2571 = vsel %vm2370, %v2555, 0
    %v2574 = vsel %vm2370, %v2556, 0
    %2576 = vmatpush.bf16.msra.mxu0 0
    %2577 = vmatpush.bf16.msra.mxu0 0
    %2578 = vmatpush.bf16.msra.mxu0 %v2571
    %2579 = vmatpush.bf16.msra.mxu0 %v2553
    %2580 = vmatpush.bf16.msra.mxu0 %v2551
    %2581 = vmatpush.bf16.msra.mxu0 %v2549
    %2582 = vmatpush.bf16.msra.mxu0 %v2547
    %2583 = vmatpush.bf16.msra.mxu0 %v2545
    %2584 = vmatmul.bf16.gmra.mxu0 %v2568
    %v2585 = vpop.f32.mrf.mxu0
    %v2586 = vadd.f32 0.0, %v2585
    %v2587 = vpop.f32.mrf.mxu0
    %v2588 = vadd.f32 0.0, %v2587
    %2589 = vdwg.mxu0
    %2590 = vmatpush.bf16.msra.mxu0 0
    %2591 = vmatpush.bf16.msra.mxu0 0
    %2592 = vmatpush.bf16.msra.mxu0 %v2574
    %2593 = vmatpush.bf16.msra.mxu0 %v2554
    %2594 = vmatpush.bf16.msra.mxu0 %v2552
    %2595 = vmatpush.bf16.msra.mxu0 %v2550
    %2596 = vmatpush.bf16.msra.mxu0 %v2548
    %2597 = vmatpush.bf16.msra.mxu0 %v2546
    %2598 = vmatmul.bf16.gmra.mxu0 %v2568
    %v2599 = vpop.f32.mrf.mxu0
    %v2600 = vadd.f32 0.0, %v2599
    %v2601 = vpop.f32.mrf.mxu0
    %v2602 = vadd.f32 0.0, %v2601
    %2603 = vdwg.mxu0
    %v2604 = vadd.f32 %v2479, %v2586
    %v2605 = vadd.f32 %v2493, %v2600
    %v2606 = vadd.f32 %v2481, %v2588
    %v2607 = vadd.f32 %v2495, %v2602
    %v2608 = vld [vmem:[#allocation2 + $0x3] sm:$0xff]
    %v2609 = vld [vmem:[#allocation2 + $0xb] sm:$0x3]
    %v2610 = vpack.c.bf16 %v2609, %v2608
    %s2611 = scalar_lea.vmem %s9, 264
    %v2612 = vld [vmem:[%s2611] sm:$0xff]
    %v2613 = vld [vmem:[%s2611 + $0x8] sm:$0xff]
    %v2614 = vld [vmem:[%s2611 + $0x10] sm:$0xff]
    %v2615 = vld [vmem:[%s2611 + $0x18] sm:$0xff]
    %v2616 = vld [vmem:[%s2611 + $0x20] sm:$0xff]
    %v2617 = vld [vmem:[%s2611 + $0x28] sm:$0xff]
    %v2618 = vld [vmem:[%s2611 + $0x30] sm:$0xff]
    %v2619 = vld [vmem:[%s2611 + $0x38] sm:$0xff]
    %v2620 = vld [vmem:[%s2611 + $0x40] sm:$0xff]
    %v2621 = vld [vmem:[%s2611 + $0x48] sm:$0xff]
    %v2622 = vld [vmem:[%s2611 + $0x50] sm:$0x33]
    %v2634 = vunpack.c.l.b16 %v2612
    %v2635 = vunpack.c.h.b16 %v2612
    %v2636 = vunpack.c.l.b16 %v2613
    %v2637 = vunpack.c.h.b16 %v2613
    %v2638 = vunpack.c.l.b16 %v2614
    %v2639 = vunpack.c.h.b16 %v2614
    %v2640 = vunpack.c.l.b16 %v2615
    %v2641 = vunpack.c.h.b16 %v2615
    %v2642 = vunpack.c.l.b16 %v2616
    %v2643 = vunpack.c.h.b16 %v2616
    %v2644 = vunpack.c.l.b16 %v2617
    %v2645 = vunpack.c.h.b16 %v2617
    %v2646 = vunpack.c.l.b16 %v2618
    %v2647 = vunpack.c.h.b16 %v2618
    %v2648 = vunpack.c.l.b16 %v2619
    %v2649 = vunpack.c.h.b16 %v2619
    %v2650 = vunpack.c.l.b16 %v2620
    %v2651 = vunpack.c.h.b16 %v2620
    %v2652 = vunpack.c.l.b16 %v2621
    %v2653 = vunpack.c.h.b16 %v2621
    %v2654 = vunpack.c.l.b16 %v2622
    %v2655 = vunpack.c.h.b16 %v2622
    %v2656 = vpack.c.b16 %v2636, %v2634
    %v2657 = vpack.c.b16 %v2637, %v2635
    %v2658 = vpack.c.b16 %v2640, %v2638
    %v2659 = vpack.c.b16 %v2641, %v2639
    %v2660 = vpack.c.b16 %v2644, %v2642
    %v2661 = vpack.c.b16 %v2645, %v2643
    %v2662 = vpack.c.b16 %v2648, %v2646
    %v2663 = vpack.c.b16 %v2649, %v2647
    %v2664 = vpack.c.b16 %v2652, %v2650
    %v2665 = vpack.c.b16 %v2653, %v2651
    %v2666 = vpack.c.b16 %v2654, %v2654
    %v2667 = vpack.c.b16 %v2655, %v2655
    %v2679 = vsel %vm1895, %v2610, 0
    %v2682 = vsel %vm2370, %v2666, 0
    %v2685 = vsel %vm2370, %v2667, 0
    %2687 = vmatpush.bf16.msra.mxu0 0
    %2688 = vmatpush.bf16.msra.mxu0 0
    %2689 = vmatpush.bf16.msra.mxu0 %v2682
    %2690 = vmatpush.bf16.msra.mxu0 %v2664
    %2691 = vmatpush.bf16.msra.mxu0 %v2662
    %2692 = vmatpush.bf16.msra.mxu0 %v2660
    %2693 = vmatpush.bf16.msra.mxu0 %v2658
    %2694 = vmatpush.bf16.msra.mxu0 %v2656
    %2695 = vmatmul.bf16.gmra.mxu0 %v2679
    %v2696 = vpop.f32.mrf.mxu0
    %v2697 = vadd.f32 0.0, %v2696
    %v2698 = vpop.f32.mrf.mxu0
    %v2699 = vadd.f32 0.0, %v2698
    %2700 = vdwg.mxu0
    %2701 = vmatpush.bf16.msra.mxu0 0
    %2702 = vmatpush.bf16.msra.mxu0 0
    %2703 = vmatpush.bf16.msra.mxu0 %v2685
    %2704 = vmatpush.bf16.msra.mxu0 %v2665
    %2705 = vmatpush.bf16.msra.mxu0 %v2663
    %2706 = vmatpush.bf16.msra.mxu0 %v2661
    %2707 = vmatpush.bf16.msra.mxu0 %v2659
    %2708 = vmatpush.bf16.msra.mxu0 %v2657
    %2709 = vmatmul.bf16.gmra.mxu0 %v2679
    %v2710 = vpop.f32.mrf.mxu0
    %v2711 = vadd.f32 0.0, %v2710
    %v2712 = vpop.f32.mrf.mxu0
    %v2713 = vadd.f32 0.0, %v2712
    %2714 = vdwg.mxu0
    %v2715 = vadd.f32 %v2604, %v2697
    %v2716 = vadd.f32 %v2605, %v2711
    %v2717 = vadd.f32 %v2606, %v2699
    %v2718 = vadd.f32 %v2607, %v2713
    %v2719 = vld [vmem:[#allocation2 + $0x4] sm:$0xff]
    %v2720 = vld [vmem:[#allocation2 + $0xc] sm:$0x3]
    %v2721 = vpack.c.bf16 %v2720, %v2719
    %s2722 = scalar_lea.vmem %s9, 352
    %v2723 = vld [vmem:[%s2722] sm:$0xff]
    %v2724 = vld [vmem:[%s2722 + $0x8] sm:$0xff]
    %v2725 = vld [vmem:[%s2722 + $0x10] sm:$0xff]
    %v2726 = vld [vmem:[%s2722 + $0x18] sm:$0xff]
    %v2727 = vld [vmem:[%s2722 + $0x20] sm:$0xff]
    %v2728 = vld [vmem:[%s2722 + $0x28] sm:$0xff]
    %v2729 = vld [vmem:[%s2722 + $0x30] sm:$0xff]
    %v2730 = vld [vmem:[%s2722 + $0x38] sm:$0xff]
    %v2731 = vld [vmem:[%s2722 + $0x40] sm:$0xff]
    %v2732 = vld [vmem:[%s2722 + $0x48] sm:$0xff]
    %v2733 = vld [vmem:[%s2722 + $0x50] sm:$0x33]
    %v2745 = vunpack.c.l.b16 %v2723
    %v2746 = vunpack.c.h.b16 %v2723
    %v2747 = vunpack.c.l.b16 %v2724
    %v2748 = vunpack.c.h.b16 %v2724
    %v2749 = vunpack.c.l.b16 %v2725
    %v2750 = vunpack.c.h.b16 %v2725
    %v2751 = vunpack.c.l.b16 %v2726
    %v2752 = vunpack.c.h.b16 %v2726
    %v2753 = vunpack.c.l.b16 %v2727
    %v2754 = vunpack.c.h.b16 %v2727
    %v2755 = vunpack.c.l.b16 %v2728
    %v2756 = vunpack.c.h.b16 %v2728
    %v2757 = vunpack.c.l.b16 %v2729
    %v2758 = vunpack.c.h.b16 %v2729
    %v2759 = vunpack.c.l.b16 %v2730
    %v2760 = vunpack.c.h.b16 %v2730
    %v2761 = vunpack.c.l.b16 %v2731
    %v2762 = vunpack.c.h.b16 %v2731
    %v2763 = vunpack.c.l.b16 %v2732
    %v2764 = vunpack.c.h.b16 %v2732
    %v2765 = vunpack.c.l.b16 %v2733
    %v2766 = vunpack.c.h.b16 %v2733
    %v2767 = vpack.c.b16 %v2747, %v2745
    %v2768 = vpack.c.b16 %v2748, %v2746
    %v2769 = vpack.c.b16 %v2751, %v2749
    %v2770 = vpack.c.b16 %v2752, %v2750
    %v2771 = vpack.c.b16 %v2755, %v2753
    %v2772 = vpack.c.b16 %v2756, %v2754
    %v2773 = vpack.c.b16 %v2759, %v2757
    %v2774 = vpack.c.b16 %v2760, %v2758
    %v2775 = vpack.c.b16 %v2763, %v2761
    %v2776 = vpack.c.b16 %v2764, %v2762
    %v2777 = vpack.c.b16 %v2765, %v2765
    %v2778 = vpack.c.b16 %v2766, %v2766
    %v2790 = vsel %vm1895, %v2721, 0
    %v2793 = vsel %vm2370, %v2777, 0
    %v2796 = vsel %vm2370, %v2778, 0
    %2798 = vmatpush.bf16.msra.mxu0 0
    %2799 = vmatpush.bf16.msra.mxu0 0
    %2800 = vmatpush.bf16.msra.mxu0 %v2793
    %2801 = vmatpush.bf16.msra.mxu0 %v2775
    %2802 = vmatpush.bf16.msra.mxu0 %v2773
    %2803 = vmatpush.bf16.msra.mxu0 %v2771
    %2804 = vmatpush.bf16.msra.mxu0 %v2769
    %2805 = vmatpush.bf16.msra.mxu0 %v2767
    %2806 = vmatmul.bf16.gmra.mxu0 %v2790
    %v2807 = vpop.f32.mrf.mxu0
    %v2808 = vadd.f32 0.0, %v2807
    %v2809 = vpop.f32.mrf.mxu0
    %v2810 = vadd.f32 0.0, %v2809
    %2811 = vdwg.mxu0
    %2812 = vmatpush.bf16.msra.mxu0 0
    %2813 = vmatpush.bf16.msra.mxu0 0
    %2814 = vmatpush.bf16.msra.mxu0 %v2796
    %2815 = vmatpush.bf16.msra.mxu0 %v2776
    %2816 = vmatpush.bf16.msra.mxu0 %v2774
    %2817 = vmatpush.bf16.msra.mxu0 %v2772
    %2818 = vmatpush.bf16.msra.mxu0 %v2770
    %2819 = vmatpush.bf16.msra.mxu0 %v2768
    %2820 = vmatmul.bf16.gmra.mxu0 %v2790
    %v2821 = vpop.f32.mrf.mxu0
    %v2822 = vadd.f32 0.0, %v2821
    %v2823 = vpop.f32.mrf.mxu0
    %v2824 = vadd.f32 0.0, %v2823
    %2825 = vdwg.mxu0
    %v2826 = vadd.f32 %v2715, %v2808
    %v2827 = vadd.f32 %v2716, %v2822
    %v2828 = vadd.f32 %v2717, %v2810
    %v2829 = vadd.f32 %v2718, %v2824
    %v2830 = vld [vmem:[%s10] sm:$0x3]
    %v2832 = vperm.slane %v2830, 0
    %v2833 = vperm.slane %v2830, 1
    %v2836 = vadd.f32 %v2826, %v2832
    %v2837 = vadd.f32 %v2827, %v2833
    %v2838 = vadd.f32 %v2828, %v2832
    %v2839 = vadd.f32 %v2829, %v2833
    %v2840 = vld [vmem:[%s13] sm:$0xff]
    %v2841 = vld [vmem:[%s13 + $0x8] sm:$0xff]
    %v2842 = vld [vmem:[%s13 + $0x10] sm:$0xff]
    %v2843 = vld [vmem:[%s13 + $0x18] sm:$0xff]
    %v2844 = vld [vmem:[%s13 + $0x20] sm:$0xff]
    %v2845 = vld [vmem:[%s13 + $0x28] sm:$0xff]
    %v2846 = vld [vmem:[%s13 + $0x30] sm:$0xff]
    %v2847 = vld [vmem:[%s13 + $0x38] sm:$0xff]
    %v2848 = vld [vmem:[%s13 + $0x40] sm:$0xff]
    %v2849 = vld [vmem:[%s13 + $0x48] sm:$0xff]
    %v2850 = vld [vmem:[%s13 + $0x50] sm:$0xff]
    %v2851 = vld [vmem:[%s13 + $0x58] sm:$0xff]
    %v2852 = vld [vmem:[%s13 + $0x60] sm:$0xff]
    %v2853 = vld [vmem:[%s13 + $0x68] sm:$0xff]
    %v2854 = vld [vmem:[%s13 + $0x70] sm:$0xff]
    %v2855 = vld [vmem:[%s13 + $0x78] sm:$0xff]
    %v2856 = vld [vmem:[%s13 + $0x80] sm:$0xff]
    %v2857 = vld [vmem:[%s13 + $0x88] sm:$0xff]
    %v2858 = vld [vmem:[%s13 + $0x90] sm:$0xff]
    %v2859 = vld [vmem:[%s13 + $0x98] sm:$0xff]
    %vm2860 = vcmask 261120
    %v2862 = vsel %vm2860, %v2837, 0
    %v2865 = vsel %vm2860, %v2839, 0
    %2867 = vmatpush.msra.mxu0 %v2855
    %2868 = vmatpush.msra.mxu0 %v2854
    %2869 = vmatpush.msra.mxu0 %v2853
    %2870 = vmatpush.msra.mxu0 %v2852
    %2871 = vmatpush.msra.mxu0 %v2851
    %2872 = vmatpush.msra.mxu0 %v2850
    %2873 = vmatpush.msra.mxu0 %v2849
    %2874 = vmatpush.msra.mxu0 %v2848
    %2875 = vmatpush.msra.mxu0 %v2847
    %2876 = vmatpush.msra.mxu0 %v2846
    %2877 = vmatpush.msra.mxu0 %v2845
    %2878 = vmatpush.msra.mxu0 %v2844
    %2879 = vmatpush.msra.mxu0 %v2843
    %2880 = vmatpush.msra.mxu0 %v2842
    %2881 = vmatpush.msra.mxu0 %v2841
    %2882 = vmatpush.msra.mxu0 %v2840
    %2883 = vmatmul.f32.gmra.mxu0 %v2836
    %v2884 = vpop.f32.mrf.mxu0
    %v2885 = vadd.f32 0.0, %v2884
    %2886 = vmatmul.f32.gmra.mxu0 %v2838
    %v2887 = vpop.f32.mrf.mxu0
    %v2888 = vadd.f32 0.0, %v2887
    %2889 = vdwg.mxu0
    %2890 = vmatpush.msra.mxu0 0.0
    %2891 = vmatpush.msra.mxu0 0.0
    %2892 = vmatpush.msra.mxu0 0.0
    %2893 = vmatpush.msra.mxu0 0.0
    %2894 = vmatpush.msra.mxu0 0.0
    %2895 = vmatpush.msra.mxu0 0.0
    %2896 = vmatpush.msra.mxu0 0.0
    %2897 = vmatpush.msra.mxu0 0.0
    %2898 = vmatpush.msra.mxu0 0.0
    %2899 = vmatpush.msra.mxu0 0.0
    %2900 = vmatpush.msra.mxu0 0.0
    %2901 = vmatpush.msra.mxu0 0.0
    %2902 = vmatpush.msra.mxu0 %v2859
    %2903 = vmatpush.msra.mxu0 %v2858
    %2904 = vmatpush.msra.mxu0 %v2857
    %2905 = vmatpush.msra.mxu0 %v2856
    %2906 = vmatmul.f32.gmra.mxu0 %v2862
    %v2907 = vpop.f32.mrf.mxu0
    %v2908 = vadd.f32 %v2885, %v2907
    %2909 = vmatmul.f32.gmra.mxu0 %v2865
    %v2910 = vpop.f32.mrf.mxu0
    %v2911 = vadd.f32 %v2888, %v2910
    %2912 = vdwg.mxu0
    %v2913 = vmul.f32 %v2836, %v2836
    %v2914 = vmul.f32 %v2837, %v2837
    %v2915 = vmul.f32 %v2838, %v2838
    %v2916 = vmul.f32 %v2839, %v2839
    %v2918 = vsel %vm2860, %v2914, 0
    %v2921 = vsel %vm2860, %v2916, 0
    %2923 = vmatpush.msra.mxu0 %v2855
    %2924 = vmatpush.msra.mxu0 %v2854
    %2925 = vmatpush.msra.mxu0 %v2853
    %2926 = vmatpush.msra.mxu0 %v2852
    %2927 = vmatpush.msra.mxu0 %v2851
    %2928 = vmatpush.msra.mxu0 %v2850
    %2929 = vmatpush.msra.mxu0 %v2849
    %2930 = vmatpush.msra.mxu0 %v2848
    %2931 = vmatpush.msra.mxu0 %v2847
    %2932 = vmatpush.msra.mxu0 %v2846
    %2933 = vmatpush.msra.mxu0 %v2845
    %2934 = vmatpush.msra.mxu0 %v2844
    %2935 = vmatpush.msra.mxu0 %v2843
    %2936 = vmatpush.msra.mxu0 %v2842
    %2937 = vmatpush.msra.mxu0 %v2841
    %2938 = vmatpush.msra.mxu0 %v2840
    %2939 = vmatmul.f32.gmra.mxu0 %v2913
    %v2940 = vpop.f32.mrf.mxu0
    %v2941 = vadd.f32 0.0, %v2940
    %2942 = vmatmul.f32.gmra.mxu0 %v2915
    %v2943 = vpop.f32.mrf.mxu0
    %v2944 = vadd.f32 0.0, %v2943
    %2945 = vdwg.mxu0
    %2946 = vmatpush.msra.mxu0 0.0
    %2947 = vmatpush.msra.mxu0 0.0
    %2948 = vmatpush.msra.mxu0 0.0
    %2949 = vmatpush.msra.mxu0 0.0
    %2950 = vmatpush.msra.mxu0 0.0
    %2951 = vmatpush.msra.mxu0 0.0
    %2952 = vmatpush.msra.mxu0 0.0
    %2953 = vmatpush.msra.mxu0 0.0
    %2954 = vmatpush.msra.mxu0 0.0
    %2955 = vmatpush.msra.mxu0 0.0
    %2956 = vmatpush.msra.mxu0 0.0
    %2957 = vmatpush.msra.mxu0 0.0
    %2958 = vmatpush.msra.mxu0 %v2859
    %2959 = vmatpush.msra.mxu0 %v2858
    %2960 = vmatpush.msra.mxu0 %v2857
    %2961 = vmatpush.msra.mxu0 %v2856
    %2962 = vmatmul.f32.gmra.mxu0 %v2918
    %v2963 = vpop.f32.mrf.mxu0
    %v2964 = vadd.f32 %v2941, %v2963
    %2965 = vmatmul.f32.gmra.mxu0 %v2921
    %v2966 = vpop.f32.mrf.mxu0
    %v2967 = vadd.f32 %v2944, %v2966
    %2968 = vdwg.mxu0
    %vm2969 = vcmask 130048
    %v2970 = vsel %vm2969, %v2908, 0.0
    %vm2971 = vcmask 123904
    %v2972 = vsel %vm2971, %v2911, 0.0
    %v2973 = vadd.f32 %v2970, %v2972
    %v2974 = vrot.slane %v2973, 4
    %v2975 = vadd.f32 %v2973, %v2974
    %v2976 = vrot.slane %v2975, 2
    %v2977 = vadd.f32 %v2975, %v2976
    %v2978 = vrot.slane %v2977, 1
    %v2979 = vadd.f32 %v2977, %v2978
    %v2980 = vsel %vm2969, %v2964, 0.0
    %v2981 = vsel %vm2971, %v2967, 0.0
    %v2982 = vadd.f32 %v2980, %v2981
    %v2983 = vrot.slane %v2982, 4
    %v2984 = vadd.f32 %v2982, %v2983
    %v2985 = vrot.slane %v2984, 2
    %v2986 = vadd.f32 %v2984, %v2985
    %v2987 = vrot.slane %v2986, 1
    %v2988 = vadd.f32 %v2986, %v2987
    %v2989 = vld [vmem:[#allocation2 + $0xe] sm:$0xff]
    %v2990 = vld [vmem:[#allocation2 + $0x16] sm:$0x3]
    %v2991 = vpack.c.bf16 %v2990, %v2989
    %v2992 = vld [vmem:[#allocation2 + $0xf] sm:$0xff]
    %v2993 = vld [vmem:[#allocation2 + $0x17] sm:$0x3]
    %v2994 = vpack.c.bf16 %v2993, %v2992
    %v2996 = vsel %vm1895, %v2994, 0
    %2998 = vmatpush.bf16.msra.mxu0 0
    %2999 = vmatpush.bf16.msra.mxu0 0
    %3000 = vmatpush.bf16.msra.mxu0 %v2372
    %3001 = vmatpush.bf16.msra.mxu0 %v2353
    %3002 = vmatpush.bf16.msra.mxu0 %v2351
    %3003 = vmatpush.bf16.msra.mxu0 %v2349
    %3004 = vmatpush.bf16.msra.mxu0 %v2347
    %3005 = vmatpush.bf16.msra.mxu0 %v2345
    %3006 = vmatmul.bf16.gmra.mxu0 %v2996
    %v3007 = vpop.f32.mrf.mxu0
    %v3008 = vadd.f32 0.0, %v3007
    %v3009 = vpop.f32.mrf.mxu0
    %v3010 = vadd.f32 0.0, %v3009
    %3011 = vdwg.mxu0
    %3012 = vmatpush.bf16.msra.mxu0 0
    %3013 = vmatpush.bf16.msra.mxu0 0
    %3014 = vmatpush.bf16.msra.mxu0 %v2375
    %3015 = vmatpush.bf16.msra.mxu0 %v2354
    %3016 = vmatpush.bf16.msra.mxu0 %v2352
    %3017 = vmatpush.bf16.msra.mxu0 %v2350
    %3018 = vmatpush.bf16.msra.mxu0 %v2348
    %3019 = vmatpush.bf16.msra.mxu0 %v2346
    %3020 = vmatmul.bf16.gmra.mxu0 %v2996
    %v3021 = vpop.f32.mrf.mxu0
    %v3022 = vadd.f32 0.0, %v3021
    %v3023 = vpop.f32.mrf.mxu0
    %v3024 = vadd.f32 0.0, %v3023
    %3025 = vdwg.mxu0
    %v3027 = vsel %vm1895, %v2991, 0
    %3029 = vmatpush.bf16.msra.mxu0 0
    %3030 = vmatpush.bf16.msra.mxu0 0
    %3031 = vmatpush.bf16.msra.mxu0 %v2464
    %3032 = vmatpush.bf16.msra.mxu0 %v2446
    %3033 = vmatpush.bf16.msra.mxu0 %v2444
    %3034 = vmatpush.bf16.msra.mxu0 %v2442
    %3035 = vmatpush.bf16.msra.mxu0 %v2440
    %3036 = vmatpush.bf16.msra.mxu0 %v2438
    %3037 = vmatmul.bf16.gmra.mxu0 %v3027
    %v3038 = vpop.f32.mrf.mxu0
    %v3039 = vadd.f32 %v3008, %v3038
    %v3040 = vpop.f32.mrf.mxu0
    %v3041 = vadd.f32 %v3010, %v3040
    %3042 = vdwg.mxu0
    %3043 = vmatpush.bf16.msra.mxu0 0
    %3044 = vmatpush.bf16.msra.mxu0 0
    %3045 = vmatpush.bf16.msra.mxu0 %v2467
    %3046 = vmatpush.bf16.msra.mxu0 %v2447
    %3047 = vmatpush.bf16.msra.mxu0 %v2445
    %3048 = vmatpush.bf16.msra.mxu0 %v2443
    %3049 = vmatpush.bf16.msra.mxu0 %v2441
    %3050 = vmatpush.bf16.msra.mxu0 %v2439
    %3051 = vmatmul.bf16.gmra.mxu0 %v3027
    %v3052 = vpop.f32.mrf.mxu0
    %v3053 = vadd.f32 %v3022, %v3052
    %v3054 = vpop.f32.mrf.mxu0
    %v3055 = vadd.f32 %v3024, %v3054
    %3056 = vdwg.mxu0
    %v3057 = vld [vmem:[#allocation2 + $0x10] sm:$0xff]
    %v3058 = vld [vmem:[#allocation2 + $0x18] sm:$0x3]
    %v3059 = vpack.c.bf16 %v3058, %v3057
    %v3061 = vsel %vm1895, %v3059, 0
    %3063 = vmatpush.bf16.msra.mxu0 0
    %3064 = vmatpush.bf16.msra.mxu0 0
    %3065 = vmatpush.bf16.msra.mxu0 %v2571
    %3066 = vmatpush.bf16.msra.mxu0 %v2553
    %3067 = vmatpush.bf16.msra.mxu0 %v2551
    %3068 = vmatpush.bf16.msra.mxu0 %v2549
    %3069 = vmatpush.bf16.msra.mxu0 %v2547
    %3070 = vmatpush.bf16.msra.mxu0 %v2545
    %3071 = vmatmul.bf16.gmra.mxu0 %v3061
    %v3072 = vpop.f32.mrf.mxu0
    %v3073 = vadd.f32 0.0, %v3072
    %v3074 = vpop.f32.mrf.mxu0
    %v3075 = vadd.f32 0.0, %v3074
    %3076 = vdwg.mxu0
    %3077 = vmatpush.bf16.msra.mxu0 0
    %3078 = vmatpush.bf16.msra.mxu0 0
    %3079 = vmatpush.bf16.msra.mxu0 %v2574
    %3080 = vmatpush.bf16.msra.mxu0 %v2554
    %3081 = vmatpush.bf16.msra.mxu0 %v2552
    %3082 = vmatpush.bf16.msra.mxu0 %v2550
    %3083 = vmatpush.bf16.msra.mxu0 %v2548
    %3084 = vmatpush.bf16.msra.mxu0 %v2546
    %3085 = vmatmul.bf16.gmra.mxu0 %v3061
    %v3086 = vpop.f32.mrf.mxu0
    %v3087 = vadd.f32 0.0, %v3086
    %v3088 = vpop.f32.mrf.mxu0
    %v3089 = vadd.f32 0.0, %v3088
    %3090 = vdwg.mxu0
    %v3091 = vadd.f32 %v3039, %v3073
    %v3092 = vadd.f32 %v3053, %v3087
    %v3093 = vadd.f32 %v3041, %v3075
    %v3094 = vadd.f32 %v3055, %v3089
    %v3095 = vld [vmem:[#allocation2 + $0x11] sm:$0xff]
    %v3096 = vld [vmem:[#allocation2 + $0x19] sm:$0x3]
    %v3097 = vpack.c.bf16 %v3096, %v3095
    %v3099 = vsel %vm1895, %v3097, 0
    %3101 = vmatpush.bf16.msra.mxu0 0
    %3102 = vmatpush.bf16.msra.mxu0 0
    %3103 = vmatpush.bf16.msra.mxu0 %v2682
    %3104 = vmatpush.bf16.msra.mxu0 %v2664
    %3105 = vmatpush.bf16.msra.mxu0 %v2662
    %3106 = vmatpush.bf16.msra.mxu0 %v2660
    %3107 = vmatpush.bf16.msra.mxu0 %v2658
    %3108 = vmatpush.bf16.msra.mxu0 %v2656
    %3109 = vmatmul.bf16.gmra.mxu0 %v3099
    %v3110 = vpop.f32.mrf.mxu0
    %v3111 = vadd.f32 0.0, %v3110
    %v3112 = vpop.f32.mrf.mxu0
    %v3113 = vadd.f32 0.0, %v3112
    %3114 = vdwg.mxu0
    %3115 = vmatpush.bf16.msra.mxu0 0
    %3116 = vmatpush.bf16.msra.mxu0 0
    %3117 = vmatpush.bf16.msra.mxu0 %v2685
    %3118 = vmatpush.bf16.msra.mxu0 %v2665
    %3119 = vmatpush.bf16.msra.mxu0 %v2663
    %3120 = vmatpush.bf16.msra.mxu0 %v2661
    %3121 = vmatpush.bf16.msra.mxu0 %v2659
    %3122 = vmatpush.bf16.msra.mxu0 %v2657
    %3123 = vmatmul.bf16.gmra.mxu0 %v3099
    %v3124 = vpop.f32.mrf.mxu0
    %v3125 = vadd.f32 0.0, %v3124
    %v3126 = vpop.f32.mrf.mxu0
    %v3127 = vadd.f32 0.0, %v3126
    %3128 = vdwg.mxu0
    %v3129 = vadd.f32 %v3091, %v3111
    %v3130 = vadd.f32 %v3092, %v3125
    %v3131 = vadd.f32 %v3093, %v3113
    %v3132 = vadd.f32 %v3094, %v3127
    %v3133 = vld [vmem:[#allocation2 + $0x12] sm:$0xff]
    %v3134 = vld [vmem:[#allocation2 + $0x1a] sm:$0x3]
    %v3135 = vpack.c.bf16 %v3134, %v3133
    %v3137 = vsel %vm1895, %v3135, 0
    %3139 = vmatpush.bf16.msra.mxu0 0
    %3140 = vmatpush.bf16.msra.mxu0 0
    %3141 = vmatpush.bf16.msra.mxu0 %v2793
    %3142 = vmatpush.bf16.msra.mxu0 %v2775
    %3143 = vmatpush.bf16.msra.mxu0 %v2773
    %3144 = vmatpush.bf16.msra.mxu0 %v2771
    %3145 = vmatpush.bf16.msra.mxu0 %v2769
    %3146 = vmatpush.bf16.msra.mxu0 %v2767
    %3147 = vmatmul.bf16.gmra.mxu0 %v3137
    %v3148 = vpop.f32.mrf.mxu0
    %v3149 = vadd.f32 0.0, %v3148
    %v3150 = vpop.f32.mrf.mxu0
    %v3151 = vadd.f32 0.0, %v3150
    %3152 = vdwg.mxu0
    %3153 = vmatpush.bf16.msra.mxu0 0
    %3154 = vmatpush.bf16.msra.mxu0 0
    %3155 = vmatpush.bf16.msra.mxu0 %v2796
    %3156 = vmatpush.bf16.msra.mxu0 %v2776
    %3157 = vmatpush.bf16.msra.mxu0 %v2774
    %3158 = vmatpush.bf16.msra.mxu0 %v2772
    %3159 = vmatpush.bf16.msra.mxu0 %v2770
    %3160 = vmatpush.bf16.msra.mxu0 %v2768
    %3161 = vmatmul.bf16.gmra.mxu0 %v3137
    %v3162 = vpop.f32.mrf.mxu0
    %v3163 = vadd.f32 0.0, %v3162
    %v3164 = vpop.f32.mrf.mxu0
    %v3165 = vadd.f32 0.0, %v3164
    %3166 = vdwg.mxu0
    %v3167 = vadd.f32 %v3129, %v3149
    %v3168 = vadd.f32 %v3130, %v3163
    %v3169 = vadd.f32 %v3131, %v3151
    %v3170 = vadd.f32 %v3132, %v3165
    %v3171 = vadd.f32 %v3167, %v2832
    %v3172 = vadd.f32 %v3168, %v2833
    %v3173 = vadd.f32 %v3169, %v2832
    %v3174 = vadd.f32 %v3170, %v2833
    %v3176 = vsel %vm2860, %v3172, 0
    %v3179 = vsel %vm2860, %v3174, 0
    %3181 = vmatpush.msra.mxu0 %v2855
    %3182 = vmatpush.msra.mxu0 %v2854
    %3183 = vmatpush.msra.mxu0 %v2853
    %3184 = vmatpush.msra.mxu0 %v2852
    %3185 = vmatpush.msra.mxu0 %v2851
    %3186 = vmatpush.msra.mxu0 %v2850
    %3187 = vmatpush.msra.mxu0 %v2849
    %3188 = vmatpush.msra.mxu0 %v2848
    %3189 = vmatpush.msra.mxu0 %v2847
    %3190 = vmatpush.msra.mxu0 %v2846
    %3191 = vmatpush.msra.mxu0 %v2845
    %3192 = vmatpush.msra.mxu0 %v2844
    %3193 = vmatpush.msra.mxu0 %v2843
    %3194 = vmatpush.msra.mxu0 %v2842
    %3195 = vmatpush.msra.mxu0 %v2841
    %3196 = vmatpush.msra.mxu0 %v2840
    %3197 = vmatmul.f32.gmra.mxu0 %v3171
    %v3198 = vpop.f32.mrf.mxu0
    %v3199 = vadd.f32 0.0, %v3198
    %3200 = vmatmul.f32.gmra.mxu0 %v3173
    %v3201 = vpop.f32.mrf.mxu0
    %v3202 = vadd.f32 0.0, %v3201
    %3203 = vdwg.mxu0
    %3204 = vmatpush.msra.mxu0 0.0
    %3205 = vmatpush.msra.mxu0 0.0
    %3206 = vmatpush.msra.mxu0 0.0
    %3207 = vmatpush.msra.mxu0 0.0
    %3208 = vmatpush.msra.mxu0 0.0
    %3209 = vmatpush.msra.mxu0 0.0
    %3210 = vmatpush.msra.mxu0 0.0
    %3211 = vmatpush.msra.mxu0 0.0
    %3212 = vmatpush.msra.mxu0 0.0
    %3213 = vmatpush.msra.mxu0 0.0
    %3214 = vmatpush.msra.mxu0 0.0
    %3215 = vmatpush.msra.mxu0 0.0
    %3216 = vmatpush.msra.mxu0 %v2859
    %3217 = vmatpush.msra.mxu0 %v2858
    %3218 = vmatpush.msra.mxu0 %v2857
    %3219 = vmatpush.msra.mxu0 %v2856
    %3220 = vmatmul.f32.gmra.mxu0 %v3176
    %v3221 = vpop.f32.mrf.mxu0
    %v3222 = vadd.f32 %v3199, %v3221
    %3223 = vmatmul.f32.gmra.mxu0 %v3179
    %v3224 = vpop.f32.mrf.mxu0
    %v3225 = vadd.f32 %v3202, %v3224
    %3226 = vdwg.mxu0
    %v3227 = vmul.f32 %v3171, %v3171
    %v3228 = vmul.f32 %v3172, %v3172
    %v3229 = vmul.f32 %v3173, %v3173
    %v3230 = vmul.f32 %v3174, %v3174
    %v3232 = vsel %vm2860, %v3228, 0
    %v3235 = vsel %vm2860, %v3230, 0
    %3237 = vmatpush.msra.mxu0 %v2855
    %3238 = vmatpush.msra.mxu0 %v2854
    %3239 = vmatpush.msra.mxu0 %v2853
    %3240 = vmatpush.msra.mxu0 %v2852
    %3241 = vmatpush.msra.mxu0 %v2851
    %3242 = vmatpush.msra.mxu0 %v2850
    %3243 = vmatpush.msra.mxu0 %v2849
    %3244 = vmatpush.msra.mxu0 %v2848
    %3245 = vmatpush.msra.mxu0 %v2847
    %3246 = vmatpush.msra.mxu0 %v2846
    %3247 = vmatpush.msra.mxu0 %v2845
    %3248 = vmatpush.msra.mxu0 %v2844
    %3249 = vmatpush.msra.mxu0 %v2843
    %3250 = vmatpush.msra.mxu0 %v2842
    %3251 = vmatpush.msra.mxu0 %v2841
    %3252 = vmatpush.msra.mxu0 %v2840
    %3253 = vmatmul.f32.gmra.mxu0 %v3227
    %v3254 = vpop.f32.mrf.mxu0
    %v3255 = vadd.f32 0.0, %v3254
    %3256 = vmatmul.f32.gmra.mxu0 %v3229
    %v3257 = vpop.f32.mrf.mxu0
    %v3258 = vadd.f32 0.0, %v3257
    %3259 = vdwg.mxu0
    %3260 = vmatpush.msra.mxu0 0.0
    %3261 = vmatpush.msra.mxu0 0.0
    %3262 = vmatpush.msra.mxu0 0.0
    %3263 = vmatpush.msra.mxu0 0.0
    %3264 = vmatpush.msra.mxu0 0.0
    %3265 = vmatpush.msra.mxu0 0.0
    %3266 = vmatpush.msra.mxu0 0.0
    %3267 = vmatpush.msra.mxu0 0.0
    %3268 = vmatpush.msra.mxu0 0.0
    %3269 = vmatpush.msra.mxu0 0.0
    %3270 = vmatpush.msra.mxu0 0.0
    %3271 = vmatpush.msra.mxu0 0.0
    %3272 = vmatpush.msra.mxu0 %v2859
    %3273 = vmatpush.msra.mxu0 %v2858
    %3274 = vmatpush.msra.mxu0 %v2857
    %3275 = vmatpush.msra.mxu0 %v2856
    %3276 = vmatmul.f32.gmra.mxu0 %v3232
    %v3277 = vpop.f32.mrf.mxu0
    %v3278 = vadd.f32 %v3255, %v3277
    %3279 = vmatmul.f32.gmra.mxu0 %v3235
    %v3280 = vpop.f32.mrf.mxu0
    %v3281 = vadd.f32 %v3258, %v3280
    %3282 = vdwg.mxu0
    %v3283 = vsel %vm2969, %v3222, 0.0
    %v3284 = vsel %vm2971, %v3225, 0.0
    %v3285 = vadd.f32 %v3283, %v3284
    %v3286 = vrot.slane %v3285, 4
    %v3287 = vadd.f32 %v3285, %v3286
    %v3288 = vrot.slane %v3287, 2
    %v3289 = vadd.f32 %v3287, %v3288
    %v3290 = vrot.slane %v3289, 1
    %v3291 = vadd.f32 %v3289, %v3290
    %v3292 = vsel %vm2969, %v3278, 0.0
    %v3293 = vsel %vm2971, %v3281, 0.0
    %v3294 = vadd.f32 %v3292, %v3293
    %v3295 = vrot.slane %v3294, 4
    %v3296 = vadd.f32 %v3294, %v3295
    %v3297 = vrot.slane %v3296, 2
    %v3298 = vadd.f32 %v3296, %v3297
    %v3299 = vrot.slane %v3298, 1
    %v3300 = vadd.f32 %v3298, %v3299
    %v3301 = vadd.f32 %v2979, %v3291
    %v3302 = vadd.f32 %v2988, %v3300
    %v3303 = vmul.f32 %v3301, 0.005
    %v3304 = vmul.f32 %v3302, 0.005
    %v3305 = vmul.f32 %v3303, %v3303
    %v3306 = vsub.f32 %v3304, %v3305
    %v3307 = vld [vmem:[%s11] sm:$0x1]
    %v3308 = vadd.f32 %v3306, 1e-05
    %v3309 = vrsqrt.pop %v3308
    %v3310 = vmul.f32 %v3309, %v3308
    %v3311 = vmul.f32 %v3310, %v3309
    %v3312 = vmul.f32 0.5, %v3311
    %v3313 = vsub.f32 1.5, %v3312
    %v3314 = vmul.f32 %v3309, %v3313
    %vm3315 = vweird.f32 %v3308
    %vm3316 = vweird.f32 %v3309
    %vm3317 = vmor %vm3315, %vm3316
    %v3318 = vsel %vm3317, %v3309, %v3314
    %v3319 = vmul.f32 %v3307, %v3318
    %v3320 = vld [vmem:[%s12] sm:$0x1]
    %v3321 = vmul.f32 %v3303, %v3319
    %v3322 = vsub.f32 %v3320, %v3321
    %v3324 = vperm.slane %v3319, 0
    %v3325 = vld [vmem:[%s14] sm:$0xff]
    %v3326 = vld [vmem:[%s14 + $0x8] sm:$0xff]
    %v3327 = vld [vmem:[%s14 + $0x10] sm:$0xff]
    %v3328 = vld [vmem:[%s14 + $0x18] sm:$0xff]
    %v3329 = vsel %vm2969, %v3324, 0
    %3331 = vmatpush.msra.mxu0 0.0
    %3332 = vmatpush.msra.mxu0 0.0
    %3333 = vmatpush.msra.mxu0 0.0
    %3334 = vmatpush.msra.mxu0 0.0
    %3335 = vmatpush.msra.mxu0 0.0
    %3336 = vmatpush.msra.mxu0 0.0
    %3337 = vmatpush.msra.mxu0 0.0
    %3338 = vmatpush.msra.mxu0 0.0
    %3339 = vmatpush.msra.mxu0 0.0
    %3340 = vmatpush.msra.mxu0 0.0
    %3341 = vmatpush.msra.mxu0 0.0
    %3342 = vmatpush.msra.mxu0 0.0
    %3343 = vmatpush.msra.mxu0 0.0
    %3344 = vmatpush.msra.mxu0 0.0
    %3345 = vmatpush.msra.mxu0 %v3327
    %3346 = vmatpush.msra.mxu0 %v3325
    %3347 = vmatmul.f32.gmra.mxu0 %v3329
    %v3348 = vpop.f32.mrf.mxu0
    %v3349 = vadd.f32 0.0, %v3348
    %3350 = vdwg.mxu0
    %3351 = vmatpush.msra.mxu0 0.0
    %3352 = vmatpush.msra.mxu0 0.0
    %3353 = vmatpush.msra.mxu0 0.0
    %3354 = vmatpush.msra.mxu0 0.0
    %3355 = vmatpush.msra.mxu0 0.0
    %3356 = vmatpush.msra.mxu0 0.0
    %3357 = vmatpush.msra.mxu0 0.0
    %3358 = vmatpush.msra.mxu0 0.0
    %3359 = vmatpush.msra.mxu0 0.0
    %3360 = vmatpush.msra.mxu0 0.0
    %3361 = vmatpush.msra.mxu0 0.0
    %3362 = vmatpush.msra.mxu0 0.0
    %3363 = vmatpush.msra.mxu0 0.0
    %3364 = vmatpush.msra.mxu0 0.0
    %3365 = vmatpush.msra.mxu0 %v3328
    %3366 = vmatpush.msra.mxu0 %v3326
    %3367 = vmatmul.f32.gmra.mxu0 %v3329
    %v3368 = vpop.f32.mrf.mxu0
    %v3369 = vadd.f32 0.0, %v3368
    %3370 = vdwg.mxu0
    %v3372 = vperm.slane %v3322, 0
    %v3373 = vsel %vm2969, %v3372, 0
    %3375 = vmatpush.msra.mxu0 0.0
    %3376 = vmatpush.msra.mxu0 0.0
    %3377 = vmatpush.msra.mxu0 0.0
    %3378 = vmatpush.msra.mxu0 0.0
    %3379 = vmatpush.msra.mxu0 0.0
    %3380 = vmatpush.msra.mxu0 0.0
    %3381 = vmatpush.msra.mxu0 0.0
    %3382 = vmatpush.msra.mxu0 0.0
    %3383 = vmatpush.msra.mxu0 0.0
    %3384 = vmatpush.msra.mxu0 0.0
    %3385 = vmatpush.msra.mxu0 0.0
    %3386 = vmatpush.msra.mxu0 0.0
    %3387 = vmatpush.msra.mxu0 0.0
    %3388 = vmatpush.msra.mxu0 0.0
    %3389 = vmatpush.msra.mxu0 %v3327
    %3390 = vmatpush.msra.mxu0 %v3325
    %3391 = vmatmul.f32.gmra.mxu0 %v3373
    %v3392 = vpop.f32.mrf.mxu0
    %v3393 = vadd.f32 0.0, %v3392
    %3394 = vdwg.mxu0
    %3395 = vmatpush.msra.mxu0 0.0
    %3396 = vmatpush.msra.mxu0 0.0
    %3397 = vmatpush.msra.mxu0 0.0
    %3398 = vmatpush.msra.mxu0 0.0
    %3399 = vmatpush.msra.mxu0 0.0
    %3400 = vmatpush.msra.mxu0 0.0
    %3401 = vmatpush.msra.mxu0 0.0
    %3402 = vmatpush.msra.mxu0 0.0
    %3403 = vmatpush.msra.mxu0 0.0
    %3404 = vmatpush.msra.mxu0 0.0
    %3405 = vmatpush.msra.mxu0 0.0
    %3406 = vmatpush.msra.mxu0 0.0
    %3407 = vmatpush.msra.mxu0 0.0
    %3408 = vmatpush.msra.mxu0 0.0
    %3409 = vmatpush.msra.mxu0 %v3328
    %3410 = vmatpush.msra.mxu0 %v3326
    %3411 = vmatmul.f32.gmra.mxu0 %v3373
    %v3412 = vpop.f32.mrf.mxu0
    %v3413 = vadd.f32 0.0, %v3412
    %3414 = vdwg.mxu0
    %v3415 = vperm.slane %v3349, 0
    %v3416 = vperm.slane %v3369, 0
    %v3417 = vmul.f32 %v2836, %v3415
    %v3418 = vmul.f32 %v2837, %v3416
    %v3419 = vmul.f32 %v2838, %v3415
    %v3420 = vmul.f32 %v2839, %v3416
    %v3421 = vperm.slane %v3393, 0
    %v3422 = vperm.slane %v3413, 0
    %v3423 = vadd.f32 %v3417, %v3421
    %v3424 = vadd.f32 %v3418, %v3422
    %v3425 = vadd.f32 %v3419, %v3421
    %v3426 = vadd.f32 %v3420, %v3422
    %v3427 = vmax.f32 %v3423, 0.0
    %v3428 = vmax.f32 %v3424, 0.0
    %v3429 = vmax.f32 %v3425, 0.0
    %v3430 = vmax.f32 %v3426, 0.0
    %v3431 = vld [vmem:[%s15] sm:$0x1f]
    %vm3432 = vcmask 80896
    %v3434 = vsel %vm3432, %v3431, 0
    %v3437 = vsel %vm2370, %v3429, 0
    %v3440 = vsel %vm2370, %v3430, 0
    %3442 = vmatpush.msra.mxu0 0.0
    %3443 = vmatpush.msra.mxu0 0.0
    %3444 = vmatpush.msra.mxu0 0.0
    %3445 = vmatpush.msra.mxu0 0.0
    %3446 = vmatpush.msra.mxu0 0.0
    %3447 = vmatpush.msra.mxu0 0.0
    %3448 = vmatpush.msra.mxu0 0.0
    %3449 = vmatpush.msra.mxu0 0.0
    %3450 = vmatpush.msra.mxu0 0.0
    %3451 = vmatpush.msra.mxu0 0.0
    %3452 = vmatpush.msra.mxu0 0.0
    %3453 = vmatpush.msra.mxu0 0.0
    %3454 = vmatpush.msra.mxu0 0.0
    %3455 = vmatpush.msra.mxu0 0.0
    %3456 = vmatpush.msra.mxu0 %v3437
    %3457 = vmatpush.msra.mxu0 %v3427
    %3458 = vmatmul.f32.gmra.mxu0 %v3434
    %v3459 = vpop.f32.mrf.mxu0
    %v3460 = vadd.f32 0.0, %v3459
    %3461 = vdwg.mxu0
    %3462 = vmatpush.msra.mxu0 0.0
    %3463 = vmatpush.msra.mxu0 0.0
    %3464 = vmatpush.msra.mxu0 0.0
    %3465 = vmatpush.msra.mxu0 0.0
    %3466 = vmatpush.msra.mxu0 0.0
    %3467 = vmatpush.msra.mxu0 0.0
    %3468 = vmatpush.msra.mxu0 0.0
    %3469 = vmatpush.msra.mxu0 0.0
    %3470 = vmatpush.msra.mxu0 0.0
    %3471 = vmatpush.msra.mxu0 0.0
    %3472 = vmatpush.msra.mxu0 0.0
    %3473 = vmatpush.msra.mxu0 0.0
    %3474 = vmatpush.msra.mxu0 0.0
    %3475 = vmatpush.msra.mxu0 0.0
    %3476 = vmatpush.msra.mxu0 %v3440
    %3477 = vmatpush.msra.mxu0 %v3428
    %3478 = vmatmul.f32.gmra.mxu0 %v3434
    %v3479 = vpop.f32.mrf.mxu0
    %v3480 = vadd.f32 0.0, %v3479
    %3481 = vdwg.mxu0
    %v3482 = vld [vmem:[%s16] sm:$0xff]
    %v3483 = vld [vmem:[%s16 + $0x8] sm:$0xff]
    %v3484 = vld [vmem:[%s16 + $0x10] sm:$0xff]
    %v3485 = vld [vmem:[%s16 + $0x18] sm:$0xff]
    %v3486 = vld [vmem:[%s16 + $0x20] sm:$0xff]
    %v3487 = vld [vmem:[%s16 + $0x28] sm:$0xff]
    %v3488 = vld [vmem:[%s16 + $0x30] sm:$0xff]
    %v3489 = vld [vmem:[%s16 + $0x38] sm:$0xff]
    %v3490 = vld [vmem:[%s16 + $0x40] sm:$0xff]
    %v3491 = vld [vmem:[%s16 + $0x48] sm:$0xff]
    %v3492 = vld [vmem:[%s16 + $0x50] sm:$0xff]
    %v3493 = vld [vmem:[%s16 + $0x58] sm:$0xff]
    %v3494 = vld [vmem:[%s16 + $0x60] sm:$0xff]
    %v3495 = vld [vmem:[%s16 + $0x68] sm:$0xff]
    %v3496 = vld [vmem:[%s16 + $0x70] sm:$0xff]
    %v3497 = vld [vmem:[%s16 + $0x78] sm:$0xff]
    %v3498 = vld [vmem:[%s16 + $0x80] sm:$0xff]
    %v3499 = vld [vmem:[%s16 + $0x88] sm:$0xff]
    %v3500 = vld [vmem:[%s16 + $0x90] sm:$0xff]
    %v3501 = vld [vmem:[%s16 + $0x98] sm:$0xff]
    %v3503 = vsel %vm2860, %v3480, 0
    %3505 = vmatpush.msra.mxu0 %v3497
    %3506 = vmatpush.msra.mxu0 %v3496
    %3507 = vmatpush.msra.mxu0 %v3495
    %3508 = vmatpush.msra.mxu0 %v3494
    %3509 = vmatpush.msra.mxu0 %v3493
    %3510 = vmatpush.msra.mxu0 %v3492
    %3511 = vmatpush.msra.mxu0 %v3491
    %3512 = vmatpush.msra.mxu0 %v3490
    %3513 = vmatpush.msra.mxu0 %v3489
    %3514 = vmatpush.msra.mxu0 %v3488
    %3515 = vmatpush.msra.mxu0 %v3487
    %3516 = vmatpush.msra.mxu0 %v3486
    %3517 = vmatpush.msra.mxu0 %v3485
    %3518 = vmatpush.msra.mxu0 %v3484
    %3519 = vmatpush.msra.mxu0 %v3483
    %3520 = vmatpush.msra.mxu0 %v3482
    %3521 = vmatmul.f32.gmra.mxu0 %v3460
    %v3522 = vpop.f32.mrf.mxu0
    %v3523 = vadd.f32 0.0, %v3522
    %3524 = vdwg.mxu0
    %3525 = vmatpush.msra.mxu0 0.0
    %3526 = vmatpush.msra.mxu0 0.0
    %3527 = vmatpush.msra.mxu0 0.0
    %3528 = vmatpush.msra.mxu0 0.0
    %3529 = vmatpush.msra.mxu0 0.0
    %3530 = vmatpush.msra.mxu0 0.0
    %3531 = vmatpush.msra.mxu0 0.0
    %3532 = vmatpush.msra.mxu0 0.0
    %3533 = vmatpush.msra.mxu0 0.0
    %3534 = vmatpush.msra.mxu0 0.0
    %3535 = vmatpush.msra.mxu0 0.0
    %3536 = vmatpush.msra.mxu0 0.0
    %3537 = vmatpush.msra.mxu0 %v3501
    %3538 = vmatpush.msra.mxu0 %v3500
    %3539 = vmatpush.msra.mxu0 %v3499
    %3540 = vmatpush.msra.mxu0 %v3498
    %3541 = vmatmul.f32.gmra.mxu0 %v3503
    %v3542 = vpop.f32.mrf.mxu0
    %v3543 = vadd.f32 %v3523, %v3542
    %3544 = vdwg.mxu0
    %s3545 = scalar_lea.vmem %s16, 160
    %v3546 = vld [vmem:[%s3545] sm:$0xff]
    %v3547 = vld [vmem:[%s3545 + $0x8] sm:$0xff]
    %v3548 = vld [vmem:[%s3545 + $0x10] sm:$0xff]
    %v3549 = vld [vmem:[%s3545 + $0x18] sm:$0xff]
    %v3550 = vld [vmem:[%s3545 + $0x20] sm:$0xff]
    %v3551 = vld [vmem:[%s3545 + $0x28] sm:$0xff]
    %v3552 = vld [vmem:[%s3545 + $0x30] sm:$0xff]
    %v3553 = vld [vmem:[%s3545 + $0x38] sm:$0xff]
    %v3554 = vld [vmem:[%s3545 + $0x40] sm:$0xff]
    %v3555 = vld [vmem:[%s3545 + $0x48] sm:$0xff]
    %v3556 = vld [vmem:[%s3545 + $0x50] sm:$0xff]
    %v3557 = vld [vmem:[%s3545 + $0x58] sm:$0xff]
    %v3558 = vld [vmem:[%s3545 + $0x60] sm:$0xff]
    %v3559 = vld [vmem:[%s3545 + $0x68] sm:$0xff]
    %v3560 = vld [vmem:[%s3545 + $0x70] sm:$0xff]
    %v3561 = vld [vmem:[%s3545 + $0x78] sm:$0xff]
    %v3562 = vld [vmem:[%s3545 + $0x80] sm:$0xff]
    %v3563 = vld [vmem:[%s3545 + $0x88] sm:$0xff]
    %v3564 = vld [vmem:[%s3545 + $0x90] sm:$0xff]
    %v3565 = vld [vmem:[%s3545 + $0x98] sm:$0xff]
    %3566 = vmatpush.msra.mxu0 %v3561
    %3567 = vmatpush.msra.mxu0 %v3560
    %3568 = vmatpush.msra.mxu0 %v3559
    %3569 = vmatpush.msra.mxu0 %v3558
    %3570 = vmatpush.msra.mxu0 %v3557
    %3571 = vmatpush.msra.mxu0 %v3556
    %3572 = vmatpush.msra.mxu0 %v3555
    %3573 = vmatpush.msra.mxu0 %v3554
    %3574 = vmatpush.msra.mxu0 %v3553
    %3575 = vmatpush.msra.mxu0 %v3552
    %3576 = vmatpush.msra.mxu0 %v3551
    %3577 = vmatpush.msra.mxu0 %v3550
    %3578 = vmatpush.msra.mxu0 %v3549
    %3579 = vmatpush.msra.mxu0 %v3548
    %3580 = vmatpush.msra.mxu0 %v3547
    %3581 = vmatpush.msra.mxu0 %v3546
    %3582 = vmatmul.f32.gmra.mxu0 %v3460
    %v3583 = vpop.f32.mrf.mxu0
    %v3584 = vadd.f32 0.0, %v3583
    %3585 = vdwg.mxu0
    %3586 = vmatpush.msra.mxu0 0.0
    %3587 = vmatpush.msra.mxu0 0.0
    %3588 = vmatpush.msra.mxu0 0.0
    %3589 = vmatpush.msra.mxu0 0.0
    %3590 = vmatpush.msra.mxu0 0.0
    %3591 = vmatpush.msra.mxu0 0.0
    %3592 = vmatpush.msra.mxu0 0.0
    %3593 = vmatpush.msra.mxu0 0.0
    %3594 = vmatpush.msra.mxu0 0.0
    %3595 = vmatpush.msra.mxu0 0.0
    %3596 = vmatpush.msra.mxu0 0.0
    %3597 = vmatpush.msra.mxu0 0.0
    %3598 = vmatpush.msra.mxu0 %v3565
    %3599 = vmatpush.msra.mxu0 %v3564
    %3600 = vmatpush.msra.mxu0 %v3563
    %3601 = vmatpush.msra.mxu0 %v3562
    %3602 = vmatmul.f32.gmra.mxu0 %v3503
    %v3603 = vpop.f32.mrf.mxu0
    %v3604 = vadd.f32 %v3584, %v3603
    %3605 = vdwg.mxu0
    %v3606 = vmax.f32 %v3543, %v3604
    %s3607 = scalar_lea.vmem %s15, 8
    %v3608 = vld [vmem:[%s3607] sm:$0x1f]
    %v3610 = vsel %vm3432, %v3608, 0
    %3612 = vmatpush.msra.mxu0 0.0
    %3613 = vmatpush.msra.mxu0 0.0
    %3614 = vmatpush.msra.mxu0 0.0
    %3615 = vmatpush.msra.mxu0 0.0
    %3616 = vmatpush.msra.mxu0 0.0
    %3617 = vmatpush.msra.mxu0 0.0
    %3618 = vmatpush.msra.mxu0 0.0
    %3619 = vmatpush.msra.mxu0 0.0
    %3620 = vmatpush.msra.mxu0 0.0
    %3621 = vmatpush.msra.mxu0 0.0
    %3622 = vmatpush.msra.mxu0 0.0
    %3623 = vmatpush.msra.mxu0 0.0
    %3624 = vmatpush.msra.mxu0 0.0
    %3625 = vmatpush.msra.mxu0 0.0
    %3626 = vmatpush.msra.mxu0 %v3437
    %3627 = vmatpush.msra.mxu0 %v3427
    %3628 = vmatmul.f32.gmra.mxu0 %v3610
    %v3629 = vpop.f32.mrf.mxu0
    %v3630 = vadd.f32 0.0, %v3629
    %3631 = vdwg.mxu0
    %3632 = vmatpush.msra.mxu0 0.0
    %3633 = vmatpush.msra.mxu0 0.0
    %3634 = vmatpush.msra.mxu0 0.0
    %3635 = vmatpush.msra.mxu0 0.0
    %3636 = vmatpush.msra.mxu0 0.0
    %3637 = vmatpush.msra.mxu0 0.0
    %3638 = vmatpush.msra.mxu0 0.0
    %3639 = vmatpush.msra.mxu0 0.0
    %3640 = vmatpush.msra.mxu0 0.0
    %3641 = vmatpush.msra.mxu0 0.0
    %3642 = vmatpush.msra.mxu0 0.0
    %3643 = vmatpush.msra.mxu0 0.0
    %3644 = vmatpush.msra.mxu0 0.0
    %3645 = vmatpush.msra.mxu0 0.0
    %3646 = vmatpush.msra.mxu0 %v3440
    %3647 = vmatpush.msra.mxu0 %v3428
    %3648 = vmatmul.f32.gmra.mxu0 %v3610
    %v3649 = vpop.f32.mrf.mxu0
    %v3650 = vadd.f32 0.0, %v3649
    %3651 = vdwg.mxu0
    %v3653 = vsel %vm2860, %v3650, 0
    %3655 = vmatpush.msra.mxu0 %v3497
    %3656 = vmatpush.msra.mxu0 %v3496
    %3657 = vmatpush.msra.mxu0 %v3495
    %3658 = vmatpush.msra.mxu0 %v3494
    %3659 = vmatpush.msra.mxu0 %v3493
    %3660 = vmatpush.msra.mxu0 %v3492
    %3661 = vmatpush.msra.mxu0 %v3491
    %3662 = vmatpush.msra.mxu0 %v3490
    %3663 = vmatpush.msra.mxu0 %v3489
    %3664 = vmatpush.msra.mxu0 %v3488
    %3665 = vmatpush.msra.mxu0 %v3487
    %3666 = vmatpush.msra.mxu0 %v3486
    %3667 = vmatpush.msra.mxu0 %v3485
    %3668 = vmatpush.msra.mxu0 %v3484
    %3669 = vmatpush.msra.mxu0 %v3483
    %3670 = vmatpush.msra.mxu0 %v3482
    %3671 = vmatmul.f32.gmra.mxu0 %v3630
    %v3672 = vpop.f32.mrf.mxu0
    %v3673 = vadd.f32 0.0, %v3672
    %3674 = vdwg.mxu0
    %3675 = vmatpush.msra.mxu0 0.0
    %3676 = vmatpush.msra.mxu0 0.0
    %3677 = vmatpush.msra.mxu0 0.0
    %3678 = vmatpush.msra.mxu0 0.0
    %3679 = vmatpush.msra.mxu0 0.0
    %3680 = vmatpush.msra.mxu0 0.0
    %3681 = vmatpush.msra.mxu0 0.0
    %3682 = vmatpush.msra.mxu0 0.0
    %3683 = vmatpush.msra.mxu0 0.0
    %3684 = vmatpush.msra.mxu0 0.0
    %3685 = vmatpush.msra.mxu0 0.0
    %3686 = vmatpush.msra.mxu0 0.0
    %3687 = vmatpush.msra.mxu0 %v3501
    %3688 = vmatpush.msra.mxu0 %v3500
    %3689 = vmatpush.msra.mxu0 %v3499
    %3690 = vmatpush.msra.mxu0 %v3498
    %3691 = vmatmul.f32.gmra.mxu0 %v3653
    %v3692 = vpop.f32.mrf.mxu0
    %v3693 = vadd.f32 %v3673, %v3692
    %3694 = vdwg.mxu0
    %v3695 = vmax.f32 %v3606, %v3693
    %3696 = vmatpush.msra.mxu0 %v3561
    %3697 = vmatpush.msra.mxu0 %v3560
    %3698 = vmatpush.msra.mxu0 %v3559
    %3699 = vmatpush.msra.mxu0 %v3558
    %3700 = vmatpush.msra.mxu0 %v3557
    %3701 = vmatpush.msra.mxu0 %v3556
    %3702 = vmatpush.msra.mxu0 %v3555
    %3703 = vmatpush.msra.mxu0 %v3554
    %3704 = vmatpush.msra.mxu0 %v3553
    %3705 = vmatpush.msra.mxu0 %v3552
    %3706 = vmatpush.msra.mxu0 %v3551
    %3707 = vmatpush.msra.mxu0 %v3550
    %3708 = vmatpush.msra.mxu0 %v3549
    %3709 = vmatpush.msra.mxu0 %v3548
    %3710 = vmatpush.msra.mxu0 %v3547
    %3711 = vmatpush.msra.mxu0 %v3546
    %3712 = vmatmul.f32.gmra.mxu0 %v3630
    %v3713 = vpop.f32.mrf.mxu0
    %v3714 = vadd.f32 0.0, %v3713
    %3715 = vdwg.mxu0
    %3716 = vmatpush.msra.mxu0 0.0
    %3717 = vmatpush.msra.mxu0 0.0
    %3718 = vmatpush.msra.mxu0 0.0
    %3719 = vmatpush.msra.mxu0 0.0
    %3720 = vmatpush.msra.mxu0 0.0
    %3721 = vmatpush.msra.mxu0 0.0
    %3722 = vmatpush.msra.mxu0 0.0
    %3723 = vmatpush.msra.mxu0 0.0
    %3724 = vmatpush.msra.mxu0 0.0
    %3725 = vmatpush.msra.mxu0 0.0
    %3726 = vmatpush.msra.mxu0 0.0
    %3727 = vmatpush.msra.mxu0 0.0
    %3728 = vmatpush.msra.mxu0 %v3565
    %3729 = vmatpush.msra.mxu0 %v3564
    %3730 = vmatpush.msra.mxu0 %v3563
    %3731 = vmatpush.msra.mxu0 %v3562
    %3732 = vmatmul.f32.gmra.mxu0 %v3653
    %v3733 = vpop.f32.mrf.mxu0
    %v3734 = vadd.f32 %v3714, %v3733
    %3735 = vdwg.mxu0
    %v3736 = vmax.f32 %v3695, %v3734
    %vm3737 = vcmask 651264
    %3738 = vst.msk [vmem:[#allocation3] sm:$0x1f] %vm3737, %v3736
    %v3739 = vmul.f32 %v3171, %v3415
    %v3740 = vmul.f32 %v3172, %v3416
    %v3741 = vmul.f32 %v3173, %v3415
    %v3742 = vmul.f32 %v3174, %v3416
    %v3743 = vadd.f32 %v3739, %v3421
    %v3744 = vadd.f32 %v3740, %v3422
    %v3745 = vadd.f32 %v3741, %v3421
    %v3746 = vadd.f32 %v3742, %v3422
    %v3747 = vmax.f32 %v3743, 0.0
    %v3748 = vmax.f32 %v3744, 0.0
    %v3749 = vmax.f32 %v3745, 0.0
    %v3750 = vmax.f32 %v3746, 0.0
    %v3751 = vld [vmem:[%s15] sm:$0x1f]
    %v3753 = vsel %vm3432, %v3751, 0
    %v3756 = vsel %vm2370, %v3749, 0
    %v3759 = vsel %vm2370, %v3750, 0
    %3761 = vmatpush.msra.mxu0 0.0
    %3762 = vmatpush.msra.mxu0 0.0
    %3763 = vmatpush.msra.mxu0 0.0
    %3764 = vmatpush.msra.mxu0 0.0
    %3765 = vmatpush.msra.mxu0 0.0
    %3766 = vmatpush.msra.mxu0 0.0
    %3767 = vmatpush.msra.mxu0 0.0
    %3768 = vmatpush.msra.mxu0 0.0
    %3769 = vmatpush.msra.mxu0 0.0
    %3770 = vmatpush.msra.mxu0 0.0
    %3771 = vmatpush.msra.mxu0 0.0
    %3772 = vmatpush.msra.mxu0 0.0
    %3773 = vmatpush.msra.mxu0 0.0
    %3774 = vmatpush.msra.mxu0 0.0
    %3775 = vmatpush.msra.mxu0 %v3756
    %3776 = vmatpush.msra.mxu0 %v3747
    %3777 = vmatmul.f32.gmra.mxu0 %v3753
    %v3778 = vpop.f32.mrf.mxu0
    %v3779 = vadd.f32 0.0, %v3778
    %3780 = vdwg.mxu0
    %3781 = vmatpush.msra.mxu0 0.0
    %3782 = vmatpush.msra.mxu0 0.0
    %3783 = vmatpush.msra.mxu0 0.0
    %3784 = vmatpush.msra.mxu0 0.0
    %3785 = vmatpush.msra.mxu0 0.0
    %3786 = vmatpush.msra.mxu0 0.0
    %3787 = vmatpush.msra.mxu0 0.0
    %3788 = vmatpush.msra.mxu0 0.0
    %3789 = vmatpush.msra.mxu0 0.0
    %3790 = vmatpush.msra.mxu0 0.0
    %3791 = vmatpush.msra.mxu0 0.0
    %3792 = vmatpush.msra.mxu0 0.0
    %3793 = vmatpush.msra.mxu0 0.0
    %3794 = vmatpush.msra.mxu0 0.0
    %3795 = vmatpush.msra.mxu0 %v3759
    %3796 = vmatpush.msra.mxu0 %v3748
    %3797 = vmatmul.f32.gmra.mxu0 %v3753
    %v3798 = vpop.f32.mrf.mxu0
    %v3799 = vadd.f32 0.0, %v3798
    %3800 = vdwg.mxu0
    %v3801 = vld [vmem:[%s16] sm:$0xff]
    %v3802 = vld [vmem:[%s16 + $0x8] sm:$0xff]
    %v3803 = vld [vmem:[%s16 + $0x10] sm:$0xff]
    %v3804 = vld [vmem:[%s16 + $0x18] sm:$0xff]
    %v3805 = vld [vmem:[%s16 + $0x20] sm:$0xff]
    %v3806 = vld [vmem:[%s16 + $0x28] sm:$0xff]
    %v3807 = vld [vmem:[%s16 + $0x30] sm:$0xff]
    %v3808 = vld [vmem:[%s16 + $0x38] sm:$0xff]
    %v3809 = vld [vmem:[%s16 + $0x40] sm:$0xff]
    %v3810 = vld [vmem:[%s16 + $0x48] sm:$0xff]
    %v3811 = vld [vmem:[%s16 + $0x50] sm:$0xff]
    %v3812 = vld [vmem:[%s16 + $0x58] sm:$0xff]
    %v3813 = vld [vmem:[%s16 + $0x60] sm:$0xff]
    %v3814 = vld [vmem:[%s16 + $0x68] sm:$0xff]
    %v3815 = vld [vmem:[%s16 + $0x70] sm:$0xff]
    %v3816 = vld [vmem:[%s16 + $0x78] sm:$0xff]
    %v3817 = vld [vmem:[%s16 + $0x80] sm:$0xff]
    %v3818 = vld [vmem:[%s16 + $0x88] sm:$0xff]
    %v3819 = vld [vmem:[%s16 + $0x90] sm:$0xff]
    %v3820 = vld [vmem:[%s16 + $0x98] sm:$0xff]
    %v3822 = vsel %vm2860, %v3799, 0
    %3824 = vmatpush.msra.mxu0 %v3816
    %3825 = vmatpush.msra.mxu0 %v3815
    %3826 = vmatpush.msra.mxu0 %v3814
    %3827 = vmatpush.msra.mxu0 %v3813
    %3828 = vmatpush.msra.mxu0 %v3812
    %3829 = vmatpush.msra.mxu0 %v3811
    %3830 = vmatpush.msra.mxu0 %v3810
    %3831 = vmatpush.msra.mxu0 %v3809
    %3832 = vmatpush.msra.mxu0 %v3808
    %3833 = vmatpush.msra.mxu0 %v3807
    %3834 = vmatpush.msra.mxu0 %v3806
    %3835 = vmatpush.msra.mxu0 %v3805
    %3836 = vmatpush.msra.mxu0 %v3804
    %3837 = vmatpush.msra.mxu0 %v3803
    %3838 = vmatpush.msra.mxu0 %v3802
    %3839 = vmatpush.msra.mxu0 %v3801
    %3840 = vmatmul.f32.gmra.mxu0 %v3779
    %v3841 = vpop.f32.mrf.mxu0
    %v3842 = vadd.f32 0.0, %v3841
    %3843 = vdwg.mxu0
    %3844 = vmatpush.msra.mxu0 0.0
    %3845 = vmatpush.msra.mxu0 0.0
    %3846 = vmatpush.msra.mxu0 0.0
    %3847 = vmatpush.msra.mxu0 0.0
    %3848 = vmatpush.msra.mxu0 0.0
    %3849 = vmatpush.msra.mxu0 0.0
    %3850 = vmatpush.msra.mxu0 0.0
    %3851 = vmatpush.msra.mxu0 0.0
    %3852 = vmatpush.msra.mxu0 0.0
    %3853 = vmatpush.msra.mxu0 0.0
    %3854 = vmatpush.msra.mxu0 0.0
    %3855 = vmatpush.msra.mxu0 0.0
    %3856 = vmatpush.msra.mxu0 %v3820
    %3857 = vmatpush.msra.mxu0 %v3819
    %3858 = vmatpush.msra.mxu0 %v3818
    %3859 = vmatpush.msra.mxu0 %v3817
    %3860 = vmatmul.f32.gmra.mxu0 %v3822
    %v3861 = vpop.f32.mrf.mxu0
    %v3862 = vadd.f32 %v3842, %v3861
    %3863 = vdwg.mxu0
    %v3864 = vld [vmem:[%s3545] sm:$0xff]
    %v3865 = vld [vmem:[%s3545 + $0x8] sm:$0xff]
    %v3866 = vld [vmem:[%s3545 + $0x10] sm:$0xff]
    %v3867 = vld [vmem:[%s3545 + $0x18] sm:$0xff]
    %v3868 = vld [vmem:[%s3545 + $0x20] sm:$0xff]
    %v3869 = vld [vmem:[%s3545 + $0x28] sm:$0xff]
    %v3870 = vld [vmem:[%s3545 + $0x30] sm:$0xff]
    %v3871 = vld [vmem:[%s3545 + $0x38] sm:$0xff]
    %v3872 = vld [vmem:[%s3545 + $0x40] sm:$0xff]
    %v3873 = vld [vmem:[%s3545 + $0x48] sm:$0xff]
    %v3874 = vld [vmem:[%s3545 + $0x50] sm:$0xff]
    %v3875 = vld [vmem:[%s3545 + $0x58] sm:$0xff]
    %v3876 = vld [vmem:[%s3545 + $0x60] sm:$0xff]
    %v3877 = vld [vmem:[%s3545 + $0x68] sm:$0xff]
    %v3878 = vld [vmem:[%s3545 + $0x70] sm:$0xff]
    %v3879 = vld [vmem:[%s3545 + $0x78] sm:$0xff]
    %v3880 = vld [vmem:[%s3545 + $0x80] sm:$0xff]
    %v3881 = vld [vmem:[%s3545 + $0x88] sm:$0xff]
    %v3882 = vld [vmem:[%s3545 + $0x90] sm:$0xff]
    %v3883 = vld [vmem:[%s3545 + $0x98] sm:$0xff]
    %3884 = vmatpush.msra.mxu0 %v3879
    %3885 = vmatpush.msra.mxu0 %v3878
    %3886 = vmatpush.msra.mxu0 %v3877
    %3887 = vmatpush.msra.mxu0 %v3876
    %3888 = vmatpush.msra.mxu0 %v3875
    %3889 = vmatpush.msra.mxu0 %v3874
    %3890 = vmatpush.msra.mxu0 %v3873
    %3891 = vmatpush.msra.mxu0 %v3872
    %3892 = vmatpush.msra.mxu0 %v3871
    %3893 = vmatpush.msra.mxu0 %v3870
    %3894 = vmatpush.msra.mxu0 %v3869
    %3895 = vmatpush.msra.mxu0 %v3868
    %3896 = vmatpush.msra.mxu0 %v3867
    %3897 = vmatpush.msra.mxu0 %v3866
    %3898 = vmatpush.msra.mxu0 %v3865
    %3899 = vmatpush.msra.mxu0 %v3864
    %3900 = vmatmul.f32.gmra.mxu0 %v3779
    %v3901 = vpop.f32.mrf.mxu0
    %v3902 = vadd.f32 0.0, %v3901
    %3903 = vdwg.mxu0
    %3904 = vmatpush.msra.mxu0 0.0
    %3905 = vmatpush.msra.mxu0 0.0
    %3906 = vmatpush.msra.mxu0 0.0
    %3907 = vmatpush.msra.mxu0 0.0
    %3908 = vmatpush.msra.mxu0 0.0
    %3909 = vmatpush.msra.mxu0 0.0
    %3910 = vmatpush.msra.mxu0 0.0
    %3911 = vmatpush.msra.mxu0 0.0
    %3912 = vmatpush.msra.mxu0 0.0
    %3913 = vmatpush.msra.mxu0 0.0
    %3914 = vmatpush.msra.mxu0 0.0
    %3915 = vmatpush.msra.mxu0 0.0
    %3916 = vmatpush.msra.mxu0 %v3883
    %3917 = vmatpush.msra.mxu0 %v3882
    %3918 = vmatpush.msra.mxu0 %v3881
    %3919 = vmatpush.msra.mxu0 %v3880
    %3920 = vmatmul.f32.gmra.mxu0 %v3822
    %v3921 = vpop.f32.mrf.mxu0
    %v3922 = vadd.f32 %v3902, %v3921
    %3923 = vdwg.mxu0
    %v3924 = vmax.f32 %v3862, %v3922
    %v3925 = vld [vmem:[%s3607] sm:$0x1f]
    %v3927 = vsel %vm3432, %v3925, 0
    %3929 = vmatpush.msra.mxu0 0.0
    %3930 = vmatpush.msra.mxu0 0.0
    %3931 = vmatpush.msra.mxu0 0.0
    %3932 = vmatpush.msra.mxu0 0.0
    %3933 = vmatpush.msra.mxu0 0.0
    %3934 = vmatpush.msra.mxu0 0.0
    %3935 = vmatpush.msra.mxu0 0.0
    %3936 = vmatpush.msra.mxu0 0.0
    %3937 = vmatpush.msra.mxu0 0.0
    %3938 = vmatpush.msra.mxu0 0.0
    %3939 = vmatpush.msra.mxu0 0.0
    %3940 = vmatpush.msra.mxu0 0.0
    %3941 = vmatpush.msra.mxu0 0.0
    %3942 = vmatpush.msra.mxu0 0.0
    %3943 = vmatpush.msra.mxu0 %v3756
    %3944 = vmatpush.msra.mxu0 %v3747
    %3945 = vmatmul.f32.gmra.mxu0 %v3927
    %v3946 = vpop.f32.mrf.mxu0
    %v3947 = vadd.f32 0.0, %v3946
    %3948 = vdwg.mxu0
    %3949 = vmatpush.msra.mxu0 0.0
    %3950 = vmatpush.msra.mxu0 0.0
    %3951 = vmatpush.msra.mxu0 0.0
    %3952 = vmatpush.msra.mxu0 0.0
    %3953 = vmatpush.msra.mxu0 0.0
    %3954 = vmatpush.msra.mxu0 0.0
    %3955 = vmatpush.msra.mxu0 0.0
    %3956 = vmatpush.msra.mxu0 0.0
    %3957 = vmatpush.msra.mxu0 0.0
    %3958 = vmatpush.msra.mxu0 0.0
    %3959 = vmatpush.msra.mxu0 0.0
    %3960 = vmatpush.msra.mxu0 0.0
    %3961 = vmatpush.msra.mxu0 0.0
    %3962 = vmatpush.msra.mxu0 0.0
    %3963 = vmatpush.msra.mxu0 %v3759
    %3964 = vmatpush.msra.mxu0 %v3748
    %3965 = vmatmul.f32.gmra.mxu0 %v3927
    %v3966 = vpop.f32.mrf.mxu0
    %v3967 = vadd.f32 0.0, %v3966
    %3968 = vdwg.mxu0
    %v3970 = vsel %vm2860, %v3967, 0
    %3972 = vmatpush.msra.mxu0 %v3816
    %3973 = vmatpush.msra.mxu0 %v3815
    %3974 = vmatpush.msra.mxu0 %v3814
    %3975 = vmatpush.msra.mxu0 %v3813
    %3976 = vmatpush.msra.mxu0 %v3812
    %3977 = vmatpush.msra.mxu0 %v3811
    %3978 = vmatpush.msra.mxu0 %v3810
    %3979 = vmatpush.msra.mxu0 %v3809
    %3980 = vmatpush.msra.mxu0 %v3808
    %3981 = vmatpush.msra.mxu0 %v3807
    %3982 = vmatpush.msra.mxu0 %v3806
    %3983 = vmatpush.msra.mxu0 %v3805
    %3984 = vmatpush.msra.mxu0 %v3804
    %3985 = vmatpush.msra.mxu0 %v3803
    %3986 = vmatpush.msra.mxu0 %v3802
    %3987 = vmatpush.msra.mxu0 %v3801
    %3988 = vmatmul.f32.gmra.mxu0 %v3947
    %v3989 = vpop.f32.mrf.mxu0
    %v3990 = vadd.f32 0.0, %v3989
    %3991 = vdwg.mxu0
    %3992 = vmatpush.msra.mxu0 0.0
    %3993 = vmatpush.msra.mxu0 0.0
    %3994 = vmatpush.msra.mxu0 0.0
    %3995 = vmatpush.msra.mxu0 0.0
    %3996 = vmatpush.msra.mxu0 0.0
    %3997 = vmatpush.msra.mxu0 0.0
    %3998 = vmatpush.msra.mxu0 0.0
    %3999 = vmatpush.msra.mxu0 0.0
    %4000 = vmatpush.msra.mxu0 0.0
    %4001 = vmatpush.msra.mxu0 0.0
    %4002 = vmatpush.msra.mxu0 0.0
    %4003 = vmatpush.msra.mxu0 0.0
    %4004 = vmatpush.msra.mxu0 %v3820
    %4005 = vmatpush.msra.mxu0 %v3819
    %4006 = vmatpush.msra.mxu0 %v3818
    %4007 = vmatpush.msra.mxu0 %v3817
    %4008 = vmatmul.f32.gmra.mxu0 %v3970
    %v4009 = vpop.f32.mrf.mxu0
    %v4010 = vadd.f32 %v3990, %v4009
    %4011 = vdwg.mxu0
    %v4012 = vmax.f32 %v3924, %v4010
    %4013 = vmatpush.msra.mxu0 %v3879
    %4014 = vmatpush.msra.mxu0 %v3878
    %4015 = vmatpush.msra.mxu0 %v3877
    %4016 = vmatpush.msra.mxu0 %v3876
    %4017 = vmatpush.msra.mxu0 %v3875
    %4018 = vmatpush.msra.mxu0 %v3874
    %4019 = vmatpush.msra.mxu0 %v3873
    %4020 = vmatpush.msra.mxu0 %v3872
    %4021 = vmatpush.msra.mxu0 %v3871
    %4022 = vmatpush.msra.mxu0 %v3870
    %4023 = vmatpush.msra.mxu0 %v3869
    %4024 = vmatpush.msra.mxu0 %v3868
    %4025 = vmatpush.msra.mxu0 %v3867
    %4026 = vmatpush.msra.mxu0 %v3866
    %4027 = vmatpush.msra.mxu0 %v3865
    %4028 = vmatpush.msra.mxu0 %v3864
    %4029 = vmatmul.f32.gmra.mxu0 %v3947
    %v4030 = vpop.f32.mrf.mxu0
    %v4031 = vadd.f32 0.0, %v4030
    %4032 = vdwg.mxu0
    %4033 = vmatpush.msra.mxu0 0.0
    %4034 = vmatpush.msra.mxu0 0.0
    %4035 = vmatpush.msra.mxu0 0.0
    %4036 = vmatpush.msra.mxu0 0.0
    %4037 = vmatpush.msra.mxu0 0.0
    %4038 = vmatpush.msra.mxu0 0.0
    %4039 = vmatpush.msra.mxu0 0.0
    %4040 = vmatpush.msra.mxu0 0.0
    %4041 = vmatpush.msra.mxu0 0.0
    %4042 = vmatpush.msra.mxu0 0.0
    %4043 = vmatpush.msra.mxu0 0.0
    %4044 = vmatpush.msra.mxu0 0.0
    %4045 = vmatpush.msra.mxu0 %v3883
    %4046 = vmatpush.msra.mxu0 %v3882
    %4047 = vmatpush.msra.mxu0 %v3881
    %4048 = vmatpush.msra.mxu0 %v3880
    %4049 = vmatmul.f32.gmra.mxu0 %v3970
    %v4050 = vpop.f32.mrf.mxu0
    %v4051 = vadd.f32 %v4031, %v4050
    %4052 = vdwg.mxu0
    %v4053 = vmax.f32 %v4012, %v4051
    %4054 = vst.msk [vmem:[#allocation3 + $0x5] sm:$0x1f] %vm3737, %v4053
    %v4055 = vld [vmem:[#allocation3] sm:$0xff]
    %v4056 = vld [vmem:[#allocation3 + $0x8] sm:$0x3]
    %v4057 = vld [vmem:[%s17] sm:$0x3]
    %v4059 = vsel %vm3432, %v4057, 0
    %v4062 = vsel %vm2370, %v4056, 0
    %4064 = vmatpush.msra.mxu0 0.0
    %4065 = vmatpush.msra.mxu0 0.0
    %4066 = vmatpush.msra.mxu0 0.0
    %4067 = vmatpush.msra.mxu0 0.0
    %4068 = vmatpush.msra.mxu0 0.0
    %4069 = vmatpush.msra.mxu0 0.0
    %4070 = vmatpush.msra.mxu0 0.0
    %4071 = vmatpush.msra.mxu0 0.0
    %4072 = vmatpush.msra.mxu0 0.0
    %4073 = vmatpush.msra.mxu0 0.0
    %4074 = vmatpush.msra.mxu0 0.0
    %4075 = vmatpush.msra.mxu0 0.0
    %4076 = vmatpush.msra.mxu0 0.0
    %4077 = vmatpush.msra.mxu0 0.0
    %4078 = vmatpush.msra.mxu0 %v4062
    %4079 = vmatpush.msra.mxu0 %v4055
    %4080 = vmatmul.f32.gmra.mxu0 %v4059
    %v4081 = vpop.f32.mrf.mxu0
    %v4082 = vadd.f32 0.0, %v4081
    %4083 = vdwg.mxu0
    %v4084 = vpack.c.bf16 %v4082, %v4082
    %v4085 = vld [vmem:[%s18] sm:$0xf]
    %v4086 = vld [vmem:[%s18 + $0x4] sm:$0xf]
    %v4087 = vld [vmem:[%s18 + $0x8] sm:$0xf]
    %v4088 = vld [vmem:[%s18 + $0xc] sm:$0xf]
    %v4089 = vld [vmem:[%s18 + $0x10] sm:$0xf]
    %v4090 = vld [vmem:[%s18 + $0x14] sm:$0xf]
    %v4091 = vld [vmem:[%s18 + $0x18] sm:$0xf]
    %v4092 = vld [vmem:[%s18 + $0x1c] sm:$0xf]
    %v4093 = vld [vmem:[%s18 + $0x20] sm:$0xf]
    %v4094 = vld [vmem:[%s18 + $0x24] sm:$0xf]
    %s4095 = scalar_lea.vmem %s17, 2
    %v4096 = vld [vmem:[%s4095] sm:$0x3]
    %v4098 = vsel %vm3432, %v4096, 0
    %4100 = vmatpush.msra.mxu0 0.0
    %4101 = vmatpush.msra.mxu0 0.0
    %4102 = vmatpush.msra.mxu0 0.0
    %4103 = vmatpush.msra.mxu0 0.0
    %4104 = vmatpush.msra.mxu0 0.0
    %4105 = vmatpush.msra.mxu0 0.0
    %4106 = vmatpush.msra.mxu0 0.0
    %4107 = vmatpush.msra.mxu0 0.0
    %4108 = vmatpush.msra.mxu0 0.0
    %4109 = vmatpush.msra.mxu0 0.0
    %4110 = vmatpush.msra.mxu0 0.0
    %4111 = vmatpush.msra.mxu0 0.0
    %4112 = vmatpush.msra.mxu0 0.0
    %4113 = vmatpush.msra.mxu0 0.0
    %4114 = vmatpush.msra.mxu0 %v4062
    %4115 = vmatpush.msra.mxu0 %v4055
    %4116 = vmatmul.f32.gmra.mxu0 %v4098
    %v4117 = vpop.f32.mrf.mxu0
    %v4118 = vadd.f32 0.0, %v4117
    %4119 = vdwg.mxu0
    %v4120 = vpack.c.bf16 %v4118, %v4118
    %s4121 = scalar_lea.vmem %s18, 40
    %v4122 = vld [vmem:[%s4121] sm:$0xf]
    %v4123 = vld [vmem:[%s4121 + $0x4] sm:$0xf]
    %v4124 = vld [vmem:[%s4121 + $0x8] sm:$0xf]
    %v4125 = vld [vmem:[%s4121 + $0xc] sm:$0xf]
    %v4126 = vld [vmem:[%s4121 + $0x10] sm:$0xf]
    %v4127 = vld [vmem:[%s4121 + $0x14] sm:$0xf]
    %v4128 = vld [vmem:[%s4121 + $0x18] sm:$0xf]
    %v4129 = vld [vmem:[%s4121 + $0x1c] sm:$0xf]
    %v4130 = vld [vmem:[%s4121 + $0x20] sm:$0xf]
    %v4131 = vld [vmem:[%s4121 + $0x24] sm:$0xf]
    %v4142 = vunpack.c.l.b16 %v4122
    %v4143 = vunpack.c.l.b16 %v4123
    %v4144 = vunpack.c.l.b16 %v4124
    %v4145 = vunpack.c.l.b16 %v4125
    %v4146 = vunpack.c.l.b16 %v4126
    %v4147 = vunpack.c.l.b16 %v4127
    %v4148 = vunpack.c.l.b16 %v4128
    %v4149 = vunpack.c.l.b16 %v4129
    %v4150 = vunpack.c.l.b16 %v4130
    %v4151 = vunpack.c.l.b16 %v4131
    %v4152 = vpack.c.b16 %v4143, %v4142
    %v4153 = vpack.c.b16 %v4145, %v4144
    %v4154 = vpack.c.b16 %v4147, %v4146
    %v4155 = vpack.c.b16 %v4149, %v4148
    %v4156 = vpack.c.b16 %v4151, %v4150
    %vm4162 = vcmask 654336
    %v4164 = vsel %vm4162, %v4120, 0
    %4166 = vmatpush.bf16.msra.mxu0 0
    %4167 = vmatpush.bf16.msra.mxu0 0
    %4168 = vmatpush.bf16.msra.mxu0 0
    %4169 = vmatpush.bf16.msra.mxu0 %v4156
    %4170 = vmatpush.bf16.msra.mxu0 %v4155
    %4171 = vmatpush.bf16.msra.mxu0 %v4154
    %4172 = vmatpush.bf16.msra.mxu0 %v4153
    %4173 = vmatpush.bf16.msra.mxu0 %v4152
    %4174 = vmatmul.bf16.gmra.mxu0 %v4164
    %v4175 = vpop.f32.mrf.mxu0
    %v4176 = vadd.f32 0.0, %v4175
    %v4177 = vpop.f32.mrf.mxu0
    %4178 = vdwg.mxu0
    %v4189 = vunpack.c.l.b16 %v4085
    %v4190 = vunpack.c.l.b16 %v4086
    %v4191 = vunpack.c.l.b16 %v4087
    %v4192 = vunpack.c.l.b16 %v4088
    %v4193 = vunpack.c.l.b16 %v4089
    %v4194 = vunpack.c.l.b16 %v4090
    %v4195 = vunpack.c.l.b16 %v4091
    %v4196 = vunpack.c.l.b16 %v4092
    %v4197 = vunpack.c.l.b16 %v4093
    %v4198 = vunpack.c.l.b16 %v4094
    %v4199 = vpack.c.b16 %v4190, %v4189
    %v4200 = vpack.c.b16 %v4192, %v4191
    %v4201 = vpack.c.b16 %v4194, %v4193
    %v4202 = vpack.c.b16 %v4196, %v4195
    %v4203 = vpack.c.b16 %v4198, %v4197
    %v4210 = vsel %vm4162, %v4084, 0
    %4212 = vmatpush.bf16.msra.mxu0 0
    %4213 = vmatpush.bf16.msra.mxu0 0
    %4214 = vmatpush.bf16.msra.mxu0 0
    %4215 = vmatpush.bf16.msra.mxu0 %v4203
    %4216 = vmatpush.bf16.msra.mxu0 %v4202
    %4217 = vmatpush.bf16.msra.mxu0 %v4201
    %4218 = vmatpush.bf16.msra.mxu0 %v4200
    %4219 = vmatpush.bf16.msra.mxu0 %v4199
    %4220 = vmatmul.bf16.gmra.mxu0 %v4210
    %v4221 = vpop.f32.mrf.mxu0
    %v4222 = vadd.f32 %v4176, %v4221
    %v4223 = vpop.f32.mrf.mxu0
    %4224 = vdwg.mxu0
    %s4225 = scalar_lea.vmem %s17, 4
    %v4226 = vld [vmem:[%s4225] sm:$0x3]
    %v4228 = vsel %vm3432, %v4226, 0
    %4230 = vmatpush.msra.mxu0 0.0
    %4231 = vmatpush.msra.mxu0 0.0
    %4232 = vmatpush.msra.mxu0 0.0
    %4233 = vmatpush.msra.mxu0 0.0
    %4234 = vmatpush.msra.mxu0 0.0
    %4235 = vmatpush.msra.mxu0 0.0
    %4236 = vmatpush.msra.mxu0 0.0
    %4237 = vmatpush.msra.mxu0 0.0
    %4238 = vmatpush.msra.mxu0 0.0
    %4239 = vmatpush.msra.mxu0 0.0
    %4240 = vmatpush.msra.mxu0 0.0
    %4241 = vmatpush.msra.mxu0 0.0
    %4242 = vmatpush.msra.mxu0 0.0
    %4243 = vmatpush.msra.mxu0 0.0
    %4244 = vmatpush.msra.mxu0 %v4062
    %4245 = vmatpush.msra.mxu0 %v4055
    %4246 = vmatmul.f32.gmra.mxu0 %v4228
    %v4247 = vpop.f32.mrf.mxu0
    %v4248 = vadd.f32 0.0, %v4247
    %4249 = vdwg.mxu0
    %v4250 = vpack.c.bf16 %v4248, %v4248
    %s4251 = scalar_lea.vmem %s18, 80
    %v4252 = vld [vmem:[%s4251] sm:$0xf]
    %v4253 = vld [vmem:[%s4251 + $0x4] sm:$0xf]
    %v4254 = vld [vmem:[%s4251 + $0x8] sm:$0xf]
    %v4255 = vld [vmem:[%s4251 + $0xc] sm:$0xf]
    %v4256 = vld [vmem:[%s4251 + $0x10] sm:$0xf]
    %v4257 = vld [vmem:[%s4251 + $0x14] sm:$0xf]
    %v4258 = vld [vmem:[%s4251 + $0x18] sm:$0xf]
    %v4259 = vld [vmem:[%s4251 + $0x1c] sm:$0xf]
    %v4260 = vld [vmem:[%s4251 + $0x20] sm:$0xf]
    %v4261 = vld [vmem:[%s4251 + $0x24] sm:$0xf]
    %v4272 = vunpack.c.l.b16 %v4252
    %v4273 = vunpack.c.l.b16 %v4253
    %v4274 = vunpack.c.l.b16 %v4254
    %v4275 = vunpack.c.l.b16 %v4255
    %v4276 = vunpack.c.l.b16 %v4256
    %v4277 = vunpack.c.l.b16 %v4257
    %v4278 = vunpack.c.l.b16 %v4258
    %v4279 = vunpack.c.l.b16 %v4259
    %v4280 = vunpack.c.l.b16 %v4260
    %v4281 = vunpack.c.l.b16 %v4261
    %v4282 = vpack.c.b16 %v4273, %v4272
    %v4283 = vpack.c.b16 %v4275, %v4274
    %v4284 = vpack.c.b16 %v4277, %v4276
    %v4285 = vpack.c.b16 %v4279, %v4278
    %v4286 = vpack.c.b16 %v4281, %v4280
    %v4293 = vsel %vm4162, %v4250, 0
    %4295 = vmatpush.bf16.msra.mxu0 0
    %4296 = vmatpush.bf16.msra.mxu0 0
    %4297 = vmatpush.bf16.msra.mxu0 0
    %4298 = vmatpush.bf16.msra.mxu0 %v4286
    %4299 = vmatpush.bf16.msra.mxu0 %v4285
    %4300 = vmatpush.bf16.msra.mxu0 %v4284
    %4301 = vmatpush.bf16.msra.mxu0 %v4283
    %4302 = vmatpush.bf16.msra.mxu0 %v4282
    %4303 = vmatmul.bf16.gmra.mxu0 %v4293
    %v4304 = vpop.f32.mrf.mxu0
    %v4305 = vadd.f32 0.0, %v4304
    %v4306 = vpop.f32.mrf.mxu0
    %4307 = vdwg.mxu0
    %v4308 = vadd.f32 %v4222, %v4305
    %s4309 = scalar_lea.vmem %s17, 6
    %v4310 = vld [vmem:[%s4309] sm:$0x3]
    %v4312 = vsel %vm3432, %v4310, 0
    %4314 = vmatpush.msra.mxu0 0.0
    %4315 = vmatpush.msra.mxu0 0.0
    %4316 = vmatpush.msra.mxu0 0.0
    %4317 = vmatpush.msra.mxu0 0.0
    %4318 = vmatpush.msra.mxu0 0.0
    %4319 = vmatpush.msra.mxu0 0.0
    %4320 = vmatpush.msra.mxu0 0.0
    %4321 = vmatpush.msra.mxu0 0.0
    %4322 = vmatpush.msra.mxu0 0.0
    %4323 = vmatpush.msra.mxu0 0.0
    %4324 = vmatpush.msra.mxu0 0.0
    %4325 = vmatpush.msra.mxu0 0.0
    %4326 = vmatpush.msra.mxu0 0.0
    %4327 = vmatpush.msra.mxu0 0.0
    %4328 = vmatpush.msra.mxu0 %v4062
    %4329 = vmatpush.msra.mxu0 %v4055
    %4330 = vmatmul.f32.gmra.mxu0 %v4312
    %v4331 = vpop.f32.mrf.mxu0
    %v4332 = vadd.f32 0.0, %v4331
    %4333 = vdwg.mxu0
    %v4334 = vpack.c.bf16 %v4332, %v4332
    %s4335 = scalar_lea.vmem %s18, 120
    %v4336 = vld [vmem:[%s4335] sm:$0xf]
    %v4337 = vld [vmem:[%s4335 + $0x4] sm:$0xf]
    %v4338 = vld [vmem:[%s4335 + $0x8] sm:$0xf]
    %v4339 = vld [vmem:[%s4335 + $0xc] sm:$0xf]
    %v4340 = vld [vmem:[%s4335 + $0x10] sm:$0xf]
    %v4341 = vld [vmem:[%s4335 + $0x14] sm:$0xf]
    %v4342 = vld [vmem:[%s4335 + $0x18] sm:$0xf]
    %v4343 = vld [vmem:[%s4335 + $0x1c] sm:$0xf]
    %v4344 = vld [vmem:[%s4335 + $0x20] sm:$0xf]
    %v4345 = vld [vmem:[%s4335 + $0x24] sm:$0xf]
    %v4356 = vunpack.c.l.b16 %v4336
    %v4357 = vunpack.c.l.b16 %v4337
    %v4358 = vunpack.c.l.b16 %v4338
    %v4359 = vunpack.c.l.b16 %v4339
    %v4360 = vunpack.c.l.b16 %v4340
    %v4361 = vunpack.c.l.b16 %v4341
    %v4362 = vunpack.c.l.b16 %v4342
    %v4363 = vunpack.c.l.b16 %v4343
    %v4364 = vunpack.c.l.b16 %v4344
    %v4365 = vunpack.c.l.b16 %v4345
    %v4366 = vpack.c.b16 %v4357, %v4356
    %v4367 = vpack.c.b16 %v4359, %v4358
    %v4368 = vpack.c.b16 %v4361, %v4360
    %v4369 = vpack.c.b16 %v4363, %v4362
    %v4370 = vpack.c.b16 %v4365, %v4364
    %v4377 = vsel %vm4162, %v4334, 0
    %4379 = vmatpush.bf16.msra.mxu0 0
    %4380 = vmatpush.bf16.msra.mxu0 0
    %4381 = vmatpush.bf16.msra.mxu0 0
    %4382 = vmatpush.bf16.msra.mxu0 %v4370
    %4383 = vmatpush.bf16.msra.mxu0 %v4369
    %4384 = vmatpush.bf16.msra.mxu0 %v4368
    %4385 = vmatpush.bf16.msra.mxu0 %v4367
    %4386 = vmatpush.bf16.msra.mxu0 %v4366
    %4387 = vmatmul.bf16.gmra.mxu0 %v4377
    %v4388 = vpop.f32.mrf.mxu0
    %v4389 = vadd.f32 0.0, %v4388
    %v4390 = vpop.f32.mrf.mxu0
    %4391 = vdwg.mxu0
    %v4392 = vadd.f32 %v4308, %v4389
    %s4393 = scalar_lea.vmem %s17, 8
    %v4394 = vld [vmem:[%s4393] sm:$0x3]
    %v4396 = vsel %vm3432, %v4394, 0
    %4398 = vmatpush.msra.mxu0 0.0
    %4399 = vmatpush.msra.mxu0 0.0
    %4400 = vmatpush.msra.mxu0 0.0
    %4401 = vmatpush.msra.mxu0 0.0
    %4402 = vmatpush.msra.mxu0 0.0
    %4403 = vmatpush.msra.mxu0 0.0
    %4404 = vmatpush.msra.mxu0 0.0
    %4405 = vmatpush.msra.mxu0 0.0
    %4406 = vmatpush.msra.mxu0 0.0
    %4407 = vmatpush.msra.mxu0 0.0
    %4408 = vmatpush.msra.mxu0 0.0
    %4409 = vmatpush.msra.mxu0 0.0
    %4410 = vmatpush.msra.mxu0 0.0
    %4411 = vmatpush.msra.mxu0 0.0
    %4412 = vmatpush.msra.mxu0 %v4062
    %4413 = vmatpush.msra.mxu0 %v4055
    %4414 = vmatmul.f32.gmra.mxu0 %v4396
    %v4415 = vpop.f32.mrf.mxu0
    %v4416 = vadd.f32 0.0, %v4415
    %4417 = vdwg.mxu0
    %v4418 = vpack.c.bf16 %v4416, %v4416
    %s4419 = scalar_lea.vmem %s18, 160
    %v4420 = vld [vmem:[%s4419] sm:$0xf]
    %v4421 = vld [vmem:[%s4419 + $0x4] sm:$0xf]
    %v4422 = vld [vmem:[%s4419 + $0x8] sm:$0xf]
    %v4423 = vld [vmem:[%s4419 + $0xc] sm:$0xf]
    %v4424 = vld [vmem:[%s4419 + $0x10] sm:$0xf]
    %v4425 = vld [vmem:[%s4419 + $0x14] sm:$0xf]
    %v4426 = vld [vmem:[%s4419 + $0x18] sm:$0xf]
    %v4427 = vld [vmem:[%s4419 + $0x1c] sm:$0xf]
    %v4428 = vld [vmem:[%s4419 + $0x20] sm:$0xf]
    %v4429 = vld [vmem:[%s4419 + $0x24] sm:$0xf]
    %v4440 = vunpack.c.l.b16 %v4420
    %v4441 = vunpack.c.l.b16 %v4421
    %v4442 = vunpack.c.l.b16 %v4422
    %v4443 = vunpack.c.l.b16 %v4423
    %v4444 = vunpack.c.l.b16 %v4424
    %v4445 = vunpack.c.l.b16 %v4425
    %v4446 = vunpack.c.l.b16 %v4426
    %v4447 = vunpack.c.l.b16 %v4427
    %v4448 = vunpack.c.l.b16 %v4428
    %v4449 = vunpack.c.l.b16 %v4429
    %v4450 = vpack.c.b16 %v4441, %v4440
    %v4451 = vpack.c.b16 %v4443, %v4442
    %v4452 = vpack.c.b16 %v4445, %v4444
    %v4453 = vpack.c.b16 %v4447, %v4446
    %v4454 = vpack.c.b16 %v4449, %v4448
    %v4461 = vsel %vm4162, %v4418, 0
    %4463 = vmatpush.bf16.msra.mxu0 0
    %4464 = vmatpush.bf16.msra.mxu0 0
    %4465 = vmatpush.bf16.msra.mxu0 0
    %4466 = vmatpush.bf16.msra.mxu0 %v4454
    %4467 = vmatpush.bf16.msra.mxu0 %v4453
    %4468 = vmatpush.bf16.msra.mxu0 %v4452
    %4469 = vmatpush.bf16.msra.mxu0 %v4451
    %4470 = vmatpush.bf16.msra.mxu0 %v4450
    %4471 = vmatmul.bf16.gmra.mxu0 %v4461
    %v4472 = vpop.f32.mrf.mxu0
    %v4473 = vadd.f32 0.0, %v4472
    %v4474 = vpop.f32.mrf.mxu0
    %4475 = vdwg.mxu0
    %v4476 = vadd.f32 %v4392, %v4473
    %v4477 = vld [vmem:[%s19] sm:$0x1]
    %v4479 = vperm.slane %v4477, 0
    %v4481 = vadd.f32 %v4476, %v4479
    %v4482 = vmax.f32 %v4481, 0.0
    %v4483 = vpack.c.bf16 %v4482, %v4482
    %v4484 = vld [vmem:[%s20] sm:$0xf]
    %v4485 = vld [vmem:[%s20 + $0x4] sm:$0xf]
    %v4486 = vld [vmem:[%s20 + $0x8] sm:$0xf]
    %v4487 = vld [vmem:[%s20 + $0xc] sm:$0xf]
    %v4488 = vld [vmem:[%s20 + $0x10] sm:$0xf]
    %v4489 = vld [vmem:[%s20 + $0x14] sm:$0xf]
    %v4490 = vld [vmem:[%s20 + $0x18] sm:$0xf]
    %v4491 = vld [vmem:[%s20 + $0x1c] sm:$0xf]
    %v4492 = vld [vmem:[%s20 + $0x20] sm:$0xf]
    %v4493 = vld [vmem:[%s20 + $0x24] sm:$0xf]
    %v4494 = vld [vmem:[%s20 + $0x28] sm:$0xf]
    %v4495 = vld [vmem:[%s20 + $0x2c] sm:$0xf]
    %v4496 = vld [vmem:[%s20 + $0x30] sm:$0xf]
    %v4497 = vld [vmem:[%s20 + $0x34] sm:$0xf]
    %v4498 = vld [vmem:[%s20 + $0x38] sm:$0xf]
    %v4499 = vld [vmem:[%s21] sm:$0x1]
    %v4501 = vperm.slane %v4499, 0
    %v4518 = vunpack.c.l.b16 %v4484
    %v4519 = vunpack.c.l.b16 %v4485
    %v4520 = vunpack.c.l.b16 %v4486
    %v4521 = vunpack.c.l.b16 %v4487
    %v4522 = vunpack.c.l.b16 %v4488
    %v4523 = vunpack.c.l.b16 %v4489
    %v4524 = vunpack.c.l.b16 %v4490
    %v4525 = vunpack.c.l.b16 %v4491
    %v4526 = vunpack.c.l.b16 %v4492
    %v4527 = vunpack.c.l.b16 %v4493
    %v4528 = vunpack.c.l.b16 %v4494
    %v4529 = vunpack.c.l.b16 %v4495
    %v4530 = vunpack.c.l.b16 %v4496
    %v4531 = vunpack.c.l.b16 %v4497
    %v4532 = vunpack.c.l.b16 %v4498
    %v4533 = vpack.c.b16 %v4519, %v4518
    %v4534 = vpack.c.b16 %v4521, %v4520
    %v4535 = vpack.c.b16 %v4523, %v4522
    %v4536 = vpack.c.b16 %v4525, %v4524
    %v4537 = vpack.c.b16 %v4527, %v4526
    %v4538 = vpack.c.b16 %v4529, %v4528
    %v4539 = vpack.c.b16 %v4531, %v4530
    %v4540 = vpack.c.b16 %v4532, %v4532
    %vm4548 = vcmask 982016
    %v4550 = vsel %vm4548, %v4483, 0
    %v4553 = vsel %vm1542, %v4540, 0
    %4555 = vmatpush.bf16.msra.mxu0 %v4553
    %4556 = vmatpush.bf16.msra.mxu0 %v4539
    %4557 = vmatpush.bf16.msra.mxu0 %v4538
    %4558 = vmatpush.bf16.msra.mxu0 %v4537
    %4559 = vmatpush.bf16.msra.mxu0 %v4536
    %4560 = vmatpush.bf16.msra.mxu0 %v4535
    %4561 = vmatpush.bf16.msra.mxu0 %v4534
    %4562 = vmatpush.bf16.msra.mxu0 %v4533
    %4563 = vmatmul.bf16.gmra.mxu0 %v4550
    %v4564 = vpop.f32.mrf.mxu0
    %v4565 = vadd.f32 %v4501, %v4564
    %v4566 = vpop.f32.mrf.mxu0
    %4567 = vdwg.mxu0
    %v4568 = vmax.f32 %v4565, 0.0
    %v4569 = vpack.c.bf16 %v4568, %v4568
    %v4570 = vld [vmem:[%s22] sm:$0xf]
    %v4571 = vld [vmem:[%s22 + $0x4] sm:$0xf]
    %v4572 = vld [vmem:[%s22 + $0x8] sm:$0xf]
    %v4573 = vld [vmem:[%s22 + $0xc] sm:$0xf]
    %v4574 = vld [vmem:[%s22 + $0x10] sm:$0xf]
    %v4575 = vld [vmem:[%s22 + $0x14] sm:$0xf]
    %v4576 = vld [vmem:[%s22 + $0x18] sm:$0xf]
    %v4577 = vld [vmem:[%s22 + $0x1c] sm:$0xf]
    %v4578 = vld [vmem:[%s23] sm:$0x1]
    %v4580 = vperm.slane %v4578, 0
    %v4590 = vunpack.c.l.b16 %v4570
    %v4591 = vunpack.c.l.b16 %v4571
    %v4592 = vunpack.c.l.b16 %v4572
    %v4593 = vunpack.c.l.b16 %v4573
    %v4594 = vunpack.c.l.b16 %v4574
    %v4595 = vunpack.c.l.b16 %v4575
    %v4596 = vunpack.c.l.b16 %v4576
    %v4597 = vunpack.c.l.b16 %v4577
    %v4598 = vpack.c.b16 %v4591, %v4590
    %v4599 = vpack.c.b16 %v4593, %v4592
    %v4600 = vpack.c.b16 %v4595, %v4594
    %v4601 = vpack.c.b16 %v4597, %v4596
    %vm4606 = vcmask 523264
    %v4608 = vsel %vm4606, %v4569, 0
    %4610 = vmatpush.bf16.msra.mxu0 0
    %4611 = vmatpush.bf16.msra.mxu0 0
    %4612 = vmatpush.bf16.msra.mxu0 0
    %4613 = vmatpush.bf16.msra.mxu0 0
    %4614 = vmatpush.bf16.msra.mxu0 %v4601
    %4615 = vmatpush.bf16.msra.mxu0 %v4600
    %4616 = vmatpush.bf16.msra.mxu0 %v4599
    %4617 = vmatpush.bf16.msra.mxu0 %v4598
    %4618 = vmatmul.bf16.gmra.mxu0 %v4608
    %v4619 = vpop.f32.mrf.mxu0
    %v4620 = vadd.f32 %v4580, %v4619
    %v4621 = vpop.f32.mrf.mxu0
    %4622 = vdwg.mxu0
    %vm4623 = vcmask 74752
    %4624 = vst.msk [vmem:[#allocation4] sm:$0x3] %vm4623, %v4620
    // Predicated region
    $region98: #{cnn_forward.1} parent=1 // pred_check
      _
    $region99: #{cnn_forward.1} parent=1 // pred_check_branch
      %4626 = sbr.rel (0) target = $region101
    $region100: #{cnn_forward.1} parent=1 // pred_region
      %4628 = vsyncadd [#allocation5], 0
      %s4630 = sshll.u32 [#allocation4], 4
      %s4631 = int_to_ptr.vmem [resolvable:$true] %s4630
      %s4632 = sshll.u32 %s24, 4
      %s4633 = int_to_ptr.hbm [resolvable:$true] %s4632
      %4635 = dma.vmem_to_hbm [thread:$0]  %s4631, 32, %s4633, [#allocation5]
    $region101: #{cnn_forward.1} parent=1 // pred_fallthru
      _
    // Predicated region
    $region102: #{cnn_forward.1} parent=1 // pred_check
      _
    $region103: #{cnn_forward.1} parent=1 // pred_check_branch
      %4637 = sbr.rel (0) target = $region105
    $region104: #{cnn_forward.1} parent=1 // pred_region
      %4639 = dma.done [#allocation5], 32
    $region105: #{cnn_forward.1} parent=1 // pred_fallthru
      _
    %4640 = vsyncpa [#allocation5], 1

</llo_original>
